<compile_context>
chip_gen: v6e
topology: v6e:2x2x1
jax: 0.10.0
libtpu: 0.0.40
codegen_flags: <defaults>
</compile_context>

<pallas_src>
import jax
import jax.numpy as jnp
from jax.experimental import pallas as pl
from jax.experimental.pallas import tpu as pltpu

EMBEDDING_SIZE = 256      # embedding_size in the PyTorch module
NUM_CLASSES = 10
CLASS_PAD = 128           # lane-dense classifier width (sliced back to 10)
ATT_PAD = 128             # extra projection columns (2 used for att_src/att_dst)
LEAKY_SLOPE = 0.2         # GATConv default negative_slope
NEG_MASK = -1e30          # additive mask for non-edges / padded classes

# Tile sizes: multiples of 128 (v5e MXU granule).  On v6e/v7x these can be
# raised (256-512) -- re-derive against the 64 MiB v7x VMEM budget.
TILE_I = 128              # target-node (query) tile
TILE_J = 128              # source-node (key/value) tile
VMEM_LIMIT = 48 * 1024 * 1024


# ---------------------------------------------------------------------------
# Kernel 1: projection  h_ext = x @ W_ext   (attention columns folded into W)
# ---------------------------------------------------------------------------
def _proj_kernel(x_ref, w_ref, h_ref, ae_ref):
    h_ext = jnp.dot(x_ref[...], w_ref[...],
                    preferred_element_type=jnp.float32)      # (TI, d + ATT_PAD)
    h_ref[...] = h_ext[:, :EMBEDDING_SIZE].astype(jnp.bfloat16)
    ae_ref[...] = h_ext[:, EMBEDDING_SIZE:]                  # col0=a_src col1=a_dst


# ---------------------------------------------------------------------------
# Shared online-softmax attention step (one (i, j) block)
# ---------------------------------------------------------------------------
def _attn_step(adj_ref, adst_ref, asrct_ref, h_ref, m_sc, l_sc, acc_sc):
    # e[i, j] = LeakyReLU(a_dst[i] + a_src[j]), masked additively to -1e30.
    e = adst_ref[...] + asrct_ref[...]                       # (TI,1)+(1,TJ)->(TI,TJ)
    e = jnp.maximum(e, LEAKY_SLOPE * e)                      # LeakyReLU (slope < 1)
    e = jnp.where(adj_ref[...] != 0, e, NEG_MASK)            # int8 mask -> bias

    m_prev = m_sc[...]
    m_new = jnp.maximum(m_prev, jnp.max(e, axis=-1, keepdims=True))
    alpha = jnp.exp(m_prev - m_new)
    p = jnp.exp(e - m_new)                                   # unnormalized probs
    l_sc[...] = alpha * l_sc[...] + jnp.sum(p, axis=-1, keepdims=True)
    acc_sc[...] = alpha * acc_sc[...] + jnp.dot(
        p.astype(jnp.bfloat16), h_ref[...], preferred_element_type=jnp.float32)
    m_sc[...] = m_new


def _init_state(m_sc, l_sc, acc_sc):
    m_sc[...] = jnp.full(m_sc.shape, NEG_MASK, jnp.float32)
    l_sc[...] = jnp.zeros(l_sc.shape, jnp.float32)
    acc_sc[...] = jnp.zeros(acc_sc.shape, jnp.float32)


def _finalize(acc_sc, l_sc, b_ref):
    # Post-aggregation normalization (exact divide on the (TI, d) result only),
    # + bias + the fused F.relu from the forward pass.
    out = acc_sc[...] / l_sc[...] + b_ref[...]
    return jnp.maximum(out, 0.0)


# ---------------------------------------------------------------------------
# Kernel 2: GAT layer 1 -- epilogue fuses the layer-2 projection
# ---------------------------------------------------------------------------
def _attn1_kernel(bm_ref, adj_ref, adst_ref, asrct_ref, h_ref, b_ref, w2e_ref,
                  hout_ref, aeout_ref, m_sc, l_sc, acc_sc):
    i = pl.program_id(0)
    j = pl.program_id(1)
    nj = pl.num_programs(1)

    @pl.when(j == 0)
    def _():
        _init_state(m_sc, l_sc, acc_sc)

    # Skip fully-masked (no-edge) blocks entirely.
    @pl.when(bm_ref[i * nj + j] != 0)
    def _():
        _attn_step(adj_ref, adst_ref, asrct_ref, h_ref, m_sc, l_sc, acc_sc)

    @pl.when(j == nj - 1)
    def _():
        emb = _finalize(acc_sc, l_sc, b_ref)                 # relu'd (TI, d)
        h_ext = jnp.dot(emb.astype(jnp.bfloat16), w2e_ref[...],
                        preferred_element_type=jnp.float32)  # layer-2 projection
        hout_ref[...] = h_ext[:, :EMBEDDING_SIZE].astype(jnp.bfloat16)
        aeout_ref[...] = h_ext[:, EMBEDDING_SIZE:]


# ---------------------------------------------------------------------------
# Kernel 3: GAT layer 2 -- epilogue fuses Linear(256->10) + Softmax
# ---------------------------------------------------------------------------
def _attn2_kernel(bm_ref, adj_ref, adst_ref, asrct_ref, h_ref, b_ref,
                  fcw_ref, fcb_ref, o_ref, m_sc, l_sc, acc_sc):
    i = pl.program_id(0)
    j = pl.program_id(1)
    nj = pl.num_programs(1)

    @pl.when(j == 0)
    def _():
        _init_state(m_sc, l_sc, acc_sc)

    @pl.when(bm_ref[i * nj + j] != 0)
    def _():
        _attn_step(adj_ref, adst_ref, asrct_ref, h_ref, m_sc, l_sc, acc_sc)

    @pl.when(j == nj - 1)
    def _():
        emb = _finalize(acc_sc, l_sc, b_ref)                 # relu'd (TI, d)
        logits = jnp.dot(emb.astype(jnp.bfloat16), fcw_ref[...],
                         preferred_element_type=jnp.float32) + fcb_ref[...]
        m = jnp.max(logits, axis=-1, keepdims=True)
        p = jnp.exp(logits - m)                              # padded classes -> 0
        o_ref[...] = p / jnp.sum(p, axis=-1, keepdims=True)


# ---------------------------------------------------------------------------
# pallas_call wrappers
# ---------------------------------------------------------------------------
def _projection(x, w_ext):
    n, f_pad = x.shape
    d_ext = w_ext.shape[1]
    return pl.pallas_call(
        _proj_kernel,
        out_shape=(jax.ShapeDtypeStruct((n, EMBEDDING_SIZE), jnp.bfloat16),
                   jax.ShapeDtypeStruct((n, ATT_PAD), jnp.float32)),
        grid_spec=pltpu.PrefetchScalarGridSpec(
            num_scalar_prefetch=0,
            grid=(n // TILE_I,),
            in_specs=[pl.BlockSpec((TILE_I, f_pad), lambda i: (i, 0)),
                      pl.BlockSpec((f_pad, d_ext), lambda i: (0, 0))],
            out_specs=(pl.BlockSpec((TILE_I, EMBEDDING_SIZE), lambda i: (i, 0)),
                       pl.BlockSpec((TILE_I, ATT_PAD), lambda i: (i, 0)))),
        compiler_params=pltpu.CompilerParams(
            dimension_semantics=("parallel",),
            vmem_limit_bytes=VMEM_LIMIT),
    )(x, w_ext)


def _attention_layer1(block_mask, adj, a_dst, a_srcT, h, b, w2e):
    n = h.shape[0]
    d = EMBEDDING_SIZE
    d_ext = w2e.shape[1]
    return pl.pallas_call(
        _attn1_kernel,
        out_shape=(jax.ShapeDtypeStruct((n, d), jnp.bfloat16),
                   jax.ShapeDtypeStruct((n, ATT_PAD), jnp.float32)),
        grid_spec=pltpu.PrefetchScalarGridSpec(
            num_scalar_prefetch=1,
            grid=(n // TILE_I, n // TILE_J),
            in_specs=[
                pl.BlockSpec((TILE_I, TILE_J), lambda i, j, bm: (i, j)),   # adj
                pl.BlockSpec((TILE_I, 1),      lambda i, j, bm: (i, 0)),   # a_dst
                pl.BlockSpec((1, TILE_J),      lambda i, j, bm: (0, j)),   # a_src^T
                pl.BlockSpec((TILE_J, d),      lambda i, j, bm: (j, 0)),   # h (src)
                pl.BlockSpec((1, d),           lambda i, j, bm: (0, 0)),   # bias
                pl.BlockSpec((d, d_ext),       lambda i, j, bm: (0, 0)),   # W2_ext
            ],
            out_specs=(pl.BlockSpec((TILE_I, d),       lambda i, j, bm: (i, 0)),
                       pl.BlockSpec((TILE_I, ATT_PAD), lambda i, j, bm: (i, 0))),
            scratch_shapes=[pltpu.VMEM((TILE_I, 1), jnp.float32),
                            pltpu.VMEM((TILE_I, 1), jnp.float32),
                            pltpu.VMEM((TILE_I, d), jnp.float32)]),
        compiler_params=pltpu.CompilerParams(
            dimension_semantics=("parallel", "arbitrary"),
            vmem_limit_bytes=VMEM_LIMIT),
    )(block_mask, adj, a_dst, a_srcT, h, b, w2e)


def _attention_layer2(block_mask, adj, a_dst, a_srcT, h, b, fcw, fcb):
    n = h.shape[0]
    d = EMBEDDING_SIZE
    return pl.pallas_call(
        _attn2_kernel,
        out_shape=jax.ShapeDtypeStruct((n, CLASS_PAD), jnp.float32),
        grid_spec=pltpu.PrefetchScalarGridSpec(
            num_scalar_prefetch=1,
            grid=(n // TILE_I, n // TILE_J),
            in_specs=[
                pl.BlockSpec((TILE_I, TILE_J), lambda i, j, bm: (i, j)),   # adj
                pl.BlockSpec((TILE_I, 1),      lambda i, j, bm: (i, 0)),   # a_dst
                pl.BlockSpec((1, TILE_J),      lambda i, j, bm: (0, j)),   # a_src^T
                pl.BlockSpec((TILE_J, d),      lambda i, j, bm: (j, 0)),   # h (src)
                pl.BlockSpec((1, d),           lambda i, j, bm: (0, 0)),   # bias
                pl.BlockSpec((d, CLASS_PAD),   lambda i, j, bm: (0, 0)),   # fc W
                pl.BlockSpec((1, CLASS_PAD),   lambda i, j, bm: (0, 0)),   # fc b
            ],
            out_specs=pl.BlockSpec((TILE_I, CLASS_PAD), lambda i, j, bm: (i, 0)),
            scratch_shapes=[pltpu.VMEM((TILE_I, 1), jnp.float32),
                            pltpu.VMEM((TILE_I, 1), jnp.float32),
                            pltpu.VMEM((TILE_I, d), jnp.float32)]),
        compiler_params=pltpu.CompilerParams(
            dimension_semantics=("parallel", "arbitrary"),
            vmem_limit_bytes=VMEM_LIMIT),
    )(block_mask, adj, a_dst, a_srcT, h, b, fcw, fcb)


def gat_forward(x_pad, adj_i8, block_mask, params):
    """x_pad: (N, F_pad) bf16, adj_i8: (N, N) int8, block_mask: (gi*gj,) int32."""
    # Layer-1 projection (att columns folded into W1_ext).
    h1, ae1 = _projection(x_pad, params["w1e"])
    a_dst1 = ae1[:, 1:2]                       # (N, 1)
    a_src1t = jnp.transpose(ae1[:, 0:1])       # (1, N) -- lane-direction for e rows

    # GAT layer 1 (relu fused); epilogue already projects with W2_ext.
    h2, ae2 = _attention_layer1(block_mask, adj_i8, a_dst1, a_src1t, h1,
                                params["b1"], params["w2e"])
    a_dst2 = ae2[:, 1:2]
    a_src2t = jnp.transpose(ae2[:, 0:1])

    # GAT layer 2 (relu fused) + Linear + Softmax epilogue.
    probs = _attention_layer2(block_mask, adj_i8, a_dst2, a_src2t, h2,
                              params["b2"], params["fcw"], params["fcb"])
    return probs[:, :NUM_CLASSES]


# ---------------------------------------------------------------------------
# Deterministic parameter init + host-side preparation (fold/pack/pad)
# ---------------------------------------------------------------------------
def init_params(key, f_in, d, n_classes):
    ks = jax.random.split(key, 8)

    def glorot(k, shape):
        fan_in, fan_out = shape[-2], shape[-1]
        scale = jnp.sqrt(2.0 / (fan_in + fan_out))
        return scale * jax.random.normal(k, shape, jnp.float32)

    return {
        # initial_conv = GATConv(f_in, d)
        "w1": glorot(ks[0], (f_in, d)),
        "asrc1": 0.1 * jax.random.normal(ks[1], (1, d), jnp.float32),
        "adst1": 0.1 * jax.random.normal(ks[2], (1, d), jnp.float32),
        "b1": jnp.zeros((1, d), jnp.float32),
        # conv1 = GATConv(d, d)
        "w2": glorot(ks[3], (d, d)),
        "asrc2": 0.1 * jax.random.normal(ks[4], (1, d), jnp.float32),
        "adst2": 0.1 * jax.random.normal(ks[5], (1, d), jnp.float32),
        "b2": jnp.zeros((1, d), jnp.float32),
        # fc = Linear(d, 10)
        "fc_w": glorot(ks[6], (d, n_classes)),
        "fc_b": 0.01 * jax.random.normal(ks[7], (1, n_classes), jnp.float32),
    }


def prepare_params(raw, f_pad):
    """Fold attention vectors into the projection weights, pad the input-feature
    rows / classifier columns to lane-dense widths, downcast matmuls to bf16."""
    d = EMBEDDING_SIZE

    def extend(w, asrc, adst, rows):
        cols = jnp.concatenate(
            [w,
             w @ asrc.reshape(-1, 1),                 # column d   : <., att_src>
             w @ adst.reshape(-1, 1),                 # column d+1 : <., att_dst>
             jnp.zeros((w.shape[0], ATT_PAD - 2), jnp.float32)],
            axis=1)
        if rows > w.shape[0]:                          # pad K dim to multiple of 128
            cols = jnp.concatenate(
                [cols, jnp.zeros((rows - w.shape[0], cols.shape[1]), jnp.float32)],
                axis=0)
        return cols.astype(jnp.bfloat16)               # (rows, d + ATT_PAD)

    fcw = jnp.zeros((d, CLASS_PAD), jnp.float32).at[:, :NUM_CLASSES].set(raw["fc_w"])
    fcb = jnp.full((1, CLASS_PAD), NEG_MASK, jnp.float32).at[:, :NUM_CLASSES].set(raw["fc_b"])

    return {
        "w1e": extend(raw["w1"], raw["asrc1"], raw["adst1"], f_pad),
        "b1": raw["b1"],
        "w2e": extend(raw["w2"], raw["asrc2"], raw["adst2"], d),
        "b2": raw["b2"],
        "fcw": fcw.astype(jnp.bfloat16),
        "fcb": fcb,                                    # f32 (carries the -1e30 pad bias)
    }


def reference_forward(x, adj_bool, raw):
    """Pure-JAX f32 dense reference (mirrors the PyTorch forward)."""
    def gat_layer(xx, w, asrc, adst, b):
        h = xx @ w
        s = h @ asrc.reshape(-1, 1)
        t = h @ adst.reshape(-1, 1)
        e = t + s.T
        e = jnp.where(e > 0, e, LEAKY_SLOPE * e)
        e = jnp.where(adj_bool, e, NEG_MASK)
        e = e - jnp.max(e, axis=-1, keepdims=True)
        p = jnp.exp(e)
        attn = p / jnp.sum(p, axis=-1, keepdims=True)
        return jnp.maximum(attn @ h + b, 0.0)

    e1 = gat_layer(x, raw["w1"], raw["asrc1"], raw["adst1"], raw["b1"])
    e2 = gat_layer(e1, raw["w2"], raw["asrc2"], raw["adst2"], raw["b2"])
    logits = e2 @ raw["fc_w"] + raw["fc_b"]
    return jax.nn.softmax(logits, axis=-1)


if __name__ == "__main__":
    key = jax.random.PRNGKey(0)
    k_x, k_src, k_dst, k_p = jax.random.split(key, 4)

    # Small synthetic graph standing in for WikiCS: 512 nodes, 32 input features.
    N, F_IN, E = 512, 32, 4096
    F_PAD = ((F_IN + 127) // 128) * 128
    x = jax.random.normal(k_x, (N, F_IN), jnp.float32)
    src = jax.random.randint(k_src, (E,), 0, N)
    dst = jax.random.randint(k_dst, (E,), 0, N)

    # Dense adjacency: adj[i, j] = 1 iff edge j -> i; add self loops (GATConv
    # default add_self_loops=True -- required so every softmax row has >= 1
    # unmasked entry).
    adj_bool = jnp.zeros((N, N), jnp.bool_).at[dst, src].set(True)
    adj_bool = adj_bool | jnp.eye(N, dtype=jnp.bool_)
    adj_i8 = adj_bool.astype(jnp.int8)

    # Per-(i_tile, j_tile) "has any edge" table for block skipping (flattened
    # 1D int32 for compact SMEM layout).
    gi, gj = N // TILE_I, N // TILE_J
    block_mask = jnp.any(adj_bool.reshape(gi, TILE_I, gj, TILE_J),
                         axis=(1, 3)).astype(jnp.int32).reshape(-1)

    raw = init_params(k_p, F_IN, EMBEDDING_SIZE, NUM_CLASSES)
    params = prepare_params(raw, F_PAD)

    # Lane-dense, zero-padded input features in bf16.
    x_pad = jnp.zeros((N, F_PAD), jnp.float32).at[:, :F_IN].set(x).astype(jnp.bfloat16)

    out = jax.jit(gat_forward)(x_pad, adj_i8, block_mask, params)
    jax.block_until_ready(out)

    assert out.shape == (N, NUM_CLASSES)
    # Softmax rows must sum to 1 (padded classes contribute exactly 0).
    assert jnp.allclose(jnp.sum(out, axis=-1), 1.0, atol=1e-3)

    # Parity vs. an f32 dense reference (bf16 matmul operands -> loose tol).
    ref = reference_forward(x, adj_bool, raw)
    max_err = float(jnp.max(jnp.abs(out - ref)))
    assert max_err < 7e-2, f"max abs diff vs reference: {max_err}"
    print("KERNEL_OK")
</pallas_src>

<mosaic_0001>
module attributes {stable_mosaic.version = 11 : i64} {
  func.func @_attn1_kernel(%arg0: i32, %arg1: i32, %arg2: memref<16xi32, #tpu.memory_space<smem>>, %arg3: memref<128x128xi8, #tpu.memory_space<vmem>>, %arg4: memref<128x1xf32, #tpu.memory_space<vmem>>, %arg5: memref<1x128xf32, #tpu.memory_space<vmem>>, %arg6: memref<128x256xbf16, #tpu.memory_space<vmem>>, %arg7: memref<1x256xf32, #tpu.memory_space<vmem>>, %arg8: memref<256x384xbf16, #tpu.memory_space<vmem>>, %arg9: memref<128x256xbf16, #tpu.memory_space<vmem>>, %arg10: memref<128x128xf32, #tpu.memory_space<vmem>>, %arg11: memref<128x1xf32, #tpu.memory_space<vmem>>, %arg12: memref<128x1xf32, #tpu.memory_space<vmem>>, %arg13: memref<128x256xf32, #tpu.memory_space<vmem>>) attributes {dimension_semantics = [#tpu.dimension_semantics<parallel>, #tpu.dimension_semantics<arbitrary>], iteration_bounds = array<i64: 4, 4>, scalar_prefetch = 1 : i64, scratch_operands = 3 : i64, tpu.core_type = #tpu.core_type<tc>, window_params = [{transform_indices = @transform_0, window_bounds = array<i64: 128, 128>}, {transform_indices = @transform_1, window_bounds = array<i64: 128, 1>}, {transform_indices = @transform_2, window_bounds = array<i64: 1, 128>}, {transform_indices = @transform_3, window_bounds = array<i64: 128, 256>}, {pipeline_mode = #tpu.pipeline_mode<synchronous>, transform_indices = @transform_4, window_bounds = array<i64: 1, 256>}, {pipeline_mode = #tpu.pipeline_mode<synchronous>, transform_indices = @transform_5, window_bounds = array<i64: 256, 384>}, {transform_indices = @transform_6, window_bounds = array<i64: 128, 256>}, {transform_indices = @transform_7, window_bounds = array<i64: 128, 128>}]} {
    %c0_i32 = arith.constant 0 : i32
    %0 = arith.cmpi eq, %arg1, %c0_i32 : i32
    %1 = arith.extui %0 : i1 to i32
    %c0_i32_0 = arith.constant 0 : i32
    %2 = arith.cmpi ne, %1, %c0_i32_0 : i32
    scf.if %2 {
      %cst = arith.constant -1.000000e+30 : f32
      %13 = vector.broadcast %cst : f32 to vector<128x1xf32>
      %c0 = arith.constant 0 : index
      %c0_4 = arith.constant 0 : index
      %14 = vector.load %arg11[%c0, %c0_4] : memref<128x1xf32, #tpu.memory_space<vmem>>, vector<128x1xf32>
      tpu.vector_store %arg11[%c0, %c0_4], %13 {strides = array<i32>} : memref<128x1xf32, #tpu.memory_space<vmem>>, vector<128x1xf32>,
      %cst_5 = arith.constant 0.000000e+00 : f32
      %15 = vector.broadcast %cst_5 : f32 to vector<128x1xf32>
      %c0_6 = arith.constant 0 : index
      %c0_7 = arith.constant 0 : index
      %16 = vector.load %arg12[%c0_6, %c0_7] : memref<128x1xf32, #tpu.memory_space<vmem>>, vector<128x1xf32>
      tpu.vector_store %arg12[%c0_6, %c0_7], %15 {strides = array<i32>} : memref<128x1xf32, #tpu.memory_space<vmem>>, vector<128x1xf32>,
      %cst_8 = arith.constant 0.000000e+00 : f32
      %17 = vector.broadcast %cst_8 : f32 to vector<128x256xf32>
      %c0_9 = arith.constant 0 : index
      %c0_10 = arith.constant 0 : index
      %18 = vector.load %arg13[%c0_9, %c0_10] : memref<128x256xf32, #tpu.memory_space<vmem>>, vector<128x256xf32>
      tpu.vector_store %arg13[%c0_9, %c0_10], %17 {strides = array<i32>} : memref<128x256xf32, #tpu.memory_space<vmem>>, vector<128x256xf32>,
    } else {
    }
    %c4_i32 = arith.constant 4 : i32
    %3 = arith.muli %arg0, %c4_i32 : i32
    %4 = arith.addi %3, %arg1 : i32
    %5 = arith.index_cast %4 : i32 to index
    %6 = memref.load %arg2[%5] : memref<16xi32, #tpu.memory_space<smem>>
    %c0_i32_1 = arith.constant 0 : i32
    %7 = arith.cmpi ne, %6, %c0_i32_1 : i32
    %8 = arith.extui %7 : i1 to i32
    %c0_i32_2 = arith.constant 0 : i32
    %9 = arith.cmpi ne, %8, %c0_i32_2 : i32
    scf.if %9 {
      %c0 = arith.constant 0 : index
      %c0_4 = arith.constant 0 : index
      %13 = vector.load %arg4[%c0, %c0_4] : memref<128x1xf32, #tpu.memory_space<vmem>>, vector<128x1xf32>
      %c0_5 = arith.constant 0 : index
      %c0_6 = arith.constant 0 : index
      %14 = vector.load %arg5[%c0_5, %c0_6] : memref<1x128xf32, #tpu.memory_space<vmem>>, vector<1x128xf32>
      %15 = vector.broadcast %13 : vector<128x1xf32> to vector<128x128xf32>
      %16 = vector.broadcast %14 : vector<1x128xf32> to vector<128x128xf32>
      %17 = arith.addf %15, %16 : vector<128x128xf32>
      %cst = arith.constant 2.000000e-01 : f32
      %18 = vector.broadcast %cst : f32 to vector<128x128xf32>
      %19 = arith.mulf %18, %17 : vector<128x128xf32>
      %20 = arith.maximumf %17, %19 : vector<128x128xf32>
      %c0_7 = arith.constant 0 : index
      %c0_8 = arith.constant 0 : index
      %21 = vector.load %arg3[%c0_7, %c0_8] : memref<128x128xi8, #tpu.memory_space<vmem>>, vector<128x128xi8>
      %c0_i8 = arith.constant 0 : i8
      %22 = vector.broadcast %c0_i8 : i8 to vector<128x128xi8>
      %23 = arith.cmpi ne, %21, %22 : vector<128x128xi8>
      %cst_9 = arith.constant -1.000000e+30 : f32
      %24 = vector.broadcast %cst_9 : f32 to vector<128x128xf32>
      %25 = arith.select %23, %20, %24 : vector<128x128xi1>, vector<128x128xf32>
      %c0_10 = arith.constant 0 : index
      %c0_11 = arith.constant 0 : index
      %26 = vector.load %arg11[%c0_10, %c0_11] : memref<128x1xf32, #tpu.memory_space<vmem>>, vector<128x1xf32>
      %cst_12 = arith.constant dense<0xFF800000> : vector<128xf32>
      %27 = vector.multi_reduction <maximumf>, %25, %cst_12 [1] : vector<128x128xf32> to vector<128xf32>
      %28 = vector.shape_cast %27 : vector<128xf32> to vector<128x1xf32>
      %29 = arith.maximumf %26, %28 : vector<128x1xf32>
      %30 = arith.subf %26, %29 : vector<128x1xf32>
      %31 = math.exp %30 : vector<128x1xf32>
      %32 = vector.broadcast %29 : vector<128x1xf32> to vector<128x128xf32>
      %33 = arith.subf %25, %32 : vector<128x128xf32>
      %34 = math.exp %33 : vector<128x128xf32>
      %c0_13 = arith.constant 0 : index
      %c0_14 = arith.constant 0 : index
      %35 = vector.load %arg12[%c0_13, %c0_14] : memref<128x1xf32, #tpu.memory_space<vmem>>, vector<128x1xf32>
      %36 = arith.mulf %31, %35 : vector<128x1xf32>
      %cst_15 = arith.constant dense<0.000000e+00> : vector<128xf32>
      %37 = vector.multi_reduction <add>, %34, %cst_15 [1] : vector<128x128xf32> to vector<128xf32>
      %38 = vector.shape_cast %37 : vector<128xf32> to vector<128x1xf32>
      %39 = arith.addf %36, %38 : vector<128x1xf32>
      %c0_16 = arith.constant 0 : index
      %c0_17 = arith.constant 0 : index
      %40 = vector.load %arg12[%c0_16, %c0_17] : memref<128x1xf32, #tpu.memory_space<vmem>>, vector<128x1xf32>
      tpu.vector_store %arg12[%c0_16, %c0_17], %39 {strides = array<i32>} : memref<128x1xf32, #tpu.memory_space<vmem>>, vector<128x1xf32>,
      %c0_18 = arith.constant 0 : index
      %c0_19 = arith.constant 0 : index
      %41 = vector.load %arg13[%c0_18, %c0_19] : memref<128x256xf32, #tpu.memory_space<vmem>>, vector<128x256xf32>
      %42 = vector.broadcast %31 : vector<128x1xf32> to vector<128x256xf32>
      %43 = arith.mulf %42, %41 : vector<128x256xf32>
      %44 = arith.truncf %34 : vector<128x128xf32> to vector<128x128xbf16>
      %c0_20 = arith.constant 0 : index
      %c0_21 = arith.constant 0 : index
      %45 = vector.load %arg6[%c0_20, %c0_21] : memref<128x256xbf16, #tpu.memory_space<vmem>>, vector<128x256xbf16>
      %cst_22 = arith.constant dense<0.000000e+00> : vector<128x256xf32>
      %46 = tpu.matmul %44, %45, %cst_22 {dimension_numbers = #tpu.dot_dimension_numbers<[1], [0], [0], [1], [0, 0, 1, 1], [], []>} : vector<128x128xbf16>, vector<128x256xbf16>, vector<128x256xf32> -> vector<128x256xf32>
      %47 = arith.addf %43, %46 : vector<128x256xf32>
      %c0_23 = arith.constant 0 : index
      %c0_24 = arith.constant 0 : index
      %48 = vector.load %arg13[%c0_23, %c0_24] : memref<128x256xf32, #tpu.memory_space<vmem>>, vector<128x256xf32>
      tpu.vector_store %arg13[%c0_23, %c0_24], %47 {strides = array<i32>} : memref<128x256xf32, #tpu.memory_space<vmem>>, vector<128x256xf32>,
      %c0_25 = arith.constant 0 : index
      %c0_26 = arith.constant 0 : index
      %49 = vector.load %arg11[%c0_25, %c0_26] : memref<128x1xf32, #tpu.memory_space<vmem>>, vector<128x1xf32>
      tpu.vector_store %arg11[%c0_25, %c0_26], %29 {strides = array<i32>} : memref<128x1xf32, #tpu.memory_space<vmem>>, vector<128x1xf32>,
    } else {
    }
    %c3_i32 = arith.constant 3 : i32
    %10 = arith.cmpi eq, %arg1, %c3_i32 : i32
    %11 = arith.extui %10 : i1 to i32
    %c0_i32_3 = arith.constant 0 : i32
    %12 = arith.cmpi ne, %11, %c0_i32_3 : i32
    scf.if %12 {
      %c0 = arith.constant 0 : index
      %c0_4 = arith.constant 0 : index
      %13 = vector.load %arg13[%c0, %c0_4] : memref<128x256xf32, #tpu.memory_space<vmem>>, vector<128x256xf32>
      %c0_5 = arith.constant 0 : index
      %c0_6 = arith.constant 0 : index
      %14 = vector.load %arg12[%c0_5, %c0_6] : memref<128x1xf32, #tpu.memory_space<vmem>>, vector<128x1xf32>
      %15 = vector.broadcast %14 : vector<128x1xf32> to vector<128x256xf32>
      %16 = arith.divf %13, %15 : vector<128x256xf32>
      %c0_7 = arith.constant 0 : index
      %c0_8 = arith.constant 0 : index
      %17 = vector.load %arg7[%c0_7, %c0_8] : memref<1x256xf32, #tpu.memory_space<vmem>>, vector<1x256xf32>
      %18 = vector.broadcast %17 : vector<1x256xf32> to vector<128x256xf32>
      %19 = arith.addf %16, %18 : vector<128x256xf32>
      %cst = arith.constant 0.000000e+00 : f32
      %20 = vector.broadcast %cst : f32 to vector<128x256xf32>
      %21 = arith.maximumf %19, %20 : vector<128x256xf32>
      %22 = arith.truncf %21 : vector<128x256xf32> to vector<128x256xbf16>
      %c0_9 = arith.constant 0 : index
      %c0_10 = arith.constant 0 : index
      %23 = vector.load %arg8[%c0_9, %c0_10] : memref<256x384xbf16, #tpu.memory_space<vmem>>, vector<256x384xbf16>
      %cst_11 = arith.constant dense<0.000000e+00> : vector<128x384xf32>
      %24 = tpu.matmul %22, %23, %cst_11 {dimension_numbers = #tpu.dot_dimension_numbers<[1], [0], [0], [1], [0, 0, 1, 1], [], []>} : vector<128x256xbf16>, vector<256x384xbf16>, vector<128x384xf32> -> vector<128x384xf32>
      %25 = vector.extract_strided_slice %24 {offsets = [0, 0], sizes = [128, 256], strides = [1, 1]} : vector<128x384xf32> to vector<128x256xf32>
      %26 = arith.truncf %25 : vector<128x256xf32> to vector<128x256xbf16>
      %c0_12 = arith.constant 0 : index
      %c0_13 = arith.constant 0 : index
      %27 = vector.load %arg9[%c0_12, %c0_13] : memref<128x256xbf16, #tpu.memory_space<vmem>>, vector<128x256xbf16>
      tpu.vector_store %arg9[%c0_12, %c0_13], %26 {strides = array<i32>} : memref<128x256xbf16, #tpu.memory_space<vmem>>, vector<128x256xbf16>,
      %28 = vector.extract_strided_slice %24 {offsets = [0, 256], sizes = [128, 128], strides = [1, 1]} : vector<128x384xf32> to vector<128x128xf32>
      %c0_14 = arith.constant 0 : index
      %c0_15 = arith.constant 0 : index
      %29 = vector.load %arg10[%c0_14, %c0_15] : memref<128x128xf32, #tpu.memory_space<vmem>>, vector<128x128xf32>
      tpu.vector_store %arg10[%c0_14, %c0_15], %28 {strides = array<i32>} : memref<128x128xf32, #tpu.memory_space<vmem>>, vector<128x128xf32>,
    } else {
    }
    return
  }
  func.func @transform_0(%arg0: i32, %arg1: i32, %arg2: memref<16xi32, #tpu.memory_space<smem>>) -> (i32, i32) {
    %c0_i32 = arith.constant 0 : i32
    return %arg0, %arg1 : i32, i32
  }
  func.func @transform_1(%arg0: i32, %arg1: i32, %arg2: memref<16xi32, #tpu.memory_space<smem>>) -> (i32, i32) {
    %c0_i32 = arith.constant 0 : i32
    %c0_i32_0 = arith.constant 0 : i32
    return %arg0, %c0_i32 : i32, i32
  }
  func.func @transform_2(%arg0: i32, %arg1: i32, %arg2: memref<16xi32, #tpu.memory_space<smem>>) -> (i32, i32) {
    %c0_i32 = arith.constant 0 : i32
    %c0_i32_0 = arith.constant 0 : i32
    return %c0_i32, %arg1 : i32, i32
  }
  func.func @transform_3(%arg0: i32, %arg1: i32, %arg2: memref<16xi32, #tpu.memory_space<smem>>) -> (i32, i32) {
    %c0_i32 = arith.constant 0 : i32
    %c0_i32_0 = arith.constant 0 : i32
    return %arg1, %c0_i32 : i32, i32
  }
  func.func @transform_4(%arg0: i32, %arg1: i32, %arg2: memref<16xi32, #tpu.memory_space<smem>>) -> (i32, i32) {
    %c0_i32 = arith.constant 0 : i32
    %c0_i32_0 = arith.constant 0 : i32
    %c0_i32_1 = arith.constant 0 : i32
    return %c0_i32, %c0_i32_0 : i32, i32
  }
  func.func @transform_5(%arg0: i32, %arg1: i32, %arg2: memref<16xi32, #tpu.memory_space<smem>>) -> (i32, i32) {
    %c0_i32 = arith.constant 0 : i32
    %c0_i32_0 = arith.constant 0 : i32
    %c0_i32_1 = arith.constant 0 : i32
    return %c0_i32, %c0_i32_0 : i32, i32
  }
  func.func @transform_6(%arg0: i32, %arg1: i32, %arg2: memref<16xi32, #tpu.memory_space<smem>>) -> (i32, i32) {
    %c0_i32 = arith.constant 0 : i32
    %c0_i32_0 = arith.constant 0 : i32
    return %arg0, %c0_i32 : i32, i32
  }
  func.func @transform_7(%arg0: i32, %arg1: i32, %arg2: memref<16xi32, #tpu.memory_space<smem>>) -> (i32, i32) {
    %c0_i32 = arith.constant 0 : i32
    %c0_i32_0 = arith.constant 0 : i32
    return %arg0, %c0_i32 : i32, i32
  }
}

module attributes {stable_mosaic.version = 11 : i64} {
  func.func @_attn2_kernel(%arg0: i32, %arg1: i32, %arg2: memref<16xi32, #tpu.memory_space<smem>>, %arg3: memref<128x128xi8, #tpu.memory_space<vmem>>, %arg4: memref<128x1xf32, #tpu.memory_space<vmem>>, %arg5: memref<1x128xf32, #tpu.memory_space<vmem>>, %arg6: memref<128x256xbf16, #tpu.memory_space<vmem>>, %arg7: memref<1x256xf32, #tpu.memory_space<vmem>>, %arg8: memref<256x128xbf16, #tpu.memory_space<vmem>>, %arg9: memref<1x128xf32, #tpu.memory_space<vmem>>, %arg10: memref<128x128xf32, #tpu.memory_space<vmem>>, %arg11: memref<128x1xf32, #tpu.memory_space<vmem>>, %arg12: memref<128x1xf32, #tpu.memory_space<vmem>>, %arg13: memref<128x256xf32, #tpu.memory_space<vmem>>) attributes {dimension_semantics = [#tpu.dimension_semantics<parallel>, #tpu.dimension_semantics<arbitrary>], iteration_bounds = array<i64: 4, 4>, scalar_prefetch = 1 : i64, scratch_operands = 3 : i64, tpu.core_type = #tpu.core_type<tc>, window_params = [{transform_indices = @transform_0, window_bounds = array<i64: 128, 128>}, {transform_indices = @transform_1, window_bounds = array<i64: 128, 1>}, {transform_indices = @transform_2, window_bounds = array<i64: 1, 128>}, {transform_indices = @transform_3, window_bounds = array<i64: 128, 256>}, {pipeline_mode = #tpu.pipeline_mode<synchronous>, transform_indices = @transform_4, window_bounds = array<i64: 1, 256>}, {pipeline_mode = #tpu.pipeline_mode<synchronous>, transform_indices = @transform_5, window_bounds = array<i64: 256, 128>}, {pipeline_mode = #tpu.pipeline_mode<synchronous>, transform_indices = @transform_6, window_bounds = array<i64: 1, 128>}, {transform_indices = @transform_7, window_bounds = array<i64: 128, 128>}]} {
    %c0_i32 = arith.constant 0 : i32
    %0 = arith.cmpi eq, %arg1, %c0_i32 : i32
    %1 = arith.extui %0 : i1 to i32
    %c0_i32_0 = arith.constant 0 : i32
    %2 = arith.cmpi ne, %1, %c0_i32_0 : i32
    scf.if %2 {
      %cst = arith.constant -1.000000e+30 : f32
      %13 = vector.broadcast %cst : f32 to vector<128x1xf32>
      %c0 = arith.constant 0 : index
      %c0_4 = arith.constant 0 : index
      %14 = vector.load %arg11[%c0, %c0_4] : memref<128x1xf32, #tpu.memory_space<vmem>>, vector<128x1xf32>
      tpu.vector_store %arg11[%c0, %c0_4], %13 {strides = array<i32>} : memref<128x1xf32, #tpu.memory_space<vmem>>, vector<128x1xf32>,
      %cst_5 = arith.constant 0.000000e+00 : f32
      %15 = vector.broadcast %cst_5 : f32 to vector<128x1xf32>
      %c0_6 = arith.constant 0 : index
      %c0_7 = arith.constant 0 : index
      %16 = vector.load %arg12[%c0_6, %c0_7] : memref<128x1xf32, #tpu.memory_space<vmem>>, vector<128x1xf32>
      tpu.vector_store %arg12[%c0_6, %c0_7], %15 {strides = array<i32>} : memref<128x1xf32, #tpu.memory_space<vmem>>, vector<128x1xf32>,
      %cst_8 = arith.constant 0.000000e+00 : f32
      %17 = vector.broadcast %cst_8 : f32 to vector<128x256xf32>
      %c0_9 = arith.constant 0 : index
      %c0_10 = arith.constant 0 : index
      %18 = vector.load %arg13[%c0_9, %c0_10] : memref<128x256xf32, #tpu.memory_space<vmem>>, vector<128x256xf32>
      tpu.vector_store %arg13[%c0_9, %c0_10], %17 {strides = array<i32>} : memref<128x256xf32, #tpu.memory_space<vmem>>, vector<128x256xf32>,
    } else {
    }
    %c4_i32 = arith.constant 4 : i32
    %3 = arith.muli %arg0, %c4_i32 : i32
    %4 = arith.addi %3, %arg1 : i32
    %5 = arith.index_cast %4 : i32 to index
    %6 = memref.load %arg2[%5] : memref<16xi32, #tpu.memory_space<smem>>
    %c0_i32_1 = arith.constant 0 : i32
    %7 = arith.cmpi ne, %6, %c0_i32_1 : i32
    %8 = arith.extui %7 : i1 to i32
    %c0_i32_2 = arith.constant 0 : i32
    %9 = arith.cmpi ne, %8, %c0_i32_2 : i32
    scf.if %9 {
      %c0 = arith.constant 0 : index
      %c0_4 = arith.constant 0 : index
      %13 = vector.load %arg4[%c0, %c0_4] : memref<128x1xf32, #tpu.memory_space<vmem>>, vector<128x1xf32>
      %c0_5 = arith.constant 0 : index
      %c0_6 = arith.constant 0 : index
      %14 = vector.load %arg5[%c0_5, %c0_6] : memref<1x128xf32, #tpu.memory_space<vmem>>, vector<1x128xf32>
      %15 = vector.broadcast %13 : vector<128x1xf32> to vector<128x128xf32>
      %16 = vector.broadcast %14 : vector<1x128xf32> to vector<128x128xf32>
      %17 = arith.addf %15, %16 : vector<128x128xf32>
      %cst = arith.constant 2.000000e-01 : f32
      %18 = vector.broadcast %cst : f32 to vector<128x128xf32>
      %19 = arith.mulf %18, %17 : vector<128x128xf32>
      %20 = arith.maximumf %17, %19 : vector<128x128xf32>
      %c0_7 = arith.constant 0 : index
      %c0_8 = arith.constant 0 : index
      %21 = vector.load %arg3[%c0_7, %c0_8] : memref<128x128xi8, #tpu.memory_space<vmem>>, vector<128x128xi8>
      %c0_i8 = arith.constant 0 : i8
      %22 = vector.broadcast %c0_i8 : i8 to vector<128x128xi8>
      %23 = arith.cmpi ne, %21, %22 : vector<128x128xi8>
      %cst_9 = arith.constant -1.000000e+30 : f32
      %24 = vector.broadcast %cst_9 : f32 to vector<128x128xf32>
      %25 = arith.select %23, %20, %24 : vector<128x128xi1>, vector<128x128xf32>
      %c0_10 = arith.constant 0 : index
      %c0_11 = arith.constant 0 : index
      %26 = vector.load %arg11[%c0_10, %c0_11] : memref<128x1xf32, #tpu.memory_space<vmem>>, vector<128x1xf32>
      %cst_12 = arith.constant dense<0xFF800000> : vector<128xf32>
      %27 = vector.multi_reduction <maximumf>, %25, %cst_12 [1] : vector<128x128xf32> to vector<128xf32>
      %28 = vector.shape_cast %27 : vector<128xf32> to vector<128x1xf32>
      %29 = arith.maximumf %26, %28 : vector<128x1xf32>
      %30 = arith.subf %26, %29 : vector<128x1xf32>
      %31 = math.exp %30 : vector<128x1xf32>
      %32 = vector.broadcast %29 : vector<128x1xf32> to vector<128x128xf32>
      %33 = arith.subf %25, %32 : vector<128x128xf32>
      %34 = math.exp %33 : vector<128x128xf32>
      %c0_13 = arith.constant 0 : index
      %c0_14 = arith.constant 0 : index
      %35 = vector.load %arg12[%c0_13, %c0_14] : memref<128x1xf32, #tpu.memory_space<vmem>>, vector<128x1xf32>
      %36 = arith.mulf %31, %35 : vector<128x1xf32>
      %cst_15 = arith.constant dense<0.000000e+00> : vector<128xf32>
      %37 = vector.multi_reduction <add>, %34, %cst_15 [1] : vector<128x128xf32> to vector<128xf32>
      %38 = vector.shape_cast %37 : vector<128xf32> to vector<128x1xf32>
      %39 = arith.addf %36, %38 : vector<128x1xf32>
      %c0_16 = arith.constant 0 : index
      %c0_17 = arith.constant 0 : index
      %40 = vector.load %arg12[%c0_16, %c0_17] : memref<128x1xf32, #tpu.memory_space<vmem>>, vector<128x1xf32>
      tpu.vector_store %arg12[%c0_16, %c0_17], %39 {strides = array<i32>} : memref<128x1xf32, #tpu.memory_space<vmem>>, vector<128x1xf32>,
      %c0_18 = arith.constant 0 : index
      %c0_19 = arith.constant 0 : index
      %41 = vector.load %arg13[%c0_18, %c0_19] : memref<128x256xf32, #tpu.memory_space<vmem>>, vector<128x256xf32>
      %42 = vector.broadcast %31 : vector<128x1xf32> to vector<128x256xf32>
      %43 = arith.mulf %42, %41 : vector<128x256xf32>
      %44 = arith.truncf %34 : vector<128x128xf32> to vector<128x128xbf16>
      %c0_20 = arith.constant 0 : index
      %c0_21 = arith.constant 0 : index
      %45 = vector.load %arg6[%c0_20, %c0_21] : memref<128x256xbf16, #tpu.memory_space<vmem>>, vector<128x256xbf16>
      %cst_22 = arith.constant dense<0.000000e+00> : vector<128x256xf32>
      %46 = tpu.matmul %44, %45, %cst_22 {dimension_numbers = #tpu.dot_dimension_numbers<[1], [0], [0], [1], [0, 0, 1, 1], [], []>} : vector<128x128xbf16>, vector<128x256xbf16>, vector<128x256xf32> -> vector<128x256xf32>
      %47 = arith.addf %43, %46 : vector<128x256xf32>
      %c0_23 = arith.constant 0 : index
      %c0_24 = arith.constant 0 : index
      %48 = vector.load %arg13[%c0_23, %c0_24] : memref<128x256xf32, #tpu.memory_space<vmem>>, vector<128x256xf32>
      tpu.vector_store %arg13[%c0_23, %c0_24], %47 {strides = array<i32>} : memref<128x256xf32, #tpu.memory_space<vmem>>, vector<128x256xf32>,
      %c0_25 = arith.constant 0 : index
      %c0_26 = arith.constant 0 : index
      %49 = vector.load %arg11[%c0_25, %c0_26] : memref<128x1xf32, #tpu.memory_space<vmem>>, vector<128x1xf32>
      tpu.vector_store %arg11[%c0_25, %c0_26], %29 {strides = array<i32>} : memref<128x1xf32, #tpu.memory_space<vmem>>, vector<128x1xf32>,
    } else {
    }
    %c3_i32 = arith.constant 3 : i32
    %10 = arith.cmpi eq, %arg1, %c3_i32 : i32
    %11 = arith.extui %10 : i1 to i32
    %c0_i32_3 = arith.constant 0 : i32
    %12 = arith.cmpi ne, %11, %c0_i32_3 : i32
    scf.if %12 {
      %c0 = arith.constant 0 : index
      %c0_4 = arith.constant 0 : index
      %13 = vector.load %arg13[%c0, %c0_4] : memref<128x256xf32, #tpu.memory_space<vmem>>, vector<128x256xf32>
      %c0_5 = arith.constant 0 : index
      %c0_6 = arith.constant 0 : index
      %14 = vector.load %arg12[%c0_5, %c0_6] : memref<128x1xf32, #tpu.memory_space<vmem>>, vector<128x1xf32>
      %15 = vector.broadcast %14 : vector<128x1xf32> to vector<128x256xf32>
      %16 = arith.divf %13, %15 : vector<128x256xf32>
      %c0_7 = arith.constant 0 : index
      %c0_8 = arith.constant 0 : index
      %17 = vector.load %arg7[%c0_7, %c0_8] : memref<1x256xf32, #tpu.memory_space<vmem>>, vector<1x256xf32>
      %18 = vector.broadcast %17 : vector<1x256xf32> to vector<128x256xf32>
      %19 = arith.addf %16, %18 : vector<128x256xf32>
      %cst = arith.constant 0.000000e+00 : f32
      %20 = vector.broadcast %cst : f32 to vector<128x256xf32>
      %21 = arith.maximumf %19, %20 : vector<128x256xf32>
      %22 = arith.truncf %21 : vector<128x256xf32> to vector<128x256xbf16>
      %c0_9 = arith.constant 0 : index
      %c0_10 = arith.constant 0 : index
      %23 = vector.load %arg8[%c0_9, %c0_10] : memref<256x128xbf16, #tpu.memory_space<vmem>>, vector<256x128xbf16>
      %cst_11 = arith.constant dense<0.000000e+00> : vector<128x128xf32>
      %24 = tpu.matmul %22, %23, %cst_11 {dimension_numbers = #tpu.dot_dimension_numbers<[1], [0], [0], [1], [0, 0, 1, 1], [], []>} : vector<128x256xbf16>, vector<256x128xbf16>, vector<128x128xf32> -> vector<128x128xf32>
      %c0_12 = arith.constant 0 : index
      %c0_13 = arith.constant 0 : index
      %25 = vector.load %arg9[%c0_12, %c0_13] : memref<1x128xf32, #tpu.memory_space<vmem>>, vector<1x128xf32>
      %26 = vector.broadcast %25 : vector<1x128xf32> to vector<128x128xf32>
      %27 = arith.addf %24, %26 : vector<128x128xf32>
      %cst_14 = arith.constant dense<0xFF800000> : vector<128xf32>
      %28 = vector.multi_reduction <maximumf>, %27, %cst_14 [1] : vector<128x128xf32> to vector<128xf32>
      %29 = vector.shape_cast %28 : vector<128xf32> to vector<128x1xf32>
      %30 = vector.broadcast %29 : vector<128x1xf32> to vector<128x128xf32>
      %31 = arith.subf %27, %30 : vector<128x128xf32>
      %32 = math.exp %31 : vector<128x128xf32>
      %cst_15 = arith.constant dense<0.000000e+00> : vector<128xf32>
      %33 = vector.multi_reduction <add>, %32, %cst_15 [1] : vector<128x128xf32> to vector<128xf32>
      %34 = vector.shape_cast %33 : vector<128xf32> to vector<128x1xf32>
      %35 = vector.broadcast %34 : vector<128x1xf32> to vector<128x128xf32>
      %36 = arith.divf %32, %35 : vector<128x128xf32>
      %c0_16 = arith.constant 0 : index
      %c0_17 = arith.constant 0 : index
      %37 = vector.load %arg10[%c0_16, %c0_17] : memref<128x128xf32, #tpu.memory_space<vmem>>, vector<128x128xf32>
      tpu.vector_store %arg10[%c0_16, %c0_17], %36 {strides = array<i32>} : memref<128x128xf32, #tpu.memory_space<vmem>>, vector<128x128xf32>,
    } else {
    }
    return
  }
  func.func @transform_0(%arg0: i32, %arg1: i32, %arg2: memref<16xi32, #tpu.memory_space<smem>>) -> (i32, i32) {
    %c0_i32 = arith.constant 0 : i32
    return %arg0, %arg1 : i32, i32
  }
  func.func @transform_1(%arg0: i32, %arg1: i32, %arg2: memref<16xi32, #tpu.memory_space<smem>>) -> (i32, i32) {
    %c0_i32 = arith.constant 0 : i32
    %c0_i32_0 = arith.constant 0 : i32
    return %arg0, %c0_i32 : i32, i32
  }
  func.func @transform_2(%arg0: i32, %arg1: i32, %arg2: memref<16xi32, #tpu.memory_space<smem>>) -> (i32, i32) {
    %c0_i32 = arith.constant 0 : i32
    %c0_i32_0 = arith.constant 0 : i32
    return %c0_i32, %arg1 : i32, i32
  }
  func.func @transform_3(%arg0: i32, %arg1: i32, %arg2: memref<16xi32, #tpu.memory_space<smem>>) -> (i32, i32) {
    %c0_i32 = arith.constant 0 : i32
    %c0_i32_0 = arith.constant 0 : i32
    return %arg1, %c0_i32 : i32, i32
  }
  func.func @transform_4(%arg0: i32, %arg1: i32, %arg2: memref<16xi32, #tpu.memory_space<smem>>) -> (i32, i32) {
    %c0_i32 = arith.constant 0 : i32
    %c0_i32_0 = arith.constant 0 : i32
    %c0_i32_1 = arith.constant 0 : i32
    return %c0_i32, %c0_i32_0 : i32, i32
  }
  func.func @transform_5(%arg0: i32, %arg1: i32, %arg2: memref<16xi32, #tpu.memory_space<smem>>) -> (i32, i32) {
    %c0_i32 = arith.constant 0 : i32
    %c0_i32_0 = arith.constant 0 : i32
    %c0_i32_1 = arith.constant 0 : i32
    return %c0_i32, %c0_i32_0 : i32, i32
  }
  func.func @transform_6(%arg0: i32, %arg1: i32, %arg2: memref<16xi32, #tpu.memory_space<smem>>) -> (i32, i32) {
    %c0_i32 = arith.constant 0 : i32
    %c0_i32_0 = arith.constant 0 : i32
    %c0_i32_1 = arith.constant 0 : i32
    return %c0_i32, %c0_i32_0 : i32, i32
  }
  func.func @transform_7(%arg0: i32, %arg1: i32, %arg2: memref<16xi32, #tpu.memory_space<smem>>) -> (i32, i32) {
    %c0_i32 = arith.constant 0 : i32
    %c0_i32_0 = arith.constant 0 : i32
    return %arg0, %c0_i32 : i32, i32
  }
}

module attributes {stable_mosaic.version = 11 : i64} {
  func.func @_proj_kernel(%arg0: i32, %arg1: memref<128x128xbf16, #tpu.memory_space<vmem>>, %arg2: memref<128x384xbf16, #tpu.memory_space<vmem>>, %arg3: memref<128x256xbf16, #tpu.memory_space<vmem>>, %arg4: memref<128x128xf32, #tpu.memory_space<vmem>>) attributes {dimension_semantics = [#tpu.dimension_semantics<parallel>], iteration_bounds = array<i64: 4>, scalar_prefetch = 0 : i64, scratch_operands = 0 : i64, tpu.core_type = #tpu.core_type<tc>, window_params = [{transform_indices = @transform_0, window_bounds = array<i64: 128, 128>}, {pipeline_mode = #tpu.pipeline_mode<synchronous>, transform_indices = @transform_1, window_bounds = array<i64: 128, 384>}, {transform_indices = @transform_2, window_bounds = array<i64: 128, 256>}, {transform_indices = @transform_3, window_bounds = array<i64: 128, 128>}]} {
    %c0 = arith.constant 0 : index
    %c0_0 = arith.constant 0 : index
    %0 = vector.load %arg1[%c0, %c0_0] : memref<128x128xbf16, #tpu.memory_space<vmem>>, vector<128x128xbf16>
    %c0_1 = arith.constant 0 : index
    %c0_2 = arith.constant 0 : index
    %1 = vector.load %arg2[%c0_1, %c0_2] : memref<128x384xbf16, #tpu.memory_space<vmem>>, vector<128x384xbf16>
    %cst = arith.constant dense<0.000000e+00> : vector<128x384xf32>
    %2 = tpu.matmul %0, %1, %cst {dimension_numbers = #tpu.dot_dimension_numbers<[1], [0], [0], [1], [0, 0, 1, 1], [], []>} : vector<128x128xbf16>, vector<128x384xbf16>, vector<128x384xf32> -> vector<128x384xf32>
    %3 = vector.extract_strided_slice %2 {offsets = [0, 0], sizes = [128, 256], strides = [1, 1]} : vector<128x384xf32> to vector<128x256xf32>
    %4 = arith.truncf %3 : vector<128x256xf32> to vector<128x256xbf16>
    %c0_3 = arith.constant 0 : index
    %c0_4 = arith.constant 0 : index
    %5 = vector.load %arg3[%c0_3, %c0_4] : memref<128x256xbf16, #tpu.memory_space<vmem>>, vector<128x256xbf16>
    tpu.vector_store %arg3[%c0_3, %c0_4], %4 {strides = array<i32>} : memref<128x256xbf16, #tpu.memory_space<vmem>>, vector<128x256xbf16>,
    %6 = vector.extract_strided_slice %2 {offsets = [0, 256], sizes = [128, 128], strides = [1, 1]} : vector<128x384xf32> to vector<128x128xf32>
    %c0_5 = arith.constant 0 : index
    %c0_6 = arith.constant 0 : index
    %7 = vector.load %arg4[%c0_5, %c0_6] : memref<128x128xf32, #tpu.memory_space<vmem>>, vector<128x128xf32>
    tpu.vector_store %arg4[%c0_5, %c0_6], %6 {strides = array<i32>} : memref<128x128xf32, #tpu.memory_space<vmem>>, vector<128x128xf32>,
    return
  }
  func.func @transform_0(%arg0: i32) -> (i32, i32) {
    %c0_i32 = arith.constant 0 : i32
    %c0_i32_0 = arith.constant 0 : i32
    return %arg0, %c0_i32 : i32, i32
  }
  func.func @transform_1(%arg0: i32) -> (i32, i32) {
    %c0_i32 = arith.constant 0 : i32
    %c0_i32_0 = arith.constant 0 : i32
    %c0_i32_1 = arith.constant 0 : i32
    return %c0_i32, %c0_i32_0 : i32, i32
  }
  func.func @transform_2(%arg0: i32) -> (i32, i32) {
    %c0_i32 = arith.constant 0 : i32
    %c0_i32_0 = arith.constant 0 : i32
    return %arg0, %c0_i32 : i32, i32
  }
  func.func @transform_3(%arg0: i32) -> (i32, i32) {
    %c0_i32 = arith.constant 0 : i32
    %c0_i32_0 = arith.constant 0 : i32
    return %arg0, %c0_i32 : i32, i32
  }
}

</mosaic_0001>

<llo_original>
// kernel: gat_forward.3
$region0: #{gat_forward.3}
  #allocation0 [shape = 'u32[]', space=smem, size = 0x4, offset = 0x4, fixed_abs, tag = 'smem constant byte address 0x4 - core index']
  #allocation1 [shape = 'u32[144,128]{1,0:T(1,128)}', space=vmem, size = 0x12000, scoped, tag = 'internal scratch']
  %s0 = inlined_call_operand.hbm [shape: bf16[512,128], index: 0, kind: input, shape index: {}]
  %s1 = inlined_call_operand.hbm [shape: bf16[128,384], index: 1, kind: input, shape index: {}]
  %s2 = inlined_call_operand.vmem [shape: bf16[512,256], index: 2, kind: output, shape index: {0}]
  %s3 = inlined_call_operand.vmem [shape: f32[512,128], index: 3, kind: output, shape index: {1}]
  %4 = xla_tuple %s2, %s3
  %s5 = sld [smem:[#allocation0]]
  $region57: #{gat_forward.3} parent=0
    _
  %s7 = ssub.s32 1, %s5
  %s8 = scalar_select 0, %s7, %s5
  $region1: #{gat_forward.3} parent=0
    #allocation2 [shape = 'u8[65536]{0}', space=vmem, size = 0x10000, scoped, tag = 'input window, operand 0']
    #allocation3 [shape = 's32[2]{0}', space=sflag, size = 0x8, scoped, tag = 'scoped memory for gat_forward.3']
    #allocation4 [shape = 'u8[98304]{0}', space=vmem, size = 0x18000, scoped, tag = 'input window, operand 1, single buffered']
    #allocation5 [shape = 's32[1]{0}', space=sflag, size = 0x4, scoped, tag = 'scoped memory for gat_forward.3']
    %9 = vsyncpa [#allocation3], 0
    %s10 = scalar_lea.sflag [#allocation3], 1
    %11 = vsyncpa %s10, 0
    %12 = vsyncpa [#allocation5], 0
    loop: start=0, step=1, limit=6
    $region2: #{gat_forward.3} parent=1 // loop_pre_header
      _
    $region3: #{gat_forward.3} parent=1 // loop_header
      %s14 = sphi 0, %s18
      %p15 = scmp.ge.s32.totalorder %s14, 6
      %s24 = sphi 0, %s26
      %s27 = sphi 0, %s24
      %s28 = sphi 0, %s27
      %s44 = sphi 0, %s28
      %s48 = sphi 0, %s48
      %s50 = sphi 0, %s48
      %s51 = sphi 0, %s50
      %s65 = sphi 0, %s51
      %s71 = sphi 0, %s73
      %s74 = sphi 0, %s71
      %s75 = sphi 0, %s74
      %s91 = sphi 0, %s75
      %s97 = sphi 0, %s99
      %s100 = sphi 0, %s97
      %s101 = sphi 0, %s100
      %s117 = sphi 0, %s101
    $region4: #{gat_forward.3} parent=1 // loop_header_branch
      %17 = sbr.rel (%p15) target = $region8
    $region5: #{gat_forward.3} parent=1 // loop_body
      %s19 = ssub.s32 %s14, 1
      %s20 = ssub.s32 %s14, 2
      %s21 = sadd.s32 %s14, 1
      %s22 = ssub.s32 %s14, %s21
      %p23 = scmp.eq.s32.totalorder %s22, 0
      %s25 = sadd.s32 %s24, 1
      %s26 = scalar_select %p23, %s24, %s25
      %p29 = pneg %p23
      %p30 = scmp.eq.s32.totalorder %s14, 3
      %p31 = por %p29, %p30
      %p32 = scmp.ne.s32.totalorder %s24, %s27
      %p33 = scmp.eq.s32.totalorder %s14, 0
      %p34 = por %p32, %p33
      %p35 = scmp.ne.s32.totalorder %s24, %s27
      %p36 = scmp.eq.s32.totalorder %s19, 3
      %p37 = por %p35, %p36
      %p38 = scmp.ne.s32.totalorder %s27, %s28
      %p39 = scmp.eq.s32.totalorder %s19, 0
      %p40 = por %p38, %p39
      %p41 = scmp.ne.s32.totalorder %s27, %s28
      %p42 = scmp.eq.s32.totalorder %s20, 3
      %p43 = por %p41, %p42
      %p45 = scmp.ne.s32.totalorder %s28, %s44
      %p46 = scmp.eq.s32.totalorder %s20, 0
      %p47 = por %p45, %p46
      %s49 = sadd.s32 %s48, 1
      %p52 = scmp.eq.s32.totalorder %s14, 3
      %p53 = scmp.ne.s32.totalorder %s48, %s50
      %p54 = scmp.eq.s32.totalorder %s14, 0
      %p55 = por %p53, %p54
      %p56 = scmp.ne.s32.totalorder %s48, %s50
      %p57 = scmp.eq.s32.totalorder %s19, 3
      %p58 = por %p56, %p57
      %p59 = scmp.ne.s32.totalorder %s50, %s51
      %p60 = scmp.eq.s32.totalorder %s19, 0
      %p61 = por %p59, %p60
      %p62 = scmp.ne.s32.totalorder %s50, %s51
      %p63 = scmp.eq.s32.totalorder %s20, 3
      %p64 = por %p62, %p63
      %p66 = scmp.ne.s32.totalorder %s51, %s65
      %p67 = scmp.eq.s32.totalorder %s20, 0
      %p68 = por %p66, %p67
      %s69 = ssub.s32 %s14, %s21
      %p70 = scmp.eq.s32.totalorder %s69, 0
      %s72 = sadd.s32 %s71, 1
      %s73 = scalar_select %p70, %s71, %s72
      %p76 = pneg %p70
      %p77 = scmp.eq.s32.totalorder %s14, 3
      %p78 = por %p76, %p77
      %p79 = scmp.ne.s32.totalorder %s71, %s74
      %p80 = scmp.eq.s32.totalorder %s14, 0
      %p81 = por %p79, %p80
      %p82 = scmp.ne.s32.totalorder %s71, %s74
      %p83 = scmp.eq.s32.totalorder %s19, 3
      %p84 = por %p82, %p83
      %p85 = scmp.ne.s32.totalorder %s74, %s75
      %p86 = scmp.eq.s32.totalorder %s19, 0
      %p87 = por %p85, %p86
      %p88 = scmp.ne.s32.totalorder %s74, %s75
      %p89 = scmp.eq.s32.totalorder %s20, 3
      %p90 = por %p88, %p89
      %p92 = scmp.ne.s32.totalorder %s75, %s91
      %p93 = scmp.eq.s32.totalorder %s20, 0
      %p94 = por %p92, %p93
      %s95 = ssub.s32 %s14, %s21
      %p96 = scmp.eq.s32.totalorder %s95, 0
      %s98 = sadd.s32 %s97, 1
      %s99 = scalar_select %p96, %s97, %s98
      %p102 = pneg %p96
      %p103 = scmp.eq.s32.totalorder %s14, 3
      %p104 = por %p102, %p103
      %p105 = scmp.ne.s32.totalorder %s97, %s100
      %p106 = scmp.eq.s32.totalorder %s14, 0
      %p107 = por %p105, %p106
      %p108 = scmp.ne.s32.totalorder %s97, %s100
      %p109 = scmp.eq.s32.totalorder %s19, 3
      %p110 = por %p108, %p109
      %p111 = scmp.ne.s32.totalorder %s100, %s101
      %p112 = scmp.eq.s32.totalorder %s19, 0
      %p113 = por %p111, %p112
      %p114 = scmp.ne.s32.totalorder %s100, %s101
      %p115 = scmp.eq.s32.totalorder %s20, 3
      %p116 = por %p114, %p115
      %p118 = scmp.ne.s32.totalorder %s101, %s117
      %p119 = scmp.eq.s32.totalorder %s20, 0
      %p120 = por %p118, %p119
      %p121 = scmp.le.s32.totalorder 1, %s14
      %p122 = scmp.lt.s32.totalorder %s14, 5
      %p123 = pnand %p121, %p122
      %p124 = pneg %p123
      // Predicated region
      $region9: #{gat_forward.3} parent=5 // pred_check
        _
      $region10: #{gat_forward.3} parent=5 // pred_check_branch
        %126 = sbr.rel (%p123) target = $region12
      $region11: #{gat_forward.3} parent=5 // pred_region
        %s127 = ssub.s32 %s14, 1
        // Predicated region
        $region13: #{gat_forward.3} parent=11 // pred_check
          %p128 = pneg %p61
        $region14: #{gat_forward.3} parent=11 // pred_check_branch
          %130 = sbr.rel (%p128) target = $region16
        $region15: #{gat_forward.3} parent=11 // pred_region
          %s132 = ssub.s32 3072, 3072
          %133 = vsyncadd [#allocation5], %s132
          %s134 = sshll.u32 [#allocation4], 4
          %s135 = int_to_ptr.vmem [resolvable:$true] %s134
          %140 = dma.hbm_to_vmem [thread:$0]  %s1, 3072, %s135, [#allocation5], 192, 192, 12
        $region16: #{gat_forward.3} parent=11 // pred_fallthru
          _
      $region12: #{gat_forward.3} parent=5 // pred_fallthru
        _
      %p141 = scmp.lt.s32.totalorder %s14, 4
      // Predicated region
      $region17: #{gat_forward.3} parent=5 // pred_check
        %p142 = pneg %p141
      $region18: #{gat_forward.3} parent=5 // pred_check_branch
        %144 = sbr.rel (%p142) target = $region20
      $region19: #{gat_forward.3} parent=5 // pred_region
        // Predicated region
        $region21: #{gat_forward.3} parent=19 // pred_check
          %p145 = pneg %p34
        $region22: #{gat_forward.3} parent=19 // pred_check_branch
          %147 = sbr.rel (%p145) target = $region24
        $region23: #{gat_forward.3} parent=19 // pred_region
          %s148 = sand.u32 %s24, 1
          %s149 = scalar_lea.sflag [#allocation3], %s148
          %s150 = sand.u32 %s24, 1
          %s151 = smul.addr %s150, 64
          %s152 = scalar_lea.vmem [#allocation2], %s151
          %s153 = smul.u32 16, %s14
          %s155 = ssub.s32 1024, 1024
          %156 = vsyncadd %s149, %s155
          %s157 = smul.addr %s153, 64
          %s158 = scalar_lea.hbm %s0, %s157
          %s159 = sshll.u32 %s152, 4
          %s160 = int_to_ptr.vmem [resolvable:$true] %s159
          %165 = dma.hbm_to_vmem [thread:$0]  %s158, 1024, %s160, %s149, 64, 64, 4
        $region24: #{gat_forward.3} parent=19 // pred_fallthru
          _
      $region20: #{gat_forward.3} parent=5 // pred_fallthru
        _
      %p166 = scmp.le.s32.totalorder 1, %s14
      %p167 = scmp.lt.s32.totalorder %s14, 5
      %p168 = pnand %p166, %p167
      %p169 = pneg %p168
      // Predicated region
      $region25: #{gat_forward.3} parent=5 // pred_check
        _
      $region26: #{gat_forward.3} parent=5 // pred_check_branch
        %171 = sbr.rel (%p168) target = $region28
      $region27: #{gat_forward.3} parent=5 // pred_region
        %s172 = ssub.s32 %s14, 1
        %s173 = sand.u32 %s27, 1
        %s174 = scalar_lea.sflag [#allocation3], %s173
        %s175 = sand.u32 %s27, 1
        %s176 = smul.addr %s175, 64
        %s177 = scalar_lea.vmem [#allocation2], %s176
        // Predicated region
        $region29: #{gat_forward.3} parent=27 // pred_check
          %p178 = pneg %p40
        $region30: #{gat_forward.3} parent=27 // pred_check_branch
          %180 = sbr.rel (%p178) target = $region32
        $region31: #{gat_forward.3} parent=27 // pred_region
          %181 = dma.done %s174, 1024
        $region32: #{gat_forward.3} parent=27 // pred_fallthru
          _
        // Predicated region
        $region33: #{gat_forward.3} parent=27 // pred_check
          %p182 = pneg %p61
        $region34: #{gat_forward.3} parent=27 // pred_check_branch
          %184 = sbr.rel (%p182) target = $region36
        $region35: #{gat_forward.3} parent=27 // pred_region
          %185 = dma.done [#allocation5], 3072
        $region36: #{gat_forward.3} parent=27 // pred_fallthru
          _
        %s186 = sand.u32 %s27, 1
        %s187 = scalar_lea.sflag [#allocation3], %s186
        %s188 = sand.u32 %s27, 1
        %s189 = smul.addr %s188, 64
        %s190 = scalar_lea.vmem [#allocation2], %s189
        %p191 = pneg %p40
        %p192 = pneg %p37
        %p193 = pneg %p61
        %p194 = pneg %p58
        %p195 = pneg %p87
        %p196 = pneg %p84
        %s197 = smul.u32 16, %s19
        %p198 = scmp.lt.s32.totalorder %s197, 63
        %s199 = scalar_select %p198, %s197, 63
        %s200 = smul.addr %s199, 2
        %s201 = smul.addr %s200, 4
        %s202 = scalar_lea.vmem %s2, %s201
        %p203 = pneg %p113
        %p204 = pneg %p110
        %s205 = smul.u32 16, %s19
        %p206 = scmp.lt.s32.totalorder %s205, 63
        %s207 = scalar_select %p206, %s205, 63
        %s208 = smul.addr %s207, 8
        %s209 = scalar_lea.vmem %s3, %s208
        %s210 = smul.u32 16, %s19
        %s211 = smul.u32 16, %s19
        %p212 = scmp.lt.s32.totalorder %s211, 63
        %s213 = scalar_select %p212, %s211, 63
        %s214 = smul.addr %s213, 2
        %s215 = smul.addr %s214, 4
        %s216 = scalar_lea.vmem %s2, %s215
        %s217 = smul.u32 16, %s19
        %s218 = smul.u32 16, %s19
        %p219 = scmp.lt.s32.totalorder %s218, 63
        %s220 = scalar_select %p219, %s218, 63
        %s221 = smul.addr %s220, 8
        %s222 = scalar_lea.vmem %s3, %s221
        %s223 = smul.u32 16, %s19
        %v225 = vld [vmem:[%s177] sm:$0xf]
        %v226 = vld [vmem:[%s177 + $0x4] sm:$0xf]
        %v227 = vld [vmem:[%s177 + $0x8] sm:$0xf]
        %v228 = vld [vmem:[%s177 + $0xc] sm:$0xf]
        %v229 = vld [vmem:[%s177 + $0x10] sm:$0xf]
        %v230 = vld [vmem:[%s177 + $0x14] sm:$0xf]
        %v231 = vld [vmem:[%s177 + $0x18] sm:$0xf]
        %v232 = vld [vmem:[%s177 + $0x1c] sm:$0xf]
        %v233 = vld [vmem:[%s177 + $0x20] sm:$0xf]
        %v234 = vld [vmem:[%s177 + $0x24] sm:$0xf]
        %v235 = vld [vmem:[%s177 + $0x28] sm:$0xf]
        %v236 = vld [vmem:[%s177 + $0x2c] sm:$0xf]
        %v237 = vld [vmem:[%s177 + $0x30] sm:$0xf]
        %v238 = vld [vmem:[%s177 + $0x34] sm:$0xf]
        %v239 = vld [vmem:[%s177 + $0x38] sm:$0xf]
        %v240 = vld [vmem:[%s177 + $0x3c] sm:$0xf]
        %v241 = vld [vmem:[#allocation4] sm:$0xff]
        %v242 = vld [vmem:[#allocation4 + $0x8] sm:$0xf]
        %v243 = vld [vmem:[#allocation4 + $0xc] sm:$0xff]
        %v244 = vld [vmem:[#allocation4 + $0x14] sm:$0xf]
        %v245 = vld [vmem:[#allocation4 + $0x18] sm:$0xff]
        %v246 = vld [vmem:[#allocation4 + $0x20] sm:$0xf]
        %v247 = vld [vmem:[#allocation4 + $0x24] sm:$0xff]
        %v248 = vld [vmem:[#allocation4 + $0x2c] sm:$0xf]
        %v249 = vld [vmem:[#allocation4 + $0x30] sm:$0xff]
        %v250 = vld [vmem:[#allocation4 + $0x38] sm:$0xf]
        %v251 = vld [vmem:[#allocation4 + $0x3c] sm:$0xff]
        %v252 = vld [vmem:[#allocation4 + $0x44] sm:$0xf]
        %v253 = vld [vmem:[#allocation4 + $0x48] sm:$0xff]
        %v254 = vld [vmem:[#allocation4 + $0x50] sm:$0xf]
        %v255 = vld [vmem:[#allocation4 + $0x54] sm:$0xff]
        %v256 = vld [vmem:[#allocation4 + $0x5c] sm:$0xf]
        %v257 = vld [vmem:[#allocation4 + $0x60] sm:$0xff]
        %v258 = vld [vmem:[#allocation4 + $0x68] sm:$0xf]
        %v259 = vld [vmem:[#allocation4 + $0x6c] sm:$0xff]
        %v260 = vld [vmem:[#allocation4 + $0x74] sm:$0xf]
        %v261 = vld [vmem:[#allocation4 + $0x78] sm:$0xff]
        %v262 = vld [vmem:[#allocation4 + $0x80] sm:$0xf]
        %v263 = vld [vmem:[#allocation4 + $0x84] sm:$0xff]
        %v264 = vld [vmem:[#allocation4 + $0x8c] sm:$0xf]
        %v265 = vld [vmem:[#allocation4 + $0x90] sm:$0xff]
        %v266 = vld [vmem:[#allocation4 + $0x98] sm:$0xf]
        %v267 = vld [vmem:[#allocation4 + $0x9c] sm:$0xff]
        %v268 = vld [vmem:[#allocation4 + $0xa4] sm:$0xf]
        %v269 = vld [vmem:[#allocation4 + $0xa8] sm:$0xff]
        %v270 = vld [vmem:[#allocation4 + $0xb0] sm:$0xf]
        %v271 = vld [vmem:[#allocation4 + $0xb4] sm:$0xff]
        %v272 = vld [vmem:[#allocation4 + $0xbc] sm:$0xf]
        %v289 = vunpack.c.l.b16 %v225
        %v290 = vunpack.c.l.b16 %v226
        %v291 = vunpack.c.l.b16 %v227
        %v292 = vunpack.c.l.b16 %v228
        %v293 = vunpack.c.l.b16 %v229
        %v294 = vunpack.c.l.b16 %v230
        %v295 = vunpack.c.l.b16 %v231
        %v296 = vunpack.c.l.b16 %v232
        %v297 = vunpack.c.l.b16 %v233
        %v298 = vunpack.c.l.b16 %v234
        %v299 = vunpack.c.l.b16 %v235
        %v300 = vunpack.c.l.b16 %v236
        %v301 = vunpack.c.l.b16 %v237
        %v302 = vunpack.c.l.b16 %v238
        %v303 = vunpack.c.l.b16 %v239
        %v304 = vunpack.c.l.b16 %v240
        %v305 = vpack.c.b16 %v290, %v289
        %v306 = vpack.c.b16 %v292, %v291
        %v307 = vpack.c.b16 %v294, %v293
        %v308 = vpack.c.b16 %v296, %v295
        %v309 = vpack.c.b16 %v298, %v297
        %v310 = vpack.c.b16 %v300, %v299
        %v311 = vpack.c.b16 %v302, %v301
        %v312 = vpack.c.b16 %v304, %v303
        %v353 = vunpack.c.l.b16 %v241
        %v354 = vunpack.c.h.b16 %v241
        %v355 = vunpack.c.l.b16 %v242
        %v356 = vunpack.c.l.b16 %v243
        %v357 = vunpack.c.h.b16 %v243
        %v358 = vunpack.c.l.b16 %v244
        %v359 = vunpack.c.l.b16 %v245
        %v360 = vunpack.c.h.b16 %v245
        %v361 = vunpack.c.l.b16 %v246
        %v362 = vunpack.c.l.b16 %v247
        %v363 = vunpack.c.h.b16 %v247
        %v364 = vunpack.c.l.b16 %v248
        %v365 = vunpack.c.l.b16 %v249
        %v366 = vunpack.c.h.b16 %v249
        %v367 = vunpack.c.l.b16 %v250
        %v368 = vunpack.c.l.b16 %v251
        %v369 = vunpack.c.h.b16 %v251
        %v370 = vunpack.c.l.b16 %v252
        %v371 = vunpack.c.l.b16 %v253
        %v372 = vunpack.c.h.b16 %v253
        %v373 = vunpack.c.l.b16 %v254
        %v374 = vunpack.c.l.b16 %v255
        %v375 = vunpack.c.h.b16 %v255
        %v376 = vunpack.c.l.b16 %v256
        %v377 = vunpack.c.l.b16 %v257
        %v378 = vunpack.c.h.b16 %v257
        %v379 = vunpack.c.l.b16 %v258
        %v380 = vunpack.c.l.b16 %v259
        %v381 = vunpack.c.h.b16 %v259
        %v382 = vunpack.c.l.b16 %v260
        %v383 = vunpack.c.l.b16 %v261
        %v384 = vunpack.c.h.b16 %v261
        %v385 = vunpack.c.l.b16 %v262
        %v386 = vunpack.c.l.b16 %v263
        %v387 = vunpack.c.h.b16 %v263
        %v388 = vunpack.c.l.b16 %v264
        %v389 = vunpack.c.l.b16 %v265
        %v390 = vunpack.c.h.b16 %v265
        %v391 = vunpack.c.l.b16 %v266
        %v392 = vunpack.c.l.b16 %v267
        %v393 = vunpack.c.h.b16 %v267
        %v394 = vunpack.c.l.b16 %v268
        %v395 = vunpack.c.l.b16 %v269
        %v396 = vunpack.c.h.b16 %v269
        %v397 = vunpack.c.l.b16 %v270
        %v398 = vunpack.c.l.b16 %v271
        %v399 = vunpack.c.h.b16 %v271
        %v400 = vunpack.c.l.b16 %v272
        %v401 = vpack.c.b16 %v356, %v353
        %v402 = vpack.c.b16 %v357, %v354
        %v403 = vpack.c.b16 %v358, %v355
        %v404 = vpack.c.b16 %v362, %v359
        %v405 = vpack.c.b16 %v363, %v360
        %v406 = vpack.c.b16 %v364, %v361
        %v407 = vpack.c.b16 %v368, %v365
        %v408 = vpack.c.b16 %v369, %v366
        %v409 = vpack.c.b16 %v370, %v367
        %v410 = vpack.c.b16 %v374, %v371
        %v411 = vpack.c.b16 %v375, %v372
        %v412 = vpack.c.b16 %v376, %v373
        %v413 = vpack.c.b16 %v380, %v377
        %v414 = vpack.c.b16 %v381, %v378
        %v415 = vpack.c.b16 %v382, %v379
        %v416 = vpack.c.b16 %v386, %v383
        %v417 = vpack.c.b16 %v387, %v384
        %v418 = vpack.c.b16 %v388, %v385
        %v419 = vpack.c.b16 %v392, %v389
        %v420 = vpack.c.b16 %v393, %v390
        %v421 = vpack.c.b16 %v394, %v391
        %v422 = vpack.c.b16 %v398, %v395
        %v423 = vpack.c.b16 %v399, %v396
        %v424 = vpack.c.b16 %v400, %v397
        %449 = vmatprep.subr.bf16.mxu0 %v423
        %450 = vmatpush1.bf16.msra.mxu0 %v422
        %451 = vmatprep.subr.bf16.mxu0 %v420
        %452 = vmatpush1.bf16.msra.mxu0 %v419
        %453 = vmatprep.subr.bf16.mxu0 %v417
        %454 = vmatpush1.bf16.msra.mxu0 %v416
        %455 = vmatprep.subr.bf16.mxu0 %v414
        %456 = vmatpush1.bf16.msra.mxu0 %v413
        %457 = vmatprep.subr.bf16.mxu0 %v411
        %458 = vmatpush1.bf16.msra.mxu0 %v410
        %459 = vmatprep.subr.bf16.mxu0 %v408
        %460 = vmatpush1.bf16.msra.mxu0 %v407
        %461 = vmatprep.subr.bf16.mxu0 %v405
        %462 = vmatpush1.bf16.msra.mxu0 %v404
        %463 = vmatprep.subr.bf16.mxu0 %v402
        %464 = vmatpush1.bf16.msra.mxu0 %v401
        %465 = vmatprep.subr.bf16.mxu0 0
        %466 = vmatpush2.bf16.msra.mxu0 0
        %467 = vmatprep.subr.bf16.mxu0 0
        %468 = vmatpush2.bf16.msra.mxu0 0
        %469 = vmatprep.subr.bf16.mxu0 0
        %470 = vmatpush2.bf16.msra.mxu0 0
        %471 = vmatprep.subr.bf16.mxu0 0
        %472 = vmatpush2.bf16.msra.mxu0 0
        %473 = vmatprep.subr.bf16.mxu0 0
        %474 = vmatpush2.bf16.msra.mxu0 0
        %475 = vmatprep.subr.bf16.mxu0 0
        %476 = vmatpush2.bf16.msra.mxu0 0
        %477 = vmatprep.subr.bf16.mxu0 0
        %478 = vmatpush2.bf16.msra.mxu0 0
        %479 = vmatprep.subr.bf16.mxu0 0
        %480 = vmatpush2.bf16.msra.mxu0 0
        %481 = vmatprep.mubr.bf16.mxu0 0
        %482 = vmatmul.mubr.bf16.gmra.mxu0 %v305
        %v483 = vpop.f32.mrf.mxu0
        %v484 = vadd.f32 0.0, %v483
        %v485 = vpop.f32.mrf.mxu0
        %v486 = vadd.f32 0.0, %v485
        %v487 = vpop.f32.mrf.mxu0
        %v488 = vadd.f32 0.0, %v487
        %v489 = vpop.f32.mrf.mxu0
        %v490 = vadd.f32 0.0, %v489
        %491 = vmatprep.mubr.bf16.mxu0 0
        %492 = vmatmul.mubr.bf16.gmra.mxu0 %v306
        %v493 = vpop.f32.mrf.mxu0
        %v494 = vadd.f32 0.0, %v493
        %v495 = vpop.f32.mrf.mxu0
        %v496 = vadd.f32 0.0, %v495
        %v497 = vpop.f32.mrf.mxu0
        %v498 = vadd.f32 0.0, %v497
        %v499 = vpop.f32.mrf.mxu0
        %v500 = vadd.f32 0.0, %v499
        %501 = vmatprep.mubr.bf16.mxu0 0
        %502 = vmatmul.mubr.bf16.gmra.mxu0 %v307
        %v503 = vpop.f32.mrf.mxu0
        %v504 = vadd.f32 0.0, %v503
        %v505 = vpop.f32.mrf.mxu0
        %v506 = vadd.f32 0.0, %v505
        %v507 = vpop.f32.mrf.mxu0
        %v508 = vadd.f32 0.0, %v507
        %v509 = vpop.f32.mrf.mxu0
        %v510 = vadd.f32 0.0, %v509
        %511 = vmatprep.mubr.bf16.mxu0 0
        %512 = vmatmul.mubr.bf16.gmra.mxu0 %v308
        %v513 = vpop.f32.mrf.mxu0
        %v514 = vadd.f32 0.0, %v513
        %v515 = vpop.f32.mrf.mxu0
        %v516 = vadd.f32 0.0, %v515
        %v517 = vpop.f32.mrf.mxu0
        %v518 = vadd.f32 0.0, %v517
        %v519 = vpop.f32.mrf.mxu0
        %v520 = vadd.f32 0.0, %v519
        %521 = vmatprep.mubr.bf16.mxu0 0
        %522 = vmatmul.mubr.bf16.gmra.mxu0 %v309
        %v523 = vpop.f32.mrf.mxu0
        %v524 = vadd.f32 0.0, %v523
        %v525 = vpop.f32.mrf.mxu0
        %v526 = vadd.f32 0.0, %v525
        %v527 = vpop.f32.mrf.mxu0
        %v528 = vadd.f32 0.0, %v527
        %v529 = vpop.f32.mrf.mxu0
        %v530 = vadd.f32 0.0, %v529
        %531 = vmatprep.mubr.bf16.mxu0 0
        %532 = vmatmul.mubr.bf16.gmra.mxu0 %v310
        %v533 = vpop.f32.mrf.mxu0
        %v534 = vadd.f32 0.0, %v533
        %v535 = vpop.f32.mrf.mxu0
        %v536 = vadd.f32 0.0, %v535
        %v537 = vpop.f32.mrf.mxu0
        %v538 = vadd.f32 0.0, %v537
        %v539 = vpop.f32.mrf.mxu0
        %v540 = vadd.f32 0.0, %v539
        %541 = vmatprep.mubr.bf16.mxu0 0
        %542 = vmatmul.mubr.bf16.gmra.mxu0 %v311
        %v543 = vpop.f32.mrf.mxu0
        %v544 = vadd.f32 0.0, %v543
        %v545 = vpop.f32.mrf.mxu0
        %v546 = vadd.f32 0.0, %v545
        %v547 = vpop.f32.mrf.mxu0
        %v548 = vadd.f32 0.0, %v547
        %v549 = vpop.f32.mrf.mxu0
        %v550 = vadd.f32 0.0, %v549
        %551 = vmatprep.mubr.bf16.mxu0 0
        %552 = vmatmul.mubr.bf16.gmra.mxu0 %v312
        %v553 = vpop.f32.mrf.mxu0
        %v554 = vadd.f32 0.0, %v553
        %v555 = vpop.f32.mrf.mxu0
        %v556 = vadd.f32 0.0, %v555
        %v557 = vpop.f32.mrf.mxu0
        %v558 = vadd.f32 0.0, %v557
        %v559 = vpop.f32.mrf.mxu0
        %v560 = vadd.f32 0.0, %v559
        %561 = vdwg.mxu0
        %562 = vmatprep.subr.bf16.mxu0 0
        %563 = vmatpush1.bf16.msra.mxu0 %v424
        %564 = vmatprep.subr.bf16.mxu0 0
        %565 = vmatpush1.bf16.msra.mxu0 %v421
        %566 = vmatprep.subr.bf16.mxu0 0
        %567 = vmatpush1.bf16.msra.mxu0 %v418
        %568 = vmatprep.subr.bf16.mxu0 0
        %569 = vmatpush1.bf16.msra.mxu0 %v415
        %570 = vmatprep.subr.bf16.mxu0 0
        %571 = vmatpush1.bf16.msra.mxu0 %v412
        %572 = vmatprep.subr.bf16.mxu0 0
        %573 = vmatpush1.bf16.msra.mxu0 %v409
        %574 = vmatprep.subr.bf16.mxu0 0
        %575 = vmatpush1.bf16.msra.mxu0 %v406
        %576 = vmatprep.subr.bf16.mxu0 0
        %577 = vmatpush1.bf16.msra.mxu0 %v403
        %578 = vmatprep.subr.bf16.mxu0 0
        %579 = vmatpush2.bf16.msra.mxu0 0
        %580 = vmatprep.subr.bf16.mxu0 0
        %581 = vmatpush2.bf16.msra.mxu0 0
        %582 = vmatprep.subr.bf16.mxu0 0
        %583 = vmatpush2.bf16.msra.mxu0 0
        %584 = vmatprep.subr.bf16.mxu0 0
        %585 = vmatpush2.bf16.msra.mxu0 0
        %586 = vmatprep.subr.bf16.mxu0 0
        %587 = vmatpush2.bf16.msra.mxu0 0
        %588 = vmatprep.subr.bf16.mxu0 0
        %589 = vmatpush2.bf16.msra.mxu0 0
        %590 = vmatprep.subr.bf16.mxu0 0
        %591 = vmatpush2.bf16.msra.mxu0 0
        %592 = vmatprep.subr.bf16.mxu0 0
        %593 = vmatpush2.bf16.msra.mxu0 0
        %594 = vmatprep.mubr.bf16.mxu0 0
        %595 = vmatmul.mubr.bf16.gmra.mxu0 %v305
        %v596 = vpop.f32.mrf.mxu0
        %v597 = vadd.f32 0.0, %v596
        %v598 = vpop.f32.mrf.mxu0
        %v599 = vpop.f32.mrf.mxu0
        %v600 = vadd.f32 0.0, %v599
        %v601 = vpop.f32.mrf.mxu0
        %602 = vmatprep.mubr.bf16.mxu0 0
        %603 = vmatmul.mubr.bf16.gmra.mxu0 %v306
        %v604 = vpop.f32.mrf.mxu0
        %v605 = vadd.f32 0.0, %v604
        %v606 = vpop.f32.mrf.mxu0
        %v607 = vpop.f32.mrf.mxu0
        %v608 = vadd.f32 0.0, %v607
        %v609 = vpop.f32.mrf.mxu0
        %610 = vmatprep.mubr.bf16.mxu0 0
        %611 = vmatmul.mubr.bf16.gmra.mxu0 %v307
        %v612 = vpop.f32.mrf.mxu0
        %v613 = vadd.f32 0.0, %v612
        %v614 = vpop.f32.mrf.mxu0
        %v615 = vpop.f32.mrf.mxu0
        %v616 = vadd.f32 0.0, %v615
        %v617 = vpop.f32.mrf.mxu0
        %618 = vmatprep.mubr.bf16.mxu0 0
        %619 = vmatmul.mubr.bf16.gmra.mxu0 %v308
        %v620 = vpop.f32.mrf.mxu0
        %v621 = vadd.f32 0.0, %v620
        %v622 = vpop.f32.mrf.mxu0
        %v623 = vpop.f32.mrf.mxu0
        %v624 = vadd.f32 0.0, %v623
        %v625 = vpop.f32.mrf.mxu0
        %626 = vmatprep.mubr.bf16.mxu0 0
        %627 = vmatmul.mubr.bf16.gmra.mxu0 %v309
        %v628 = vpop.f32.mrf.mxu0
        %v629 = vadd.f32 0.0, %v628
        %v630 = vpop.f32.mrf.mxu0
        %v631 = vpop.f32.mrf.mxu0
        %v632 = vadd.f32 0.0, %v631
        %v633 = vpop.f32.mrf.mxu0
        %634 = vmatprep.mubr.bf16.mxu0 0
        %635 = vmatmul.mubr.bf16.gmra.mxu0 %v310
        %v636 = vpop.f32.mrf.mxu0
        %v637 = vadd.f32 0.0, %v636
        %v638 = vpop.f32.mrf.mxu0
        %v639 = vpop.f32.mrf.mxu0
        %v640 = vadd.f32 0.0, %v639
        %v641 = vpop.f32.mrf.mxu0
        %642 = vmatprep.mubr.bf16.mxu0 0
        %643 = vmatmul.mubr.bf16.gmra.mxu0 %v311
        %v644 = vpop.f32.mrf.mxu0
        %v645 = vadd.f32 0.0, %v644
        %v646 = vpop.f32.mrf.mxu0
        %v647 = vpop.f32.mrf.mxu0
        %v648 = vadd.f32 0.0, %v647
        %v649 = vpop.f32.mrf.mxu0
        %650 = vmatprep.mubr.bf16.mxu0 0
        %651 = vmatmul.mubr.bf16.gmra.mxu0 %v312
        %v652 = vpop.f32.mrf.mxu0
        %v653 = vadd.f32 0.0, %v652
        %v654 = vpop.f32.mrf.mxu0
        %v655 = vpop.f32.mrf.mxu0
        %v656 = vadd.f32 0.0, %v655
        %v657 = vpop.f32.mrf.mxu0
        %658 = vdwg.mxu0
        %v659 = vpack.c.bf16 %v488, %v484
        %v660 = vpack.c.bf16 %v490, %v486
        %v661 = vpack.c.bf16 %v498, %v494
        %v662 = vpack.c.bf16 %v500, %v496
        %v663 = vpack.c.bf16 %v508, %v504
        %v664 = vpack.c.bf16 %v510, %v506
        %v665 = vpack.c.bf16 %v518, %v514
        %v666 = vpack.c.bf16 %v520, %v516
        %v667 = vpack.c.bf16 %v528, %v524
        %v668 = vpack.c.bf16 %v530, %v526
        %v669 = vpack.c.bf16 %v538, %v534
        %v670 = vpack.c.bf16 %v540, %v536
        %v671 = vpack.c.bf16 %v548, %v544
        %v672 = vpack.c.bf16 %v550, %v546
        %v673 = vpack.c.bf16 %v558, %v554
        %v674 = vpack.c.bf16 %v560, %v556
        %v691 = vunpack.c.l.b16 %v659
        %v692 = vunpack.c.l.b16 %v660
        %v693 = vunpack.c.h.b16 %v659
        %v694 = vunpack.c.h.b16 %v660
        %v695 = vunpack.c.l.b16 %v661
        %v696 = vunpack.c.l.b16 %v662
        %v697 = vunpack.c.h.b16 %v661
        %v698 = vunpack.c.h.b16 %v662
        %v699 = vunpack.c.l.b16 %v663
        %v700 = vunpack.c.l.b16 %v664
        %v701 = vunpack.c.h.b16 %v663
        %v702 = vunpack.c.h.b16 %v664
        %v703 = vunpack.c.l.b16 %v665
        %v704 = vunpack.c.l.b16 %v666
        %v705 = vunpack.c.h.b16 %v665
        %v706 = vunpack.c.h.b16 %v666
        %v707 = vunpack.c.l.b16 %v667
        %v708 = vunpack.c.l.b16 %v668
        %v709 = vunpack.c.h.b16 %v667
        %v710 = vunpack.c.h.b16 %v668
        %v711 = vunpack.c.l.b16 %v669
        %v712 = vunpack.c.l.b16 %v670
        %v713 = vunpack.c.h.b16 %v669
        %v714 = vunpack.c.h.b16 %v670
        %v715 = vunpack.c.l.b16 %v671
        %v716 = vunpack.c.l.b16 %v672
        %v717 = vunpack.c.h.b16 %v671
        %v718 = vunpack.c.h.b16 %v672
        %v719 = vunpack.c.l.b16 %v673
        %v720 = vunpack.c.l.b16 %v674
        %v721 = vunpack.c.h.b16 %v673
        %v722 = vunpack.c.h.b16 %v674
        %v723 = vpack.c.b16 %v692, %v691
        %v724 = vpack.c.b16 %v694, %v693
        %v725 = vpack.c.b16 %v696, %v695
        %v726 = vpack.c.b16 %v698, %v697
        %v727 = vpack.c.b16 %v700, %v699
        %v728 = vpack.c.b16 %v702, %v701
        %v729 = vpack.c.b16 %v704, %v703
        %v730 = vpack.c.b16 %v706, %v705
        %v731 = vpack.c.b16 %v708, %v707
        %v732 = vpack.c.b16 %v710, %v709
        %v733 = vpack.c.b16 %v712, %v711
        %v734 = vpack.c.b16 %v714, %v713
        %v735 = vpack.c.b16 %v716, %v715
        %v736 = vpack.c.b16 %v718, %v717
        %v737 = vpack.c.b16 %v720, %v719
        %v738 = vpack.c.b16 %v722, %v721
        %755 = vst [vmem:[%s216] sm:$0xff] %v723
        %756 = vst [vmem:[%s216 + $0x8] sm:$0xff] %v724
        %757 = vst [vmem:[%s216 + $0x10] sm:$0xff] %v725
        %758 = vst [vmem:[%s216 + $0x18] sm:$0xff] %v726
        %759 = vst [vmem:[%s216 + $0x20] sm:$0xff] %v727
        %760 = vst [vmem:[%s216 + $0x28] sm:$0xff] %v728
        %761 = vst [vmem:[%s216 + $0x30] sm:$0xff] %v729
        %762 = vst [vmem:[%s216 + $0x38] sm:$0xff] %v730
        %763 = vst [vmem:[%s216 + $0x40] sm:$0xff] %v731
        %764 = vst [vmem:[%s216 + $0x48] sm:$0xff] %v732
        %765 = vst [vmem:[%s216 + $0x50] sm:$0xff] %v733
        %766 = vst [vmem:[%s216 + $0x58] sm:$0xff] %v734
        %767 = vst [vmem:[%s216 + $0x60] sm:$0xff] %v735
        %768 = vst [vmem:[%s216 + $0x68] sm:$0xff] %v736
        %769 = vst [vmem:[%s216 + $0x70] sm:$0xff] %v737
        %770 = vst [vmem:[%s216 + $0x78] sm:$0xff] %v738
        %771 = vst [vmem:[%s222] sm:$0xff] %v597
        %772 = vst [vmem:[%s222 + $0x8] sm:$0xff] %v600
        %773 = vst [vmem:[%s222 + $0x10] sm:$0xff] %v605
        %774 = vst [vmem:[%s222 + $0x18] sm:$0xff] %v608
        %775 = vst [vmem:[%s222 + $0x20] sm:$0xff] %v613
        %776 = vst [vmem:[%s222 + $0x28] sm:$0xff] %v616
        %777 = vst [vmem:[%s222 + $0x30] sm:$0xff] %v621
        %778 = vst [vmem:[%s222 + $0x38] sm:$0xff] %v624
        %779 = vst [vmem:[%s222 + $0x40] sm:$0xff] %v629
        %780 = vst [vmem:[%s222 + $0x48] sm:$0xff] %v632
        %781 = vst [vmem:[%s222 + $0x50] sm:$0xff] %v637
        %782 = vst [vmem:[%s222 + $0x58] sm:$0xff] %v640
        %783 = vst [vmem:[%s222 + $0x60] sm:$0xff] %v645
        %784 = vst [vmem:[%s222 + $0x68] sm:$0xff] %v648
        %785 = vst [vmem:[%s222 + $0x70] sm:$0xff] %v653
        %786 = vst [vmem:[%s222 + $0x78] sm:$0xff] %v656
        %s787 = smul.u32 16, %s19
        %p788 = scmp.lt.s32.totalorder %s787, 63
        %s789 = scalar_select %p788, %s787, 63
        %s790 = smul.addr %s789, 2
        %s791 = smul.addr %s790, 4
        %s792 = scalar_lea.vmem %s2, %s791
        %s793 = smul.u32 16, %s19
        %p794 = scmp.lt.s32.totalorder %s793, 63
        %s795 = scalar_select %p794, %s793, 63
        %s796 = smul.addr %s795, 8
        %s797 = scalar_lea.vmem %s3, %s796
        // Predicated region
        $region37: #{gat_forward.3} parent=27 // pred_check
          %p798 = pneg %p84
        $region38: #{gat_forward.3} parent=27 // pred_check_branch
          %800 = sbr.rel (%p798) target = $region40
        $region39: #{gat_forward.3} parent=27 // pred_region
          %s801 = smul.u32 16, %s19
        $region40: #{gat_forward.3} parent=27 // pred_fallthru
          _
        // Predicated region
        $region41: #{gat_forward.3} parent=27 // pred_check
          %p802 = pneg %p110
        $region42: #{gat_forward.3} parent=27 // pred_check_branch
          %804 = sbr.rel (%p802) target = $region44
        $region43: #{gat_forward.3} parent=27 // pred_region
          %s805 = smul.u32 16, %s19
        $region44: #{gat_forward.3} parent=27 // pred_fallthru
          _
      $region28: #{gat_forward.3} parent=5 // pred_fallthru
        _
      %p806 = scmp.le.s32.totalorder 2, %s14
      // Predicated region
      $region45: #{gat_forward.3} parent=5 // pred_check
        %p807 = pneg %p806
      $region46: #{gat_forward.3} parent=5 // pred_check_branch
        %809 = sbr.rel (%p807) target = $region48
      $region47: #{gat_forward.3} parent=5 // pred_region
        %s810 = ssub.s32 %s14, 2
        // Predicated region
        $region49: #{gat_forward.3} parent=47 // pred_check
          %p811 = pneg %p90
        $region50: #{gat_forward.3} parent=47 // pred_check_branch
          %813 = sbr.rel (%p811) target = $region52
        $region51: #{gat_forward.3} parent=47 // pred_region
          %s814 = smul.u32 16, %s20
          %p815 = scmp.lt.s32.totalorder %s814, 63
          %s816 = scalar_select %p815, %s814, 63
          %s817 = smul.addr %s816, 2
          %s818 = smul.addr %s817, 4
          %s819 = scalar_lea.vmem %s2, %s818
        $region52: #{gat_forward.3} parent=47 // pred_fallthru
          _
        // Predicated region
        $region53: #{gat_forward.3} parent=47 // pred_check
          %p820 = pneg %p116
        $region54: #{gat_forward.3} parent=47 // pred_check_branch
          %822 = sbr.rel (%p820) target = $region56
        $region55: #{gat_forward.3} parent=47 // pred_region
          %s823 = smul.u32 16, %s20
          %p824 = scmp.lt.s32.totalorder %s823, 63
          %s825 = scalar_select %p824, %s823, 63
          %s826 = smul.addr %s825, 8
          %s827 = scalar_lea.vmem %s3, %s826
        $region56: #{gat_forward.3} parent=47 // pred_fallthru
          _
      $region48: #{gat_forward.3} parent=5 // pred_fallthru
        _
    $region6: #{gat_forward.3} parent=1 // loop_footer
      %s18 = sadd.s32 1, %s14
    $region7: #{gat_forward.3} parent=1 // loop_footer_branch
      %13 = sbr.rel target = $region3
    $region8: #{gat_forward.3} parent=1 // loop_exit
      _
    %828 = vsyncpa [#allocation3], 1
    %s829 = scalar_lea.sflag [#allocation3], 1
    %830 = vsyncpa %s829, 1
    %831 = vsyncpa [#allocation5], 1

// kernel: gat_forward.5
$region0: #{gat_forward.5}
  #allocation0 [shape = 'u32[]', space=smem, size = 0x4, offset = 0x4, fixed_abs, tag = 'smem constant byte address 0x4 - core index']
  #allocation1 [shape = 'u32[144,128]{1,0:T(1,128)}', space=vmem, size = 0x12000, scoped, tag = 'internal scratch']
  #allocation2 [shape = 'f32[128,1]{1,0:T(8,128)}', space=vmem, size = 0x10000, scoped, tag = 'scratch operand']
  #allocation3 [shape = 'f32[128,1]{1,0:T(8,128)}', space=vmem, size = 0x10000, scoped, tag = 'scratch operand']
  #allocation4 [shape = 'f32[128,256]{1,0:T(8,128)}', space=vmem, size = 0x20000, scoped, tag = 'scratch operand']
  #allocation5 [shape = 's32[1]{0}', space=sflag, size = 0x4, scoped, tag = 'scoped memory for gat_forward.5']
  #allocation6 [shape = 'u8[512]{0}', space=smem, size = 0x200, scoped, tag = 'prefetched SMEM operand 0']
  %s0 = inlined_call_operand.vmem [shape: s32[16], index: 0, kind: input, shape index: {}]
  %s1 = inlined_call_operand.vmem [shape: s8[512,512], index: 1, kind: input, shape index: {}]
  %s2 = inlined_call_operand.vmem [shape: f32[512,1], index: 2, kind: input, shape index: {}]
  %s3 = inlined_call_operand.vmem [shape: f32[1,512], index: 3, kind: input, shape index: {}]
  %s4 = inlined_call_operand.vmem [shape: bf16[512,256], index: 4, kind: input, shape index: {}]
  %s5 = inlined_call_operand.vmem [shape: f32[1,256], index: 5, kind: input, shape index: {}]
  %s6 = inlined_call_operand.vmem [shape: bf16[256,128], index: 6, kind: input, shape index: {}]
  %s7 = inlined_call_operand.vmem [shape: f32[1,128], index: 7, kind: input, shape index: {}]
  %s8 = inlined_call_operand.vmem [shape: f32[512,128], index: 8, kind: output, shape index: {}]
  %s9 = sld [smem:[#allocation0]]
  $region111: #{gat_forward.5} parent=0
    _
  %s11 = ssub.s32 1, %s9
  %s12 = scalar_select 0, %s11, %s9
  %s13 = sshll.u32 %s0, 4
  %s14 = int_to_ptr.vmem [resolvable:$true] %s13
  %16 = dma.vmem_to_smem %s14, 16, [#allocation6], [#allocation5]
  %17 = dma.done [#allocation5], 16
  %18 = sfence
  $region1: #{gat_forward.5} parent=0
    #allocation7 [shape = 'u8[32768]{0}', space=vmem, size = 0x8000, scoped, tag = 'input window, operand 1']
    loop: start=0, step=1, limit=18
    $region2: #{gat_forward.5} parent=1 // loop_pre_header
      _
    $region3: #{gat_forward.5} parent=1 // loop_header
      %s20 = sphi 0, %s24
      %p21 = scmp.ge.s32.totalorder %s20, 18
      %s27 = sphi 0, %s39
      %s28 = sphi 0, %s35
      %s29 = sphi 0, %s27
      %s30 = sphi 0, %s28
      %s31 = sphi 0, %s29
      %s32 = sphi 0, %s30
      %s44 = sphi 0, %s46
      %s47 = sphi 0, %s44
      %s48 = sphi 0, %s47
      %s64 = sphi 0, %s48
      %s70 = sphi 0, %s72
      %s73 = sphi 0, %s70
      %s74 = sphi 0, %s73
      %s90 = sphi 0, %s74
      %s96 = sphi 0, %s98
      %s99 = sphi 0, %s96
      %s100 = sphi 0, %s99
      %s116 = sphi 0, %s100
      %s122 = sphi 0, %s124
      %s125 = sphi 0, %s122
      %s126 = sphi 0, %s125
      %s142 = sphi 0, %s126
      %s146 = sphi 0, %s146
      %s148 = sphi 0, %s146
      %s149 = sphi 0, %s148
      %s163 = sphi 0, %s149
      %s167 = sphi 0, %s167
      %s169 = sphi 0, %s167
      %s170 = sphi 0, %s169
      %s184 = sphi 0, %s170
      %s188 = sphi 0, %s188
      %s190 = sphi 0, %s188
      %s191 = sphi 0, %s190
      %s205 = sphi 0, %s191
      %s211 = sphi 0, %s213
      %s214 = sphi 0, %s211
      %s215 = sphi 0, %s214
      %s231 = sphi 0, %s215
    $region4: #{gat_forward.5} parent=1 // loop_header_branch
      %23 = sbr.rel (%p21) target = $region8
    $region5: #{gat_forward.5} parent=1 // loop_body
      %s25 = ssub.s32 %s20, 1
      %s26 = ssub.s32 %s20, 2
      %s33 = sadd.s32 1, %s28
      %p34 = scmp.ge.s32.totalorder %s33, 4
      %s35 = scalar_select %p34, 0, %s33
      %s36 = sadd.s32 1, %s27
      %s37 = scalar_select %p34, %s36, %s27
      %p38 = scmp.ge.s32.totalorder %s37, 4
      %s39 = scalar_select %p38, 0, %s37
      %s40 = ssub.s32 %s27, %s39
      %s41 = ssub.s32 %s28, %s35
      %s42 = sor.u32 %s40, %s41
      %p43 = scmp.eq.s32.totalorder %s42, 0
      %s45 = sadd.s32 %s44, 1
      %s46 = scalar_select %p43, %s44, %s45
      %p49 = pneg %p43
      %p50 = scmp.eq.s32.totalorder %s20, 15
      %p51 = por %p49, %p50
      %p52 = scmp.ne.s32.totalorder %s44, %s47
      %p53 = scmp.eq.s32.totalorder %s20, 0
      %p54 = por %p52, %p53
      %p55 = scmp.ne.s32.totalorder %s44, %s47
      %p56 = scmp.eq.s32.totalorder %s25, 15
      %p57 = por %p55, %p56
      %p58 = scmp.ne.s32.totalorder %s47, %s48
      %p59 = scmp.eq.s32.totalorder %s25, 0
      %p60 = por %p58, %p59
      %p61 = scmp.ne.s32.totalorder %s47, %s48
      %p62 = scmp.eq.s32.totalorder %s26, 15
      %p63 = por %p61, %p62
      %p65 = scmp.ne.s32.totalorder %s48, %s64
      %p66 = scmp.eq.s32.totalorder %s26, 0
      %p67 = por %p65, %p66
      %s68 = ssub.s32 %s27, %s39
      %p69 = scmp.eq.s32.totalorder %s68, 0
      %s71 = sadd.s32 %s70, 1
      %s72 = scalar_select %p69, %s70, %s71
      %p75 = pneg %p69
      %p76 = scmp.eq.s32.totalorder %s20, 15
      %p77 = por %p75, %p76
      %p78 = scmp.ne.s32.totalorder %s70, %s73
      %p79 = scmp.eq.s32.totalorder %s20, 0
      %p80 = por %p78, %p79
      %p81 = scmp.ne.s32.totalorder %s70, %s73
      %p82 = scmp.eq.s32.totalorder %s25, 15
      %p83 = por %p81, %p82
      %p84 = scmp.ne.s32.totalorder %s73, %s74
      %p85 = scmp.eq.s32.totalorder %s25, 0
      %p86 = por %p84, %p85
      %p87 = scmp.ne.s32.totalorder %s73, %s74
      %p88 = scmp.eq.s32.totalorder %s26, 15
      %p89 = por %p87, %p88
      %p91 = scmp.ne.s32.totalorder %s74, %s90
      %p92 = scmp.eq.s32.totalorder %s26, 0
      %p93 = por %p91, %p92
      %s94 = ssub.s32 %s28, %s35
      %p95 = scmp.eq.s32.totalorder %s94, 0
      %s97 = sadd.s32 %s96, 1
      %s98 = scalar_select %p95, %s96, %s97
      %p101 = pneg %p95
      %p102 = scmp.eq.s32.totalorder %s20, 15
      %p103 = por %p101, %p102
      %p104 = scmp.ne.s32.totalorder %s96, %s99
      %p105 = scmp.eq.s32.totalorder %s20, 0
      %p106 = por %p104, %p105
      %p107 = scmp.ne.s32.totalorder %s96, %s99
      %p108 = scmp.eq.s32.totalorder %s25, 15
      %p109 = por %p107, %p108
      %p110 = scmp.ne.s32.totalorder %s99, %s100
      %p111 = scmp.eq.s32.totalorder %s25, 0
      %p112 = por %p110, %p111
      %p113 = scmp.ne.s32.totalorder %s99, %s100
      %p114 = scmp.eq.s32.totalorder %s26, 15
      %p115 = por %p113, %p114
      %p117 = scmp.ne.s32.totalorder %s100, %s116
      %p118 = scmp.eq.s32.totalorder %s26, 0
      %p119 = por %p117, %p118
      %s120 = ssub.s32 %s28, %s35
      %p121 = scmp.eq.s32.totalorder %s120, 0
      %s123 = sadd.s32 %s122, 1
      %s124 = scalar_select %p121, %s122, %s123
      %p127 = pneg %p121
      %p128 = scmp.eq.s32.totalorder %s20, 15
      %p129 = por %p127, %p128
      %p130 = scmp.ne.s32.totalorder %s122, %s125
      %p131 = scmp.eq.s32.totalorder %s20, 0
      %p132 = por %p130, %p131
      %p133 = scmp.ne.s32.totalorder %s122, %s125
      %p134 = scmp.eq.s32.totalorder %s25, 15
      %p135 = por %p133, %p134
      %p136 = scmp.ne.s32.totalorder %s125, %s126
      %p137 = scmp.eq.s32.totalorder %s25, 0
      %p138 = por %p136, %p137
      %p139 = scmp.ne.s32.totalorder %s125, %s126
      %p140 = scmp.eq.s32.totalorder %s26, 15
      %p141 = por %p139, %p140
      %p143 = scmp.ne.s32.totalorder %s126, %s142
      %p144 = scmp.eq.s32.totalorder %s26, 0
      %p145 = por %p143, %p144
      %s147 = sadd.s32 %s146, 1
      %p150 = scmp.eq.s32.totalorder %s20, 15
      %p151 = scmp.ne.s32.totalorder %s146, %s148
      %p152 = scmp.eq.s32.totalorder %s20, 0
      %p153 = por %p151, %p152
      %p154 = scmp.ne.s32.totalorder %s146, %s148
      %p155 = scmp.eq.s32.totalorder %s25, 15
      %p156 = por %p154, %p155
      %p157 = scmp.ne.s32.totalorder %s148, %s149
      %p158 = scmp.eq.s32.totalorder %s25, 0
      %p159 = por %p157, %p158
      %p160 = scmp.ne.s32.totalorder %s148, %s149
      %p161 = scmp.eq.s32.totalorder %s26, 15
      %p162 = por %p160, %p161
      %p164 = scmp.ne.s32.totalorder %s149, %s163
      %p165 = scmp.eq.s32.totalorder %s26, 0
      %p166 = por %p164, %p165
      %s168 = sadd.s32 %s167, 1
      %p171 = scmp.eq.s32.totalorder %s20, 15
      %p172 = scmp.ne.s32.totalorder %s167, %s169
      %p173 = scmp.eq.s32.totalorder %s20, 0
      %p174 = por %p172, %p173
      %p175 = scmp.ne.s32.totalorder %s167, %s169
      %p176 = scmp.eq.s32.totalorder %s25, 15
      %p177 = por %p175, %p176
      %p178 = scmp.ne.s32.totalorder %s169, %s170
      %p179 = scmp.eq.s32.totalorder %s25, 0
      %p180 = por %p178, %p179
      %p181 = scmp.ne.s32.totalorder %s169, %s170
      %p182 = scmp.eq.s32.totalorder %s26, 15
      %p183 = por %p181, %p182
      %p185 = scmp.ne.s32.totalorder %s170, %s184
      %p186 = scmp.eq.s32.totalorder %s26, 0
      %p187 = por %p185, %p186
      %s189 = sadd.s32 %s188, 1
      %p192 = scmp.eq.s32.totalorder %s20, 15
      %p193 = scmp.ne.s32.totalorder %s188, %s190
      %p194 = scmp.eq.s32.totalorder %s20, 0
      %p195 = por %p193, %p194
      %p196 = scmp.ne.s32.totalorder %s188, %s190
      %p197 = scmp.eq.s32.totalorder %s25, 15
      %p198 = por %p196, %p197
      %p199 = scmp.ne.s32.totalorder %s190, %s191
      %p200 = scmp.eq.s32.totalorder %s25, 0
      %p201 = por %p199, %p200
      %p202 = scmp.ne.s32.totalorder %s190, %s191
      %p203 = scmp.eq.s32.totalorder %s26, 15
      %p204 = por %p202, %p203
      %p206 = scmp.ne.s32.totalorder %s191, %s205
      %p207 = scmp.eq.s32.totalorder %s26, 0
      %p208 = por %p206, %p207
      %s209 = ssub.s32 %s27, %s39
      %p210 = scmp.eq.s32.totalorder %s209, 0
      %s212 = sadd.s32 %s211, 1
      %s213 = scalar_select %p210, %s211, %s212
      %p216 = pneg %p210
      %p217 = scmp.eq.s32.totalorder %s20, 15
      %p218 = por %p216, %p217
      %p219 = scmp.ne.s32.totalorder %s211, %s214
      %p220 = scmp.eq.s32.totalorder %s20, 0
      %p221 = por %p219, %p220
      %p222 = scmp.ne.s32.totalorder %s211, %s214
      %p223 = scmp.eq.s32.totalorder %s25, 15
      %p224 = por %p222, %p223
      %p225 = scmp.ne.s32.totalorder %s214, %s215
      %p226 = scmp.eq.s32.totalorder %s25, 0
      %p227 = por %p225, %p226
      %p228 = scmp.ne.s32.totalorder %s214, %s215
      %p229 = scmp.eq.s32.totalorder %s26, 15
      %p230 = por %p228, %p229
      %p232 = scmp.ne.s32.totalorder %s215, %s231
      %p233 = scmp.eq.s32.totalorder %s26, 0
      %p234 = por %p232, %p233
      %p235 = scmp.le.s32.totalorder 1, %s20
      %p236 = scmp.lt.s32.totalorder %s20, 17
      %p237 = pnand %p235, %p236
      %p238 = pneg %p237
      // Predicated region
      $region9: #{gat_forward.5} parent=5 // pred_check
        _
      $region10: #{gat_forward.5} parent=5 // pred_check_branch
        %240 = sbr.rel (%p237) target = $region12
      $region11: #{gat_forward.5} parent=5 // pred_region
        %s241 = ssub.s32 %s20, 1
        // Predicated region
        $region13: #{gat_forward.5} parent=11 // pred_check
          %p242 = pneg %p159
        $region14: #{gat_forward.5} parent=11 // pred_check_branch
          %244 = sbr.rel (%p242) target = $region16
        $region15: #{gat_forward.5} parent=11 // pred_region
          _
        $region16: #{gat_forward.5} parent=11 // pred_fallthru
          _
        // Predicated region
        $region17: #{gat_forward.5} parent=11 // pred_check
          %p245 = pneg %p180
        $region18: #{gat_forward.5} parent=11 // pred_check_branch
          %247 = sbr.rel (%p245) target = $region20
        $region19: #{gat_forward.5} parent=11 // pred_region
          _
        $region20: #{gat_forward.5} parent=11 // pred_fallthru
          _
        // Predicated region
        $region21: #{gat_forward.5} parent=11 // pred_check
          %p248 = pneg %p201
        $region22: #{gat_forward.5} parent=11 // pred_check_branch
          %250 = sbr.rel (%p248) target = $region24
        $region23: #{gat_forward.5} parent=11 // pred_region
          _
        $region24: #{gat_forward.5} parent=11 // pred_fallthru
          _
      $region12: #{gat_forward.5} parent=5 // pred_fallthru
        _
      %p251 = scmp.lt.s32.totalorder %s20, 16
      // Predicated region
      $region25: #{gat_forward.5} parent=5 // pred_check
        %p252 = pneg %p251
      $region26: #{gat_forward.5} parent=5 // pred_check_branch
        %254 = sbr.rel (%p252) target = $region28
      $region27: #{gat_forward.5} parent=5 // pred_region
        // Predicated region
        $region29: #{gat_forward.5} parent=27 // pred_check
          %p255 = pneg %p54
        $region30: #{gat_forward.5} parent=27 // pred_check_branch
          %257 = sbr.rel (%p255) target = $region32
        $region31: #{gat_forward.5} parent=27 // pred_region
          %s258 = sand.u32 %s44, 1
          %s259 = sand.u32 %s44, 1
          %s260 = smul.addr %s259, 32
          %s261 = scalar_lea.vmem [#allocation7], %s260
          %s262 = smul.u32 4, %s27
          %s263 = smul.addr %s262, 4
          %s264 = sadd.s32 %s28, %s263
          %s265 = smul.addr %s264, 8
          %s266 = scalar_lea.vmem %s1, %s265
          // Predicated region
          $region33: #{gat_forward.5} parent=31 // pred_check
            _
          $region34: #{gat_forward.5} parent=31 // pred_check_branch
            %268 = sbr.rel (0) target = $region36
          $region35: #{gat_forward.5} parent=31 // pred_region
            // Predicated region
            $region37: #{gat_forward.5} parent=35 // pred_check
              _
            $region38: #{gat_forward.5} parent=35 // pred_check_branch
              %270 = sbr.rel (0) target = $region40
            $region39: #{gat_forward.5} parent=35 // pred_region
              // Predicated region
              $region52: #{gat_forward.5} parent=39 // pred_check
                _
              $region53: #{gat_forward.5} parent=39 // pred_check_branch
                %292 = sbr.rel (0) target = $region55
              $region54: #{gat_forward.5} parent=39 // pred_region
                loop: start=0, step=1, limit=1
                $region56: #{gat_forward.5} parent=54 // loop_pre_header
                  _
                $region57: #{gat_forward.5} parent=54 // loop_header
                  %s294 = sphi 0, %s298
                  %p295 = scmp.ge.s32.totalorder %s294, 1
                  %s299 = sphi %s266, %s266
                  %s300 = sphi %s261, %s261
                $region58: #{gat_forward.5} parent=54 // loop_header_branch
                  %297 = sbr.rel (%p295) target = $region62
                $region59: #{gat_forward.5} parent=54 // loop_body
                  %v301 = vld [vmem:[%s299] sm:$0xff]
                  %302 = vst [vmem:[%s300] sm:$0xff] %v301
                  %v303 = vld [vmem:[%s299 + $0x20] sm:$0xff]
                  %304 = vst [vmem:[%s300 + $0x8] sm:$0xff] %v303
                  %v305 = vld [vmem:[%s299 + $0x40] sm:$0xff]
                  %306 = vst [vmem:[%s300 + $0x10] sm:$0xff] %v305
                  %v307 = vld [vmem:[%s299 + $0x60] sm:$0xff]
                  %308 = vst [vmem:[%s300 + $0x18] sm:$0xff] %v307
                $region60: #{gat_forward.5} parent=54 // loop_footer
                  %s298 = sadd.s32 1, %s294
                $region61: #{gat_forward.5} parent=54 // loop_footer_branch
                  %293 = sbr.rel target = $region57
                $region62: #{gat_forward.5} parent=54 // loop_exit
                  _
              $region55: #{gat_forward.5} parent=39 // pred_fallthru
                _
              // Predicated region
              $region63: #{gat_forward.5} parent=39 // pred_check
                _
              $region64: #{gat_forward.5} parent=39 // pred_check_branch
                %310 = sbr.rel target = $region66
              $region65: #{gat_forward.5} parent=39 // pred_region
                _
              $region66: #{gat_forward.5} parent=39 // pred_fallthru
                _
            $region40: #{gat_forward.5} parent=35 // pred_fallthru
              _
            // Predicated region
            $region41: #{gat_forward.5} parent=35 // pred_check
              _
            $region42: #{gat_forward.5} parent=35 // pred_check_branch
              %272 = sbr.rel target = $region44
            $region43: #{gat_forward.5} parent=35 // pred_region
              %s274 = ssub.s32 256, 1
              loop: start=0, step=1, limit=1
              $region45: #{gat_forward.5} parent=43 // loop_pre_header
                _
              $region46: #{gat_forward.5} parent=43 // loop_header
                %s276 = sphi 0, %s280
                %p277 = scmp.ge.s32.totalorder %s276, 1
                %s281 = sphi %s266, %s266
                %s282 = sphi %s261, %s261
              $region47: #{gat_forward.5} parent=43 // loop_header_branch
                %279 = sbr.rel (%p277) target = $region51
              $region48: #{gat_forward.5} parent=43 // loop_body
                %v283 = vld [vmem:[%s281] sm:%s274]
                %284 = vst [vmem:[%s282] sm:%s274] %v283
                %v285 = vld [vmem:[%s281 + $0x20] sm:%s274]
                %286 = vst [vmem:[%s282 + $0x8] sm:%s274] %v285
                %v287 = vld [vmem:[%s281 + $0x40] sm:%s274]
                %288 = vst [vmem:[%s282 + $0x10] sm:%s274] %v287
                %v289 = vld [vmem:[%s281 + $0x60] sm:%s274]
                %290 = vst [vmem:[%s282 + $0x18] sm:%s274] %v289
              $region49: #{gat_forward.5} parent=43 // loop_footer
                %s280 = sadd.s32 1, %s276
              $region50: #{gat_forward.5} parent=43 // loop_footer_branch
                %275 = sbr.rel target = $region46
              $region51: #{gat_forward.5} parent=43 // loop_exit
                _
            $region44: #{gat_forward.5} parent=35 // pred_fallthru
              _
          $region36: #{gat_forward.5} parent=31 // pred_fallthru
            _
          %311 = vnop
        $region32: #{gat_forward.5} parent=27 // pred_fallthru
          _
        // Predicated region
        $region67: #{gat_forward.5} parent=27 // pred_check
          %p312 = pneg %p80
        $region68: #{gat_forward.5} parent=27 // pred_check_branch
          %314 = sbr.rel (%p312) target = $region70
        $region69: #{gat_forward.5} parent=27 // pred_region
          %s315 = smul.u32 16, %s27
          %p316 = scmp.lt.s32.totalorder %s315, 63
          %s317 = scalar_select %p316, %s315, 63
          %s318 = smul.addr %s317, 8
          %s319 = scalar_lea.vmem %s2, %s318
          %s320 = smul.u32 16, %s27
        $region70: #{gat_forward.5} parent=27 // pred_fallthru
          _
        // Predicated region
        $region71: #{gat_forward.5} parent=27 // pred_check
          %p321 = pneg %p106
        $region72: #{gat_forward.5} parent=27 // pred_check_branch
          %323 = sbr.rel (%p321) target = $region74
        $region73: #{gat_forward.5} parent=27 // pred_region
          %p324 = scmp.lt.s32.totalorder %s28, 3
          %s325 = scalar_select %p324, %s28, 3
          %s326 = scalar_lea.vmem %s3, %s325
        $region74: #{gat_forward.5} parent=27 // pred_fallthru
          _
        // Predicated region
        $region75: #{gat_forward.5} parent=27 // pred_check
          %p327 = pneg %p132
        $region76: #{gat_forward.5} parent=27 // pred_check_branch
          %329 = sbr.rel (%p327) target = $region78
        $region77: #{gat_forward.5} parent=27 // pred_region
          %s330 = smul.u32 16, %s28
          %p331 = scmp.lt.s32.totalorder %s330, 63
          %s332 = scalar_select %p331, %s330, 63
          %s333 = smul.addr %s332, 2
          %s334 = smul.addr %s333, 4
          %s335 = scalar_lea.vmem %s4, %s334
          %s336 = smul.u32 16, %s28
        $region78: #{gat_forward.5} parent=27 // pred_fallthru
          _
      $region28: #{gat_forward.5} parent=5 // pred_fallthru
        _
      %p337 = scmp.le.s32.totalorder 1, %s20
      %p338 = scmp.lt.s32.totalorder %s20, 17
      %p339 = pnand %p337, %p338
      %p340 = pneg %p339
      // Predicated region
      $region79: #{gat_forward.5} parent=5 // pred_check
        _
      $region80: #{gat_forward.5} parent=5 // pred_check_branch
        %342 = sbr.rel (%p339) target = $region82
      $region81: #{gat_forward.5} parent=5 // pred_region
        %s343 = ssub.s32 %s20, 1
        %s344 = sand.u32 %s47, 1
        %s345 = sand.u32 %s47, 1
        %s346 = smul.addr %s345, 32
        %s347 = scalar_lea.vmem [#allocation7], %s346
        // Predicated region
        $region83: #{gat_forward.5} parent=81 // pred_check
          %p348 = pneg %p60
        $region84: #{gat_forward.5} parent=81 // pred_check_branch
          %350 = sbr.rel (%p348) target = $region86
        $region85: #{gat_forward.5} parent=81 // pred_region
          _
        $region86: #{gat_forward.5} parent=81 // pred_fallthru
          _
        %s351 = sand.u32 %s47, 1
        %s352 = sand.u32 %s47, 1
        %s353 = smul.addr %s352, 32
        %s354 = scalar_lea.vmem [#allocation7], %s353
        %p355 = pneg %p60
        %p356 = pneg %p57
        %s357 = smul.u32 16, %s29
        %p358 = scmp.lt.s32.totalorder %s357, 63
        %s359 = scalar_select %p358, %s357, 63
        %s360 = smul.addr %s359, 8
        %s361 = scalar_lea.vmem %s2, %s360
        %p362 = pneg %p86
        %p363 = pneg %p83
        %p364 = scmp.lt.s32.totalorder %s30, 3
        %s365 = scalar_select %p364, %s30, 3
        %s366 = scalar_lea.vmem %s3, %s365
        %p367 = pneg %p112
        %p368 = pneg %p109
        %s369 = smul.u32 16, %s30
        %p370 = scmp.lt.s32.totalorder %s369, 63
        %s371 = scalar_select %p370, %s369, 63
        %s372 = smul.addr %s371, 2
        %s373 = smul.addr %s372, 4
        %s374 = scalar_lea.vmem %s4, %s373
        %p375 = pneg %p138
        %p376 = pneg %p135
        %p377 = pneg %p159
        %p378 = pneg %p156
        %p379 = pneg %p180
        %p380 = pneg %p177
        %p381 = pneg %p201
        %p382 = pneg %p198
        %p383 = pneg %p227
        %p384 = pneg %p224
        %s385 = smul.u32 16, %s29
        %p386 = scmp.lt.s32.totalorder %s385, 63
        %s387 = scalar_select %p386, %s385, 63
        %s388 = smul.addr %s387, 8
        %s389 = scalar_lea.vmem %s8, %s388
        %s390 = smul.u32 4, %s29
        %s391 = smul.u32 16, %s29
        %p392 = scmp.lt.s32.totalorder %s391, 63
        %s393 = scalar_select %p392, %s391, 63
        %s394 = smul.addr %s393, 8
        %s395 = scalar_lea.vmem %s2, %s394
        %s396 = smul.u32 16, %s29
        %p397 = scmp.lt.s32.totalorder %s30, 3
        %s398 = scalar_select %p397, %s30, 3
        %s399 = scalar_lea.vmem %s3, %s398
        %s400 = smul.u32 16, %s30
        %p401 = scmp.lt.s32.totalorder %s400, 63
        %s402 = scalar_select %p401, %s400, 63
        %s403 = smul.addr %s402, 2
        %s404 = smul.addr %s403, 4
        %s405 = scalar_lea.vmem %s4, %s404
        %s406 = smul.u32 16, %s30
        %s407 = smul.u32 16, %s29
        %p408 = scmp.lt.s32.totalorder %s407, 63
        %s409 = scalar_select %p408, %s407, 63
        %s410 = smul.addr %s409, 8
        %s411 = scalar_lea.vmem %s8, %s410
        %s412 = smul.u32 16, %s29
        %p416 = scmp.eq.s32.totalorder %s30, 0
        // Predicated region
        $region87: #{gat_forward.5} parent=81 // pred_check
          %p417 = pneg %p416
        $region88: #{gat_forward.5} parent=81 // pred_check_branch
          %419 = sbr.rel (%p417) target = $region90
        $region89: #{gat_forward.5} parent=81 // pred_region
          %vm420 = vcmask 7168
          %421 = vst.msk [vmem:[#allocation2] sm:$0xff] %vm420, -1e+30
          %422 = vst.msk [vmem:[#allocation2 + $0x8] sm:$0xff] %vm420, -1e+30
          %423 = vst.msk [vmem:[#allocation2 + $0x10] sm:$0xff] %vm420, -1e+30
          %424 = vst.msk [vmem:[#allocation2 + $0x18] sm:$0xff] %vm420, -1e+30
          %425 = vst.msk [vmem:[#allocation2 + $0x20] sm:$0xff] %vm420, -1e+30
          %426 = vst.msk [vmem:[#allocation2 + $0x28] sm:$0xff] %vm420, -1e+30
          %427 = vst.msk [vmem:[#allocation2 + $0x30] sm:$0xff] %vm420, -1e+30
          %428 = vst.msk [vmem:[#allocation2 + $0x38] sm:$0xff] %vm420, -1e+30
          %429 = vst.msk [vmem:[#allocation2 + $0x40] sm:$0xff] %vm420, -1e+30
          %430 = vst.msk [vmem:[#allocation2 + $0x48] sm:$0xff] %vm420, -1e+30
          %431 = vst.msk [vmem:[#allocation2 + $0x50] sm:$0xff] %vm420, -1e+30
          %432 = vst.msk [vmem:[#allocation2 + $0x58] sm:$0xff] %vm420, -1e+30
          %433 = vst.msk [vmem:[#allocation2 + $0x60] sm:$0xff] %vm420, -1e+30
          %434 = vst.msk [vmem:[#allocation2 + $0x68] sm:$0xff] %vm420, -1e+30
          %435 = vst.msk [vmem:[#allocation2 + $0x70] sm:$0xff] %vm420, -1e+30
          %436 = vst.msk [vmem:[#allocation2 + $0x78] sm:$0xff] %vm420, -1e+30
          %437 = vst.msk [vmem:[#allocation3] sm:$0xff] %vm420, 0.0
          %438 = vst.msk [vmem:[#allocation3 + $0x8] sm:$0xff] %vm420, 0.0
          %439 = vst.msk [vmem:[#allocation3 + $0x10] sm:$0xff] %vm420, 0.0
          %440 = vst.msk [vmem:[#allocation3 + $0x18] sm:$0xff] %vm420, 0.0
          %441 = vst.msk [vmem:[#allocation3 + $0x20] sm:$0xff] %vm420, 0.0
          %442 = vst.msk [vmem:[#allocation3 + $0x28] sm:$0xff] %vm420, 0.0
          %443 = vst.msk [vmem:[#allocation3 + $0x30] sm:$0xff] %vm420, 0.0
          %444 = vst.msk [vmem:[#allocation3 + $0x38] sm:$0xff] %vm420, 0.0
          %445 = vst.msk [vmem:[#allocation3 + $0x40] sm:$0xff] %vm420, 0.0
          %446 = vst.msk [vmem:[#allocation3 + $0x48] sm:$0xff] %vm420, 0.0
          %447 = vst.msk [vmem:[#allocation3 + $0x50] sm:$0xff] %vm420, 0.0
          %448 = vst.msk [vmem:[#allocation3 + $0x58] sm:$0xff] %vm420, 0.0
          %449 = vst.msk [vmem:[#allocation3 + $0x60] sm:$0xff] %vm420, 0.0
          %450 = vst.msk [vmem:[#allocation3 + $0x68] sm:$0xff] %vm420, 0.0
          %451 = vst.msk [vmem:[#allocation3 + $0x70] sm:$0xff] %vm420, 0.0
          %452 = vst.msk [vmem:[#allocation3 + $0x78] sm:$0xff] %vm420, 0.0
          %453 = vst [vmem:[#allocation4] sm:$0xff] 0.0
          %454 = vst [vmem:[#allocation4 + $0x8] sm:$0xff] 0.0
          %455 = vst [vmem:[#allocation4 + $0x10] sm:$0xff] 0.0
          %456 = vst [vmem:[#allocation4 + $0x18] sm:$0xff] 0.0
          %457 = vst [vmem:[#allocation4 + $0x20] sm:$0xff] 0.0
          %458 = vst [vmem:[#allocation4 + $0x28] sm:$0xff] 0.0
          %459 = vst [vmem:[#allocation4 + $0x30] sm:$0xff] 0.0
          %460 = vst [vmem:[#allocation4 + $0x38] sm:$0xff] 0.0
          %461 = vst [vmem:[#allocation4 + $0x40] sm:$0xff] 0.0
          %462 = vst [vmem:[#allocation4 + $0x48] sm:$0xff] 0.0
          %463 = vst [vmem:[#allocation4 + $0x50] sm:$0xff] 0.0
          %464 = vst [vmem:[#allocation4 + $0x58] sm:$0xff] 0.0
          %465 = vst [vmem:[#allocation4 + $0x60] sm:$0xff] 0.0
          %466 = vst [vmem:[#allocation4 + $0x68] sm:$0xff] 0.0
          %467 = vst [vmem:[#allocation4 + $0x70] sm:$0xff] 0.0
          %468 = vst [vmem:[#allocation4 + $0x78] sm:$0xff] 0.0
          %469 = vst [vmem:[#allocation4 + $0x80] sm:$0xff] 0.0
          %470 = vst [vmem:[#allocation4 + $0x88] sm:$0xff] 0.0
          %471 = vst [vmem:[#allocation4 + $0x90] sm:$0xff] 0.0
          %472 = vst [vmem:[#allocation4 + $0x98] sm:$0xff] 0.0
          %473 = vst [vmem:[#allocation4 + $0xa0] sm:$0xff] 0.0
          %474 = vst [vmem:[#allocation4 + $0xa8] sm:$0xff] 0.0
          %475 = vst [vmem:[#allocation4 + $0xb0] sm:$0xff] 0.0
          %476 = vst [vmem:[#allocation4 + $0xb8] sm:$0xff] 0.0
          %477 = vst [vmem:[#allocation4 + $0xc0] sm:$0xff] 0.0
          %478 = vst [vmem:[#allocation4 + $0xc8] sm:$0xff] 0.0
          %479 = vst [vmem:[#allocation4 + $0xd0] sm:$0xff] 0.0
          %480 = vst [vmem:[#allocation4 + $0xd8] sm:$0xff] 0.0
          %481 = vst [vmem:[#allocation4 + $0xe0] sm:$0xff] 0.0
          %482 = vst [vmem:[#allocation4 + $0xe8] sm:$0xff] 0.0
          %483 = vst [vmem:[#allocation4 + $0xf0] sm:$0xff] 0.0
          %484 = vst [vmem:[#allocation4 + $0xf8] sm:$0xff] 0.0
        $region90: #{gat_forward.5} parent=81 // pred_fallthru
          _
        %s485 = smul.u32 %s29, 4
        %s486 = sadd.s32 %s485, %s30
        %s487 = sld [smem:[#allocation6 + %s486]]
        %p488 = scmp.ne.s32.totalorder %s487, 0
        // Predicated region
        $region91: #{gat_forward.5} parent=81 // pred_check
          %p489 = pneg %p488
        $region92: #{gat_forward.5} parent=81 // pred_check_branch
          %491 = sbr.rel (%p489) target = $region94
        $region93: #{gat_forward.5} parent=81 // pred_region
          %v492 = vld [vmem:[%s395] sm:$0xff]
          %v493 = vld [vmem:[%s395 + $0x8] sm:$0xff]
          %v494 = vld [vmem:[%s395 + $0x10] sm:$0xff]
          %v495 = vld [vmem:[%s395 + $0x18] sm:$0xff]
          %v496 = vld [vmem:[%s395 + $0x20] sm:$0xff]
          %v497 = vld [vmem:[%s395 + $0x28] sm:$0xff]
          %v498 = vld [vmem:[%s395 + $0x30] sm:$0xff]
          %v499 = vld [vmem:[%s395 + $0x38] sm:$0xff]
          %v500 = vld [vmem:[%s395 + $0x40] sm:$0xff]
          %v501 = vld [vmem:[%s395 + $0x48] sm:$0xff]
          %v502 = vld [vmem:[%s395 + $0x50] sm:$0xff]
          %v503 = vld [vmem:[%s395 + $0x58] sm:$0xff]
          %v504 = vld [vmem:[%s395 + $0x60] sm:$0xff]
          %v505 = vld [vmem:[%s395 + $0x68] sm:$0xff]
          %v506 = vld [vmem:[%s395 + $0x70] sm:$0xff]
          %v507 = vld [vmem:[%s395 + $0x78] sm:$0xff]
          %v508 = vld [vmem:[%s399] sm:$0x1]
          %510 = vset.pattern.permute.xlu0 0
          %511 = vperm.xlu0 %510, %v492
          %v512 = vpop.permute.xlu0 %511
          %515 = vset.pattern.permute.xlu0 0
          %516 = vperm.xlu0 %515, %v493
          %v517 = vpop.permute.xlu0 %516
          %520 = vset.pattern.permute.xlu0 0
          %521 = vperm.xlu0 %520, %v494
          %v522 = vpop.permute.xlu0 %521
          %525 = vset.pattern.permute.xlu0 0
          %526 = vperm.xlu0 %525, %v495
          %v527 = vpop.permute.xlu0 %526
          %530 = vset.pattern.permute.xlu0 0
          %531 = vperm.xlu0 %530, %v496
          %v532 = vpop.permute.xlu0 %531
          %535 = vset.pattern.permute.xlu0 0
          %536 = vperm.xlu0 %535, %v497
          %v537 = vpop.permute.xlu0 %536
          %540 = vset.pattern.permute.xlu0 0
          %541 = vperm.xlu0 %540, %v498
          %v542 = vpop.permute.xlu0 %541
          %545 = vset.pattern.permute.xlu0 0
          %546 = vperm.xlu0 %545, %v499
          %v547 = vpop.permute.xlu0 %546
          %550 = vset.pattern.permute.xlu0 0
          %551 = vperm.xlu0 %550, %v500
          %v552 = vpop.permute.xlu0 %551
          %555 = vset.pattern.permute.xlu0 0
          %556 = vperm.xlu0 %555, %v501
          %v557 = vpop.permute.xlu0 %556
          %560 = vset.pattern.permute.xlu0 0
          %561 = vperm.xlu0 %560, %v502
          %v562 = vpop.permute.xlu0 %561
          %565 = vset.pattern.permute.xlu0 0
          %566 = vperm.xlu0 %565, %v503
          %v567 = vpop.permute.xlu0 %566
          %570 = vset.pattern.permute.xlu0 0
          %571 = vperm.xlu0 %570, %v504
          %v572 = vpop.permute.xlu0 %571
          %575 = vset.pattern.permute.xlu0 0
          %576 = vperm.xlu0 %575, %v505
          %v577 = vpop.permute.xlu0 %576
          %580 = vset.pattern.permute.xlu0 0
          %581 = vperm.xlu0 %580, %v506
          %v582 = vpop.permute.xlu0 %581
          %585 = vset.pattern.permute.xlu0 0
          %586 = vperm.xlu0 %585, %v507
          %v587 = vpop.permute.xlu0 %586
          %v590 = vlaneseq
          %v591 = vshrl.u32 %v590, 7
          %v592 = vsub.s32 0, %v591
          %v593 = vrot.slane %v508, %v592
          %v595 = vadd.f32 %v512, %v593
          %v596 = vadd.f32 %v517, %v593
          %v597 = vadd.f32 %v522, %v593
          %v598 = vadd.f32 %v527, %v593
          %v599 = vadd.f32 %v532, %v593
          %v600 = vadd.f32 %v537, %v593
          %v601 = vadd.f32 %v542, %v593
          %v602 = vadd.f32 %v547, %v593
          %v603 = vadd.f32 %v552, %v593
          %v604 = vadd.f32 %v557, %v593
          %v605 = vadd.f32 %v562, %v593
          %v606 = vadd.f32 %v567, %v593
          %v607 = vadd.f32 %v572, %v593
          %v608 = vadd.f32 %v577, %v593
          %v609 = vadd.f32 %v582, %v593
          %v610 = vadd.f32 %v587, %v593
          %v611 = vmul.f32 %v595, 0.2
          %v612 = vmul.f32 %v596, 0.2
          %v613 = vmul.f32 %v597, 0.2
          %v614 = vmul.f32 %v598, 0.2
          %v615 = vmul.f32 %v599, 0.2
          %v616 = vmul.f32 %v600, 0.2
          %v617 = vmul.f32 %v601, 0.2
          %v618 = vmul.f32 %v602, 0.2
          %v619 = vmul.f32 %v603, 0.2
          %v620 = vmul.f32 %v604, 0.2
          %v621 = vmul.f32 %v605, 0.2
          %v622 = vmul.f32 %v606, 0.2
          %v623 = vmul.f32 %v607, 0.2
          %v624 = vmul.f32 %v608, 0.2
          %v625 = vmul.f32 %v609, 0.2
          %v626 = vmul.f32 %v610, 0.2
          %v627 = vmax.f32 %v595, %v611
          %v628 = vmax.f32 %v596, %v612
          %v629 = vmax.f32 %v597, %v613
          %v630 = vmax.f32 %v598, %v614
          %v631 = vmax.f32 %v599, %v615
          %v632 = vmax.f32 %v600, %v616
          %v633 = vmax.f32 %v601, %v617
          %v634 = vmax.f32 %v602, %v618
          %v635 = vmax.f32 %v603, %v619
          %v636 = vmax.f32 %v604, %v620
          %v637 = vmax.f32 %v605, %v621
          %v638 = vmax.f32 %v606, %v622
          %v639 = vmax.f32 %v607, %v623
          %v640 = vmax.f32 %v608, %v624
          %v641 = vmax.f32 %v609, %v625
          %v642 = vmax.f32 %v610, %v626
          %v643 = vld [vmem:[%s347] sm:$0xff]
          %v644 = vld [vmem:[%s347 + $0x8] sm:$0xff]
          %v645 = vld [vmem:[%s347 + $0x10] sm:$0xff]
          %v646 = vld [vmem:[%s347 + $0x18] sm:$0xff]
          %vm647 = vnez %v643
          %vm648 = vnez %v644
          %vm649 = vnez %v645
          %vm650 = vnez %v646
          %v651 = vsel %vm647, 16843009, 0
          %v652 = vsel %vm648, 16843009, 0
          %v653 = vsel %vm649, 16843009, 0
          %v654 = vsel %vm650, 16843009, 0
          %v655 = vunpack.c.0.s8 %v651
          %v656 = vunpack.c.1.s8 %v651
          %v657 = vunpack.c.2.s8 %v651
          %v658 = vunpack.c.3.s8 %v651
          %v659 = vunpack.c.0.s8 %v652
          %v660 = vunpack.c.1.s8 %v652
          %v661 = vunpack.c.2.s8 %v652
          %v662 = vunpack.c.3.s8 %v652
          %v663 = vunpack.c.0.s8 %v653
          %v664 = vunpack.c.1.s8 %v653
          %v665 = vunpack.c.2.s8 %v653
          %v666 = vunpack.c.3.s8 %v653
          %v667 = vunpack.c.0.s8 %v654
          %v668 = vunpack.c.1.s8 %v654
          %v669 = vunpack.c.2.s8 %v654
          %v670 = vunpack.c.3.s8 %v654
          %v671 = vpack.c.b16 %v655, %v655
          %v672 = vpack.c.b8 %v671, %v671
          %v673 = vpack.c.b16 %v656, %v656
          %v674 = vpack.c.b8 %v673, %v673
          %v675 = vpack.c.b16 %v657, %v657
          %v676 = vpack.c.b8 %v675, %v675
          %v677 = vpack.c.b16 %v658, %v658
          %v678 = vpack.c.b8 %v677, %v677
          %v679 = vpack.c.b16 %v659, %v659
          %v680 = vpack.c.b8 %v679, %v679
          %v681 = vpack.c.b16 %v660, %v660
          %v682 = vpack.c.b8 %v681, %v681
          %v683 = vpack.c.b16 %v661, %v661
          %v684 = vpack.c.b8 %v683, %v683
          %v685 = vpack.c.b16 %v662, %v662
          %v686 = vpack.c.b8 %v685, %v685
          %v687 = vpack.c.b16 %v663, %v663
          %v688 = vpack.c.b8 %v687, %v687
          %v689 = vpack.c.b16 %v664, %v664
          %v690 = vpack.c.b8 %v689, %v689
          %v691 = vpack.c.b16 %v665, %v665
          %v692 = vpack.c.b8 %v691, %v691
          %v693 = vpack.c.b16 %v666, %v666
          %v694 = vpack.c.b8 %v693, %v693
          %v695 = vpack.c.b16 %v667, %v667
          %v696 = vpack.c.b8 %v695, %v695
          %v697 = vpack.c.b16 %v668, %v668
          %v698 = vpack.c.b8 %v697, %v697
          %v699 = vpack.c.b16 %v669, %v669
          %v700 = vpack.c.b8 %v699, %v699
          %v701 = vpack.c.b16 %v670, %v670
          %v702 = vpack.c.b8 %v701, %v701
          %vm703 = vnez %v672
          %vm704 = vnez %v674
          %vm705 = vnez %v676
          %vm706 = vnez %v678
          %vm707 = vnez %v680
          %vm708 = vnez %v682
          %vm709 = vnez %v684
          %vm710 = vnez %v686
          %vm711 = vnez %v688
          %vm712 = vnez %v690
          %vm713 = vnez %v692
          %vm714 = vnez %v694
          %vm715 = vnez %v696
          %vm716 = vnez %v698
          %vm717 = vnez %v700
          %vm718 = vnez %v702
          %v719 = vsel %vm703, 16843009, 0
          %v720 = vsel %vm704, 16843009, 0
          %v721 = vsel %vm705, 16843009, 0
          %v722 = vsel %vm706, 16843009, 0
          %v723 = vsel %vm707, 16843009, 0
          %v724 = vsel %vm708, 16843009, 0
          %v725 = vsel %vm709, 16843009, 0
          %v726 = vsel %vm710, 16843009, 0
          %v727 = vsel %vm711, 16843009, 0
          %v728 = vsel %vm712, 16843009, 0
          %v729 = vsel %vm713, 16843009, 0
          %v730 = vsel %vm714, 16843009, 0
          %v731 = vsel %vm715, 16843009, 0
          %v732 = vsel %vm716, 16843009, 0
          %v733 = vsel %vm717, 16843009, 0
          %v734 = vsel %vm718, 16843009, 0
          %v735 = vunpack.c.0.s8 %v719
          %v736 = vunpack.c.0.s8 %v720
          %v737 = vunpack.c.0.s8 %v721
          %v738 = vunpack.c.0.s8 %v722
          %v739 = vunpack.c.0.s8 %v723
          %v740 = vunpack.c.0.s8 %v724
          %v741 = vunpack.c.0.s8 %v725
          %v742 = vunpack.c.0.s8 %v726
          %v743 = vunpack.c.0.s8 %v727
          %v744 = vunpack.c.0.s8 %v728
          %v745 = vunpack.c.0.s8 %v729
          %v746 = vunpack.c.0.s8 %v730
          %v747 = vunpack.c.0.s8 %v731
          %v748 = vunpack.c.0.s8 %v732
          %v749 = vunpack.c.0.s8 %v733
          %v750 = vunpack.c.0.s8 %v734
          %vm751 = vcmp.ne.s32.totalorder %v735, 0
          %vm752 = vcmp.ne.s32.totalorder %v736, 0
          %vm753 = vcmp.ne.s32.totalorder %v737, 0
          %vm754 = vcmp.ne.s32.totalorder %v738, 0
          %vm755 = vcmp.ne.s32.totalorder %v739, 0
          %vm756 = vcmp.ne.s32.totalorder %v740, 0
          %vm757 = vcmp.ne.s32.totalorder %v741, 0
          %vm758 = vcmp.ne.s32.totalorder %v742, 0
          %vm759 = vcmp.ne.s32.totalorder %v743, 0
          %vm760 = vcmp.ne.s32.totalorder %v744, 0
          %vm761 = vcmp.ne.s32.totalorder %v745, 0
          %vm762 = vcmp.ne.s32.totalorder %v746, 0
          %vm763 = vcmp.ne.s32.totalorder %v747, 0
          %vm764 = vcmp.ne.s32.totalorder %v748, 0
          %vm765 = vcmp.ne.s32.totalorder %v749, 0
          %vm766 = vcmp.ne.s32.totalorder %v750, 0
          %v767 = vsel %vm751, %v627, -1e+30
          %v768 = vsel %vm752, %v628, -1e+30
          %v769 = vsel %vm753, %v629, -1e+30
          %v770 = vsel %vm754, %v630, -1e+30
          %v771 = vsel %vm755, %v631, -1e+30
          %v772 = vsel %vm756, %v632, -1e+30
          %v773 = vsel %vm757, %v633, -1e+30
          %v774 = vsel %vm758, %v634, -1e+30
          %v775 = vsel %vm759, %v635, -1e+30
          %v776 = vsel %vm760, %v636, -1e+30
          %v777 = vsel %vm761, %v637, -1e+30
          %v778 = vsel %vm762, %v638, -1e+30
          %v779 = vsel %vm763, %v639, -1e+30
          %v780 = vsel %vm764, %v640, -1e+30
          %v781 = vsel %vm765, %v641, -1e+30
          %v782 = vsel %vm766, %v642, -1e+30
          %v783 = vld [vmem:[#allocation2] sm:$0xff]
          %v784 = vld [vmem:[#allocation2 + $0x8] sm:$0xff]
          %v785 = vld [vmem:[#allocation2 + $0x10] sm:$0xff]
          %v786 = vld [vmem:[#allocation2 + $0x18] sm:$0xff]
          %v787 = vld [vmem:[#allocation2 + $0x20] sm:$0xff]
          %v788 = vld [vmem:[#allocation2 + $0x28] sm:$0xff]
          %v789 = vld [vmem:[#allocation2 + $0x30] sm:$0xff]
          %v790 = vld [vmem:[#allocation2 + $0x38] sm:$0xff]
          %v791 = vld [vmem:[#allocation2 + $0x40] sm:$0xff]
          %v792 = vld [vmem:[#allocation2 + $0x48] sm:$0xff]
          %v793 = vld [vmem:[#allocation2 + $0x50] sm:$0xff]
          %v794 = vld [vmem:[#allocation2 + $0x58] sm:$0xff]
          %v795 = vld [vmem:[#allocation2 + $0x60] sm:$0xff]
          %v796 = vld [vmem:[#allocation2 + $0x68] sm:$0xff]
          %v797 = vld [vmem:[#allocation2 + $0x70] sm:$0xff]
          %v798 = vld [vmem:[#allocation2 + $0x78] sm:$0xff]
          %799 = vmax.xlane.f32.xlu0 %v767
          %v800 = vpop.xlane.xlu0 %799
          %801 = vmax.xlane.f32.xlu0 %v768
          %v802 = vpop.xlane.xlu0 %801
          %803 = vmax.xlane.f32.xlu0 %v769
          %v804 = vpop.xlane.xlu0 %803
          %805 = vmax.xlane.f32.xlu0 %v770
          %v806 = vpop.xlane.xlu0 %805
          %807 = vmax.xlane.f32.xlu0 %v771
          %v808 = vpop.xlane.xlu0 %807
          %809 = vmax.xlane.f32.xlu0 %v772
          %v810 = vpop.xlane.xlu0 %809
          %811 = vmax.xlane.f32.xlu0 %v773
          %v812 = vpop.xlane.xlu0 %811
          %813 = vmax.xlane.f32.xlu0 %v774
          %v814 = vpop.xlane.xlu0 %813
          %815 = vmax.xlane.f32.xlu0 %v775
          %v816 = vpop.xlane.xlu0 %815
          %817 = vmax.xlane.f32.xlu0 %v776
          %v818 = vpop.xlane.xlu0 %817
          %819 = vmax.xlane.f32.xlu0 %v777
          %v820 = vpop.xlane.xlu0 %819
          %821 = vmax.xlane.f32.xlu0 %v778
          %v822 = vpop.xlane.xlu0 %821
          %823 = vmax.xlane.f32.xlu0 %v779
          %v824 = vpop.xlane.xlu0 %823
          %825 = vmax.xlane.f32.xlu0 %v780
          %v826 = vpop.xlane.xlu0 %825
          %827 = vmax.xlane.f32.xlu0 %v781
          %v828 = vpop.xlane.xlu0 %827
          %829 = vmax.xlane.f32.xlu0 %v782
          %v830 = vpop.xlane.xlu0 %829
          %v831 = vmax.f32 %v783, %v800
          %v832 = vmax.f32 %v784, %v802
          %v833 = vmax.f32 %v785, %v804
          %v834 = vmax.f32 %v786, %v806
          %v835 = vmax.f32 %v787, %v808
          %v836 = vmax.f32 %v788, %v810
          %v837 = vmax.f32 %v789, %v812
          %v838 = vmax.f32 %v790, %v814
          %v839 = vmax.f32 %v791, %v816
          %v840 = vmax.f32 %v792, %v818
          %v841 = vmax.f32 %v793, %v820
          %v842 = vmax.f32 %v794, %v822
          %v843 = vmax.f32 %v795, %v824
          %v844 = vmax.f32 %v796, %v826
          %v845 = vmax.f32 %v797, %v828
          %v846 = vmax.f32 %v798, %v830
          %v847 = vsub.f32 %v783, %v831
          %v848 = vsub.f32 %v784, %v832
          %v849 = vsub.f32 %v785, %v833
          %v850 = vsub.f32 %v786, %v834
          %v851 = vsub.f32 %v787, %v835
          %v852 = vsub.f32 %v788, %v836
          %v853 = vsub.f32 %v789, %v837
          %v854 = vsub.f32 %v790, %v838
          %v855 = vsub.f32 %v791, %v839
          %v856 = vsub.f32 %v792, %v840
          %v857 = vsub.f32 %v793, %v841
          %v858 = vsub.f32 %v794, %v842
          %v859 = vsub.f32 %v795, %v843
          %v860 = vsub.f32 %v796, %v844
          %v861 = vsub.f32 %v797, %v845
          %v862 = vsub.f32 %v798, %v846
          %v863 = vmul.f32 %v847, 1.442695
          %v864 = vpow.pop %v863
          %v865 = vmul.f32 %v848, 1.442695
          %v866 = vpow.pop %v865
          %v867 = vmul.f32 %v849, 1.442695
          %v868 = vpow.pop %v867
          %v869 = vmul.f32 %v850, 1.442695
          %v870 = vpow.pop %v869
          %v871 = vmul.f32 %v851, 1.442695
          %v872 = vpow.pop %v871
          %v873 = vmul.f32 %v852, 1.442695
          %v874 = vpow.pop %v873
          %v875 = vmul.f32 %v853, 1.442695
          %v876 = vpow.pop %v875
          %v877 = vmul.f32 %v854, 1.442695
          %v878 = vpow.pop %v877
          %v879 = vmul.f32 %v855, 1.442695
          %v880 = vpow.pop %v879
          %v881 = vmul.f32 %v856, 1.442695
          %v882 = vpow.pop %v881
          %v883 = vmul.f32 %v857, 1.442695
          %v884 = vpow.pop %v883
          %v885 = vmul.f32 %v858, 1.442695
          %v886 = vpow.pop %v885
          %v887 = vmul.f32 %v859, 1.442695
          %v888 = vpow.pop %v887
          %v889 = vmul.f32 %v860, 1.442695
          %v890 = vpow.pop %v889
          %v891 = vmul.f32 %v861, 1.442695
          %v892 = vpow.pop %v891
          %v893 = vmul.f32 %v862, 1.442695
          %v894 = vpow.pop %v893
          %896 = vset.pattern.permute.xlu0 0
          %897 = vperm.xlu0 %896, %v831
          %v898 = vpop.permute.xlu0 %897
          %901 = vset.pattern.permute.xlu0 0
          %902 = vperm.xlu0 %901, %v832
          %v903 = vpop.permute.xlu0 %902
          %906 = vset.pattern.permute.xlu0 0
          %907 = vperm.xlu0 %906, %v833
          %v908 = vpop.permute.xlu0 %907
          %911 = vset.pattern.permute.xlu0 0
          %912 = vperm.xlu0 %911, %v834
          %v913 = vpop.permute.xlu0 %912
          %916 = vset.pattern.permute.xlu0 0
          %917 = vperm.xlu0 %916, %v835
          %v918 = vpop.permute.xlu0 %917
          %921 = vset.pattern.permute.xlu0 0
          %922 = vperm.xlu0 %921, %v836
          %v923 = vpop.permute.xlu0 %922
          %926 = vset.pattern.permute.xlu0 0
          %927 = vperm.xlu0 %926, %v837
          %v928 = vpop.permute.xlu0 %927
          %931 = vset.pattern.permute.xlu0 0
          %932 = vperm.xlu0 %931, %v838
          %v933 = vpop.permute.xlu0 %932
          %936 = vset.pattern.permute.xlu0 0
          %937 = vperm.xlu0 %936, %v839
          %v938 = vpop.permute.xlu0 %937
          %941 = vset.pattern.permute.xlu0 0
          %942 = vperm.xlu0 %941, %v840
          %v943 = vpop.permute.xlu0 %942
          %946 = vset.pattern.permute.xlu0 0
          %947 = vperm.xlu0 %946, %v841
          %v948 = vpop.permute.xlu0 %947
          %951 = vset.pattern.permute.xlu0 0
          %952 = vperm.xlu0 %951, %v842
          %v953 = vpop.permute.xlu0 %952
          %956 = vset.pattern.permute.xlu0 0
          %957 = vperm.xlu0 %956, %v843
          %v958 = vpop.permute.xlu0 %957
          %961 = vset.pattern.permute.xlu0 0
          %962 = vperm.xlu0 %961, %v844
          %v963 = vpop.permute.xlu0 %962
          %966 = vset.pattern.permute.xlu0 0
          %967 = vperm.xlu0 %966, %v845
          %v968 = vpop.permute.xlu0 %967
          %971 = vset.pattern.permute.xlu0 0
          %972 = vperm.xlu0 %971, %v846
          %v973 = vpop.permute.xlu0 %972
          %v975 = vsub.f32 %v767, %v898
          %v976 = vsub.f32 %v768, %v903
          %v977 = vsub.f32 %v769, %v908
          %v978 = vsub.f32 %v770, %v913
          %v979 = vsub.f32 %v771, %v918
          %v980 = vsub.f32 %v772, %v923
          %v981 = vsub.f32 %v773, %v928
          %v982 = vsub.f32 %v774, %v933
          %v983 = vsub.f32 %v775, %v938
          %v984 = vsub.f32 %v776, %v943
          %v985 = vsub.f32 %v777, %v948
          %v986 = vsub.f32 %v778, %v953
          %v987 = vsub.f32 %v779, %v958
          %v988 = vsub.f32 %v780, %v963
          %v989 = vsub.f32 %v781, %v968
          %v990 = vsub.f32 %v782, %v973
          %v991 = vmul.f32 %v975, 1.442695
          %v992 = vpow.pop %v991
          %v993 = vmul.f32 %v976, 1.442695
          %v994 = vpow.pop %v993
          %v995 = vmul.f32 %v977, 1.442695
          %v996 = vpow.pop %v995
          %v997 = vmul.f32 %v978, 1.442695
          %v998 = vpow.pop %v997
          %v999 = vmul.f32 %v979, 1.442695
          %v1000 = vpow.pop %v999
          %v1001 = vmul.f32 %v980, 1.442695
          %v1002 = vpow.pop %v1001
          %v1003 = vmul.f32 %v981, 1.442695
          %v1004 = vpow.pop %v1003
          %v1005 = vmul.f32 %v982, 1.442695
          %v1006 = vpow.pop %v1005
          %v1007 = vmul.f32 %v983, 1.442695
          %v1008 = vpow.pop %v1007
          %v1009 = vmul.f32 %v984, 1.442695
          %v1010 = vpow.pop %v1009
          %v1011 = vmul.f32 %v985, 1.442695
          %v1012 = vpow.pop %v1011
          %v1013 = vmul.f32 %v986, 1.442695
          %v1014 = vpow.pop %v1013
          %v1015 = vmul.f32 %v987, 1.442695
          %v1016 = vpow.pop %v1015
          %v1017 = vmul.f32 %v988, 1.442695
          %v1018 = vpow.pop %v1017
          %v1019 = vmul.f32 %v989, 1.442695
          %v1020 = vpow.pop %v1019
          %v1021 = vmul.f32 %v990, 1.442695
          %v1022 = vpow.pop %v1021
          %v1023 = vld [vmem:[#allocation3] sm:$0xff]
          %v1024 = vld [vmem:[#allocation3 + $0x8] sm:$0xff]
          %v1025 = vld [vmem:[#allocation3 + $0x10] sm:$0xff]
          %v1026 = vld [vmem:[#allocation3 + $0x18] sm:$0xff]
          %v1027 = vld [vmem:[#allocation3 + $0x20] sm:$0xff]
          %v1028 = vld [vmem:[#allocation3 + $0x28] sm:$0xff]
          %v1029 = vld [vmem:[#allocation3 + $0x30] sm:$0xff]
          %v1030 = vld [vmem:[#allocation3 + $0x38] sm:$0xff]
          %v1031 = vld [vmem:[#allocation3 + $0x40] sm:$0xff]
          %v1032 = vld [vmem:[#allocation3 + $0x48] sm:$0xff]
          %v1033 = vld [vmem:[#allocation3 + $0x50] sm:$0xff]
          %v1034 = vld [vmem:[#allocation3 + $0x58] sm:$0xff]
          %v1035 = vld [vmem:[#allocation3 + $0x60] sm:$0xff]
          %v1036 = vld [vmem:[#allocation3 + $0x68] sm:$0xff]
          %v1037 = vld [vmem:[#allocation3 + $0x70] sm:$0xff]
          %v1038 = vld [vmem:[#allocation3 + $0x78] sm:$0xff]
          %v1039 = vmul.f32 %v864, %v1023
          %v1040 = vmul.f32 %v866, %v1024
          %v1041 = vmul.f32 %v868, %v1025
          %v1042 = vmul.f32 %v870, %v1026
          %v1043 = vmul.f32 %v872, %v1027
          %v1044 = vmul.f32 %v874, %v1028
          %v1045 = vmul.f32 %v876, %v1029
          %v1046 = vmul.f32 %v878, %v1030
          %v1047 = vmul.f32 %v880, %v1031
          %v1048 = vmul.f32 %v882, %v1032
          %v1049 = vmul.f32 %v884, %v1033
          %v1050 = vmul.f32 %v886, %v1034
          %v1051 = vmul.f32 %v888, %v1035
          %v1052 = vmul.f32 %v890, %v1036
          %v1053 = vmul.f32 %v892, %v1037
          %v1054 = vmul.f32 %v894, %v1038
          %1055 = vadd.xlane.f32.xlu0 %v992
          %v1056 = vpop.xlane.xlu0 %1055
          %1057 = vadd.xlane.f32.xlu0 %v994
          %v1058 = vpop.xlane.xlu0 %1057
          %1059 = vadd.xlane.f32.xlu0 %v996
          %v1060 = vpop.xlane.xlu0 %1059
          %1061 = vadd.xlane.f32.xlu0 %v998
          %v1062 = vpop.xlane.xlu0 %1061
          %1063 = vadd.xlane.f32.xlu0 %v1000
          %v1064 = vpop.xlane.xlu0 %1063
          %1065 = vadd.xlane.f32.xlu0 %v1002
          %v1066 = vpop.xlane.xlu0 %1065
          %1067 = vadd.xlane.f32.xlu0 %v1004
          %v1068 = vpop.xlane.xlu0 %1067
          %1069 = vadd.xlane.f32.xlu0 %v1006
          %v1070 = vpop.xlane.xlu0 %1069
          %1071 = vadd.xlane.f32.xlu0 %v1008
          %v1072 = vpop.xlane.xlu0 %1071
          %1073 = vadd.xlane.f32.xlu0 %v1010
          %v1074 = vpop.xlane.xlu0 %1073
          %1075 = vadd.xlane.f32.xlu0 %v1012
          %v1076 = vpop.xlane.xlu0 %1075
          %1077 = vadd.xlane.f32.xlu0 %v1014
          %v1078 = vpop.xlane.xlu0 %1077
          %1079 = vadd.xlane.f32.xlu0 %v1016
          %v1080 = vpop.xlane.xlu0 %1079
          %1081 = vadd.xlane.f32.xlu0 %v1018
          %v1082 = vpop.xlane.xlu0 %1081
          %1083 = vadd.xlane.f32.xlu0 %v1020
          %v1084 = vpop.xlane.xlu0 %1083
          %1085 = vadd.xlane.f32.xlu0 %v1022
          %v1086 = vpop.xlane.xlu0 %1085
          %v1087 = vadd.f32 %v1039, %v1056
          %v1088 = vadd.f32 %v1040, %v1058
          %v1089 = vadd.f32 %v1041, %v1060
          %v1090 = vadd.f32 %v1042, %v1062
          %v1091 = vadd.f32 %v1043, %v1064
          %v1092 = vadd.f32 %v1044, %v1066
          %v1093 = vadd.f32 %v1045, %v1068
          %v1094 = vadd.f32 %v1046, %v1070
          %v1095 = vadd.f32 %v1047, %v1072
          %v1096 = vadd.f32 %v1048, %v1074
          %v1097 = vadd.f32 %v1049, %v1076
          %v1098 = vadd.f32 %v1050, %v1078
          %v1099 = vadd.f32 %v1051, %v1080
          %v1100 = vadd.f32 %v1052, %v1082
          %v1101 = vadd.f32 %v1053, %v1084
          %v1102 = vadd.f32 %v1054, %v1086
          %vm1103 = vcmask 7168
          %1104 = vst.msk [vmem:[#allocation3] sm:$0xff] %vm1103, %v1087
          %1105 = vst.msk [vmem:[#allocation3 + $0x8] sm:$0xff] %vm1103, %v1088
          %1106 = vst.msk [vmem:[#allocation3 + $0x10] sm:$0xff] %vm1103, %v1089
          %1107 = vst.msk [vmem:[#allocation3 + $0x18] sm:$0xff] %vm1103, %v1090
          %1108 = vst.msk [vmem:[#allocation3 + $0x20] sm:$0xff] %vm1103, %v1091
          %1109 = vst.msk [vmem:[#allocation3 + $0x28] sm:$0xff] %vm1103, %v1092
          %1110 = vst.msk [vmem:[#allocation3 + $0x30] sm:$0xff] %vm1103, %v1093
          %1111 = vst.msk [vmem:[#allocation3 + $0x38] sm:$0xff] %vm1103, %v1094
          %1112 = vst.msk [vmem:[#allocation3 + $0x40] sm:$0xff] %vm1103, %v1095
          %1113 = vst.msk [vmem:[#allocation3 + $0x48] sm:$0xff] %vm1103, %v1096
          %1114 = vst.msk [vmem:[#allocation3 + $0x50] sm:$0xff] %vm1103, %v1097
          %1115 = vst.msk [vmem:[#allocation3 + $0x58] sm:$0xff] %vm1103, %v1098
          %1116 = vst.msk [vmem:[#allocation3 + $0x60] sm:$0xff] %vm1103, %v1099
          %1117 = vst.msk [vmem:[#allocation3 + $0x68] sm:$0xff] %vm1103, %v1100
          %1118 = vst.msk [vmem:[#allocation3 + $0x70] sm:$0xff] %vm1103, %v1101
          %1119 = vst.msk [vmem:[#allocation3 + $0x78] sm:$0xff] %vm1103, %v1102
          %v1120 = vld [vmem:[#allocation4] sm:$0xff]
          %v1121 = vld [vmem:[#allocation4 + $0x8] sm:$0xff]
          %v1122 = vld [vmem:[#allocation4 + $0x10] sm:$0xff]
          %v1123 = vld [vmem:[#allocation4 + $0x18] sm:$0xff]
          %v1124 = vld [vmem:[#allocation4 + $0x20] sm:$0xff]
          %v1125 = vld [vmem:[#allocation4 + $0x28] sm:$0xff]
          %v1126 = vld [vmem:[#allocation4 + $0x30] sm:$0xff]
          %v1127 = vld [vmem:[#allocation4 + $0x38] sm:$0xff]
          %v1128 = vld [vmem:[#allocation4 + $0x40] sm:$0xff]
          %v1129 = vld [vmem:[#allocation4 + $0x48] sm:$0xff]
          %v1130 = vld [vmem:[#allocation4 + $0x50] sm:$0xff]
          %v1131 = vld [vmem:[#allocation4 + $0x58] sm:$0xff]
          %v1132 = vld [vmem:[#allocation4 + $0x60] sm:$0xff]
          %v1133 = vld [vmem:[#allocation4 + $0x68] sm:$0xff]
          %v1134 = vld [vmem:[#allocation4 + $0x70] sm:$0xff]
          %v1135 = vld [vmem:[#allocation4 + $0x78] sm:$0xff]
          %v1136 = vld [vmem:[#allocation4 + $0x80] sm:$0xff]
          %v1137 = vld [vmem:[#allocation4 + $0x88] sm:$0xff]
          %v1138 = vld [vmem:[#allocation4 + $0x90] sm:$0xff]
          %v1139 = vld [vmem:[#allocation4 + $0x98] sm:$0xff]
          %v1140 = vld [vmem:[#allocation4 + $0xa0] sm:$0xff]
          %v1141 = vld [vmem:[#allocation4 + $0xa8] sm:$0xff]
          %v1142 = vld [vmem:[#allocation4 + $0xb0] sm:$0xff]
          %v1143 = vld [vmem:[#allocation4 + $0xb8] sm:$0xff]
          %v1144 = vld [vmem:[#allocation4 + $0xc0] sm:$0xff]
          %v1145 = vld [vmem:[#allocation4 + $0xc8] sm:$0xff]
          %v1146 = vld [vmem:[#allocation4 + $0xd0] sm:$0xff]
          %v1147 = vld [vmem:[#allocation4 + $0xd8] sm:$0xff]
          %v1148 = vld [vmem:[#allocation4 + $0xe0] sm:$0xff]
          %v1149 = vld [vmem:[#allocation4 + $0xe8] sm:$0xff]
          %v1150 = vld [vmem:[#allocation4 + $0xf0] sm:$0xff]
          %v1151 = vld [vmem:[#allocation4 + $0xf8] sm:$0xff]
          %1153 = vset.pattern.permute.xlu0 0
          %1154 = vperm.xlu0 %1153, %v864
          %v1155 = vpop.permute.xlu0 %1154
          %1158 = vset.pattern.permute.xlu0 0
          %1159 = vperm.xlu0 %1158, %v866
          %v1160 = vpop.permute.xlu0 %1159
          %1163 = vset.pattern.permute.xlu0 0
          %1164 = vperm.xlu0 %1163, %v868
          %v1165 = vpop.permute.xlu0 %1164
          %1168 = vset.pattern.permute.xlu0 0
          %1169 = vperm.xlu0 %1168, %v870
          %v1170 = vpop.permute.xlu0 %1169
          %1173 = vset.pattern.permute.xlu0 0
          %1174 = vperm.xlu0 %1173, %v872
          %v1175 = vpop.permute.xlu0 %1174
          %1178 = vset.pattern.permute.xlu0 0
          %1179 = vperm.xlu0 %1178, %v874
          %v1180 = vpop.permute.xlu0 %1179
          %1183 = vset.pattern.permute.xlu0 0
          %1184 = vperm.xlu0 %1183, %v876
          %v1185 = vpop.permute.xlu0 %1184
          %1188 = vset.pattern.permute.xlu0 0
          %1189 = vperm.xlu0 %1188, %v878
          %v1190 = vpop.permute.xlu0 %1189
          %1193 = vset.pattern.permute.xlu0 0
          %1194 = vperm.xlu0 %1193, %v880
          %v1195 = vpop.permute.xlu0 %1194
          %1198 = vset.pattern.permute.xlu0 0
          %1199 = vperm.xlu0 %1198, %v882
          %v1200 = vpop.permute.xlu0 %1199
          %1203 = vset.pattern.permute.xlu0 0
          %1204 = vperm.xlu0 %1203, %v884
          %v1205 = vpop.permute.xlu0 %1204
          %1208 = vset.pattern.permute.xlu0 0
          %1209 = vperm.xlu0 %1208, %v886
          %v1210 = vpop.permute.xlu0 %1209
          %1213 = vset.pattern.permute.xlu0 0
          %1214 = vperm.xlu0 %1213, %v888
          %v1215 = vpop.permute.xlu0 %1214
          %1218 = vset.pattern.permute.xlu0 0
          %1219 = vperm.xlu0 %1218, %v890
          %v1220 = vpop.permute.xlu0 %1219
          %1223 = vset.pattern.permute.xlu0 0
          %1224 = vperm.xlu0 %1223, %v892
          %v1225 = vpop.permute.xlu0 %1224
          %1228 = vset.pattern.permute.xlu0 0
          %1229 = vperm.xlu0 %1228, %v894
          %v1230 = vpop.permute.xlu0 %1229
          %v1232 = vmul.f32 %v1155, %v1120
          %v1233 = vmul.f32 %v1155, %v1121
          %v1234 = vmul.f32 %v1160, %v1122
          %v1235 = vmul.f32 %v1160, %v1123
          %v1236 = vmul.f32 %v1165, %v1124
          %v1237 = vmul.f32 %v1165, %v1125
          %v1238 = vmul.f32 %v1170, %v1126
          %v1239 = vmul.f32 %v1170, %v1127
          %v1240 = vmul.f32 %v1175, %v1128
          %v1241 = vmul.f32 %v1175, %v1129
          %v1242 = vmul.f32 %v1180, %v1130
          %v1243 = vmul.f32 %v1180, %v1131
          %v1244 = vmul.f32 %v1185, %v1132
          %v1245 = vmul.f32 %v1185, %v1133
          %v1246 = vmul.f32 %v1190, %v1134
          %v1247 = vmul.f32 %v1190, %v1135
          %v1248 = vmul.f32 %v1195, %v1136
          %v1249 = vmul.f32 %v1195, %v1137
          %v1250 = vmul.f32 %v1200, %v1138
          %v1251 = vmul.f32 %v1200, %v1139
          %v1252 = vmul.f32 %v1205, %v1140
          %v1253 = vmul.f32 %v1205, %v1141
          %v1254 = vmul.f32 %v1210, %v1142
          %v1255 = vmul.f32 %v1210, %v1143
          %v1256 = vmul.f32 %v1215, %v1144
          %v1257 = vmul.f32 %v1215, %v1145
          %v1258 = vmul.f32 %v1220, %v1146
          %v1259 = vmul.f32 %v1220, %v1147
          %v1260 = vmul.f32 %v1225, %v1148
          %v1261 = vmul.f32 %v1225, %v1149
          %v1262 = vmul.f32 %v1230, %v1150
          %v1263 = vmul.f32 %v1230, %v1151
          %v1264 = vpack.c.bf16 %v994, %v992
          %v1265 = vpack.c.bf16 %v998, %v996
          %v1266 = vpack.c.bf16 %v1002, %v1000
          %v1267 = vpack.c.bf16 %v1006, %v1004
          %v1268 = vpack.c.bf16 %v1010, %v1008
          %v1269 = vpack.c.bf16 %v1014, %v1012
          %v1270 = vpack.c.bf16 %v1018, %v1016
          %v1271 = vpack.c.bf16 %v1022, %v1020
          %v1272 = vld [vmem:[%s405] sm:$0xff]
          %v1273 = vld [vmem:[%s405 + $0x8] sm:$0xff]
          %v1274 = vld [vmem:[%s405 + $0x10] sm:$0xff]
          %v1275 = vld [vmem:[%s405 + $0x18] sm:$0xff]
          %v1276 = vld [vmem:[%s405 + $0x20] sm:$0xff]
          %v1277 = vld [vmem:[%s405 + $0x28] sm:$0xff]
          %v1278 = vld [vmem:[%s405 + $0x30] sm:$0xff]
          %v1279 = vld [vmem:[%s405 + $0x38] sm:$0xff]
          %v1280 = vld [vmem:[%s405 + $0x40] sm:$0xff]
          %v1281 = vld [vmem:[%s405 + $0x48] sm:$0xff]
          %v1282 = vld [vmem:[%s405 + $0x50] sm:$0xff]
          %v1283 = vld [vmem:[%s405 + $0x58] sm:$0xff]
          %v1284 = vld [vmem:[%s405 + $0x60] sm:$0xff]
          %v1285 = vld [vmem:[%s405 + $0x68] sm:$0xff]
          %v1286 = vld [vmem:[%s405 + $0x70] sm:$0xff]
          %v1287 = vld [vmem:[%s405 + $0x78] sm:$0xff]
          %v1304 = vunpack.c.l.b16 %v1272
          %v1305 = vunpack.c.h.b16 %v1272
          %v1306 = vunpack.c.l.b16 %v1273
          %v1307 = vunpack.c.h.b16 %v1273
          %v1308 = vunpack.c.l.b16 %v1274
          %v1309 = vunpack.c.h.b16 %v1274
          %v1310 = vunpack.c.l.b16 %v1275
          %v1311 = vunpack.c.h.b16 %v1275
          %v1312 = vunpack.c.l.b16 %v1276
          %v1313 = vunpack.c.h.b16 %v1276
          %v1314 = vunpack.c.l.b16 %v1277
          %v1315 = vunpack.c.h.b16 %v1277
          %v1316 = vunpack.c.l.b16 %v1278
          %v1317 = vunpack.c.h.b16 %v1278
          %v1318 = vunpack.c.l.b16 %v1279
          %v1319 = vunpack.c.h.b16 %v1279
          %v1320 = vunpack.c.l.b16 %v1280
          %v1321 = vunpack.c.h.b16 %v1280
          %v1322 = vunpack.c.l.b16 %v1281
          %v1323 = vunpack.c.h.b16 %v1281
          %v1324 = vunpack.c.l.b16 %v1282
          %v1325 = vunpack.c.h.b16 %v1282
          %v1326 = vunpack.c.l.b16 %v1283
          %v1327 = vunpack.c.h.b16 %v1283
          %v1328 = vunpack.c.l.b16 %v1284
          %v1329 = vunpack.c.h.b16 %v1284
          %v1330 = vunpack.c.l.b16 %v1285
          %v1331 = vunpack.c.h.b16 %v1285
          %v1332 = vunpack.c.l.b16 %v1286
          %v1333 = vunpack.c.h.b16 %v1286
          %v1334 = vunpack.c.l.b16 %v1287
          %v1335 = vunpack.c.h.b16 %v1287
          %v1336 = vpack.c.b16 %v1306, %v1304
          %v1337 = vpack.c.b16 %v1307, %v1305
          %v1338 = vpack.c.b16 %v1310, %v1308
          %v1339 = vpack.c.b16 %v1311, %v1309
          %v1340 = vpack.c.b16 %v1314, %v1312
          %v1341 = vpack.c.b16 %v1315, %v1313
          %v1342 = vpack.c.b16 %v1318, %v1316
          %v1343 = vpack.c.b16 %v1319, %v1317
          %v1344 = vpack.c.b16 %v1322, %v1320
          %v1345 = vpack.c.b16 %v1323, %v1321
          %v1346 = vpack.c.b16 %v1326, %v1324
          %v1347 = vpack.c.b16 %v1327, %v1325
          %v1348 = vpack.c.b16 %v1330, %v1328
          %v1349 = vpack.c.b16 %v1331, %v1329
          %v1350 = vpack.c.b16 %v1334, %v1332
          %v1351 = vpack.c.b16 %v1335, %v1333
          %1368 = vmatprep.subr.bf16.mxu0 %v1351
          %1369 = vmatpush1.bf16.msra.mxu0 %v1350
          %1370 = vmatprep.subr.bf16.mxu0 %v1349
          %1371 = vmatpush1.bf16.msra.mxu0 %v1348
          %1372 = vmatprep.subr.bf16.mxu0 %v1347
          %1373 = vmatpush1.bf16.msra.mxu0 %v1346
          %1374 = vmatprep.subr.bf16.mxu0 %v1345
          %1375 = vmatpush1.bf16.msra.mxu0 %v1344
          %1376 = vmatprep.subr.bf16.mxu0 %v1343
          %1377 = vmatpush1.bf16.msra.mxu0 %v1342
          %1378 = vmatprep.subr.bf16.mxu0 %v1341
          %1379 = vmatpush1.bf16.msra.mxu0 %v1340
          %1380 = vmatprep.subr.bf16.mxu0 %v1339
          %1381 = vmatpush1.bf16.msra.mxu0 %v1338
          %1382 = vmatprep.subr.bf16.mxu0 %v1337
          %1383 = vmatpush1.bf16.msra.mxu0 %v1336
          %1384 = vmatprep.subr.bf16.mxu0 0
          %1385 = vmatpush2.bf16.msra.mxu0 0
          %1386 = vmatprep.subr.bf16.mxu0 0
          %1387 = vmatpush2.bf16.msra.mxu0 0
          %1388 = vmatprep.subr.bf16.mxu0 0
          %1389 = vmatpush2.bf16.msra.mxu0 0
          %1390 = vmatprep.subr.bf16.mxu0 0
          %1391 = vmatpush2.bf16.msra.mxu0 0
          %1392 = vmatprep.subr.bf16.mxu0 0
          %1393 = vmatpush2.bf16.msra.mxu0 0
          %1394 = vmatprep.subr.bf16.mxu0 0
          %1395 = vmatpush2.bf16.msra.mxu0 0
          %1396 = vmatprep.subr.bf16.mxu0 0
          %1397 = vmatpush2.bf16.msra.mxu0 0
          %1398 = vmatprep.subr.bf16.mxu0 0
          %1399 = vmatpush2.bf16.msra.mxu0 0
          %1400 = vmatprep.mubr.bf16.mxu0 0
          %1401 = vmatmul.mubr.bf16.gmra.mxu0 %v1264
          %v1402 = vpop.f32.mrf.mxu0
          %v1403 = vadd.f32 0.0, %v1402
          %v1404 = vpop.f32.mrf.mxu0
          %v1405 = vadd.f32 0.0, %v1404
          %v1406 = vpop.f32.mrf.mxu0
          %v1407 = vadd.f32 0.0, %v1406
          %v1408 = vpop.f32.mrf.mxu0
          %v1409 = vadd.f32 0.0, %v1408
          %1410 = vmatprep.mubr.bf16.mxu0 0
          %1411 = vmatmul.mubr.bf16.gmra.mxu0 %v1265
          %v1412 = vpop.f32.mrf.mxu0
          %v1413 = vadd.f32 0.0, %v1412
          %v1414 = vpop.f32.mrf.mxu0
          %v1415 = vadd.f32 0.0, %v1414
          %v1416 = vpop.f32.mrf.mxu0
          %v1417 = vadd.f32 0.0, %v1416
          %v1418 = vpop.f32.mrf.mxu0
          %v1419 = vadd.f32 0.0, %v1418
          %1420 = vmatprep.mubr.bf16.mxu0 0
          %1421 = vmatmul.mubr.bf16.gmra.mxu0 %v1266
          %v1422 = vpop.f32.mrf.mxu0
          %v1423 = vadd.f32 0.0, %v1422
          %v1424 = vpop.f32.mrf.mxu0
          %v1425 = vadd.f32 0.0, %v1424
          %v1426 = vpop.f32.mrf.mxu0
          %v1427 = vadd.f32 0.0, %v1426
          %v1428 = vpop.f32.mrf.mxu0
          %v1429 = vadd.f32 0.0, %v1428
          %1430 = vmatprep.mubr.bf16.mxu0 0
          %1431 = vmatmul.mubr.bf16.gmra.mxu0 %v1267
          %v1432 = vpop.f32.mrf.mxu0
          %v1433 = vadd.f32 0.0, %v1432
          %v1434 = vpop.f32.mrf.mxu0
          %v1435 = vadd.f32 0.0, %v1434
          %v1436 = vpop.f32.mrf.mxu0
          %v1437 = vadd.f32 0.0, %v1436
          %v1438 = vpop.f32.mrf.mxu0
          %v1439 = vadd.f32 0.0, %v1438
          %1440 = vmatprep.mubr.bf16.mxu0 0
          %1441 = vmatmul.mubr.bf16.gmra.mxu0 %v1268
          %v1442 = vpop.f32.mrf.mxu0
          %v1443 = vadd.f32 0.0, %v1442
          %v1444 = vpop.f32.mrf.mxu0
          %v1445 = vadd.f32 0.0, %v1444
          %v1446 = vpop.f32.mrf.mxu0
          %v1447 = vadd.f32 0.0, %v1446
          %v1448 = vpop.f32.mrf.mxu0
          %v1449 = vadd.f32 0.0, %v1448
          %1450 = vmatprep.mubr.bf16.mxu0 0
          %1451 = vmatmul.mubr.bf16.gmra.mxu0 %v1269
          %v1452 = vpop.f32.mrf.mxu0
          %v1453 = vadd.f32 0.0, %v1452
          %v1454 = vpop.f32.mrf.mxu0
          %v1455 = vadd.f32 0.0, %v1454
          %v1456 = vpop.f32.mrf.mxu0
          %v1457 = vadd.f32 0.0, %v1456
          %v1458 = vpop.f32.mrf.mxu0
          %v1459 = vadd.f32 0.0, %v1458
          %1460 = vmatprep.mubr.bf16.mxu0 0
          %1461 = vmatmul.mubr.bf16.gmra.mxu0 %v1270
          %v1462 = vpop.f32.mrf.mxu0
          %v1463 = vadd.f32 0.0, %v1462
          %v1464 = vpop.f32.mrf.mxu0
          %v1465 = vadd.f32 0.0, %v1464
          %v1466 = vpop.f32.mrf.mxu0
          %v1467 = vadd.f32 0.0, %v1466
          %v1468 = vpop.f32.mrf.mxu0
          %v1469 = vadd.f32 0.0, %v1468
          %1470 = vmatprep.mubr.bf16.mxu0 0
          %1471 = vmatmul.mubr.bf16.gmra.mxu0 %v1271
          %v1472 = vpop.f32.mrf.mxu0
          %v1473 = vadd.f32 0.0, %v1472
          %v1474 = vpop.f32.mrf.mxu0
          %v1475 = vadd.f32 0.0, %v1474
          %v1476 = vpop.f32.mrf.mxu0
          %v1477 = vadd.f32 0.0, %v1476
          %v1478 = vpop.f32.mrf.mxu0
          %v1479 = vadd.f32 0.0, %v1478
          %1480 = vdwg.mxu0
          %v1481 = vadd.f32 %v1232, %v1403
          %v1482 = vadd.f32 %v1233, %v1405
          %v1483 = vadd.f32 %v1234, %v1407
          %v1484 = vadd.f32 %v1235, %v1409
          %v1485 = vadd.f32 %v1236, %v1413
          %v1486 = vadd.f32 %v1237, %v1415
          %v1487 = vadd.f32 %v1238, %v1417
          %v1488 = vadd.f32 %v1239, %v1419
          %v1489 = vadd.f32 %v1240, %v1423
          %v1490 = vadd.f32 %v1241, %v1425
          %v1491 = vadd.f32 %v1242, %v1427
          %v1492 = vadd.f32 %v1243, %v1429
          %v1493 = vadd.f32 %v1244, %v1433
          %v1494 = vadd.f32 %v1245, %v1435
          %v1495 = vadd.f32 %v1246, %v1437
          %v1496 = vadd.f32 %v1247, %v1439
          %v1497 = vadd.f32 %v1248, %v1443
          %v1498 = vadd.f32 %v1249, %v1445
          %v1499 = vadd.f32 %v1250, %v1447
          %v1500 = vadd.f32 %v1251, %v1449
          %v1501 = vadd.f32 %v1252, %v1453
          %v1502 = vadd.f32 %v1253, %v1455
          %v1503 = vadd.f32 %v1254, %v1457
          %v1504 = vadd.f32 %v1255, %v1459
          %v1505 = vadd.f32 %v1256, %v1463
          %v1506 = vadd.f32 %v1257, %v1465
          %v1507 = vadd.f32 %v1258, %v1467
          %v1508 = vadd.f32 %v1259, %v1469
          %v1509 = vadd.f32 %v1260, %v1473
          %v1510 = vadd.f32 %v1261, %v1475
          %v1511 = vadd.f32 %v1262, %v1477
          %v1512 = vadd.f32 %v1263, %v1479
          %1513 = vst [vmem:[#allocation4] sm:$0xff] %v1481
          %1514 = vst [vmem:[#allocation4 + $0x8] sm:$0xff] %v1482
          %1515 = vst [vmem:[#allocation4 + $0x10] sm:$0xff] %v1483
          %1516 = vst [vmem:[#allocation4 + $0x18] sm:$0xff] %v1484
          %1517 = vst [vmem:[#allocation4 + $0x20] sm:$0xff] %v1485
          %1518 = vst [vmem:[#allocation4 + $0x28] sm:$0xff] %v1486
          %1519 = vst [vmem:[#allocation4 + $0x30] sm:$0xff] %v1487
          %1520 = vst [vmem:[#allocation4 + $0x38] sm:$0xff] %v1488
          %1521 = vst [vmem:[#allocation4 + $0x40] sm:$0xff] %v1489
          %1522 = vst [vmem:[#allocation4 + $0x48] sm:$0xff] %v1490
          %1523 = vst [vmem:[#allocation4 + $0x50] sm:$0xff] %v1491
          %1524 = vst [vmem:[#allocation4 + $0x58] sm:$0xff] %v1492
          %1525 = vst [vmem:[#allocation4 + $0x60] sm:$0xff] %v1493
          %1526 = vst [vmem:[#allocation4 + $0x68] sm:$0xff] %v1494
          %1527 = vst [vmem:[#allocation4 + $0x70] sm:$0xff] %v1495
          %1528 = vst [vmem:[#allocation4 + $0x78] sm:$0xff] %v1496
          %1529 = vst [vmem:[#allocation4 + $0x80] sm:$0xff] %v1497
          %1530 = vst [vmem:[#allocation4 + $0x88] sm:$0xff] %v1498
          %1531 = vst [vmem:[#allocation4 + $0x90] sm:$0xff] %v1499
          %1532 = vst [vmem:[#allocation4 + $0x98] sm:$0xff] %v1500
          %1533 = vst [vmem:[#allocation4 + $0xa0] sm:$0xff] %v1501
          %1534 = vst [vmem:[#allocation4 + $0xa8] sm:$0xff] %v1502
          %1535 = vst [vmem:[#allocation4 + $0xb0] sm:$0xff] %v1503
          %1536 = vst [vmem:[#allocation4 + $0xb8] sm:$0xff] %v1504
          %1537 = vst [vmem:[#allocation4 + $0xc0] sm:$0xff] %v1505
          %1538 = vst [vmem:[#allocation4 + $0xc8] sm:$0xff] %v1506
          %1539 = vst [vmem:[#allocation4 + $0xd0] sm:$0xff] %v1507
          %1540 = vst [vmem:[#allocation4 + $0xd8] sm:$0xff] %v1508
          %1541 = vst [vmem:[#allocation4 + $0xe0] sm:$0xff] %v1509
          %1542 = vst [vmem:[#allocation4 + $0xe8] sm:$0xff] %v1510
          %1543 = vst [vmem:[#allocation4 + $0xf0] sm:$0xff] %v1511
          %1544 = vst [vmem:[#allocation4 + $0xf8] sm:$0xff] %v1512
          %1545 = vst.msk [vmem:[#allocation2] sm:$0xff] %vm1103, %v831
          %1546 = vst.msk [vmem:[#allocation2 + $0x8] sm:$0xff] %vm1103, %v832
          %1547 = vst.msk [vmem:[#allocation2 + $0x10] sm:$0xff] %vm1103, %v833
          %1548 = vst.msk [vmem:[#allocation2 + $0x18] sm:$0xff] %vm1103, %v834
          %1549 = vst.msk [vmem:[#allocation2 + $0x20] sm:$0xff] %vm1103, %v835
          %1550 = vst.msk [vmem:[#allocation2 + $0x28] sm:$0xff] %vm1103, %v836
          %1551 = vst.msk [vmem:[#allocation2 + $0x30] sm:$0xff] %vm1103, %v837
          %1552 = vst.msk [vmem:[#allocation2 + $0x38] sm:$0xff] %vm1103, %v838
          %1553 = vst.msk [vmem:[#allocation2 + $0x40] sm:$0xff] %vm1103, %v839
          %1554 = vst.msk [vmem:[#allocation2 + $0x48] sm:$0xff] %vm1103, %v840
          %1555 = vst.msk [vmem:[#allocation2 + $0x50] sm:$0xff] %vm1103, %v841
          %1556 = vst.msk [vmem:[#allocation2 + $0x58] sm:$0xff] %vm1103, %v842
          %1557 = vst.msk [vmem:[#allocation2 + $0x60] sm:$0xff] %vm1103, %v843
          %1558 = vst.msk [vmem:[#allocation2 + $0x68] sm:$0xff] %vm1103, %v844
          %1559 = vst.msk [vmem:[#allocation2 + $0x70] sm:$0xff] %vm1103, %v845
          %1560 = vst.msk [vmem:[#allocation2 + $0x78] sm:$0xff] %vm1103, %v846
        $region94: #{gat_forward.5} parent=81 // pred_fallthru
          _
        %p1561 = scmp.eq.s32.totalorder %s30, 3
        // Predicated region
        $region95: #{gat_forward.5} parent=81 // pred_check
          %p1562 = pneg %p1561
        $region96: #{gat_forward.5} parent=81 // pred_check_branch
          %1564 = sbr.rel (%p1562) target = $region98
        $region97: #{gat_forward.5} parent=81 // pred_region
          %v1565 = vld [vmem:[#allocation4] sm:$0xff]
          %v1566 = vld [vmem:[#allocation4 + $0x8] sm:$0xff]
          %v1567 = vld [vmem:[#allocation4 + $0x10] sm:$0xff]
          %v1568 = vld [vmem:[#allocation4 + $0x18] sm:$0xff]
          %v1569 = vld [vmem:[#allocation4 + $0x20] sm:$0xff]
          %v1570 = vld [vmem:[#allocation4 + $0x28] sm:$0xff]
          %v1571 = vld [vmem:[#allocation4 + $0x30] sm:$0xff]
          %v1572 = vld [vmem:[#allocation4 + $0x38] sm:$0xff]
          %v1573 = vld [vmem:[#allocation4 + $0x40] sm:$0xff]
          %v1574 = vld [vmem:[#allocation4 + $0x48] sm:$0xff]
          %v1575 = vld [vmem:[#allocation4 + $0x50] sm:$0xff]
          %v1576 = vld [vmem:[#allocation4 + $0x58] sm:$0xff]
          %v1577 = vld [vmem:[#allocation4 + $0x60] sm:$0xff]
          %v1578 = vld [vmem:[#allocation4 + $0x68] sm:$0xff]
          %v1579 = vld [vmem:[#allocation4 + $0x70] sm:$0xff]
          %v1580 = vld [vmem:[#allocation4 + $0x78] sm:$0xff]
          %v1581 = vld [vmem:[#allocation4 + $0x80] sm:$0xff]
          %v1582 = vld [vmem:[#allocation4 + $0x88] sm:$0xff]
          %v1583 = vld [vmem:[#allocation4 + $0x90] sm:$0xff]
          %v1584 = vld [vmem:[#allocation4 + $0x98] sm:$0xff]
          %v1585 = vld [vmem:[#allocation4 + $0xa0] sm:$0xff]
          %v1586 = vld [vmem:[#allocation4 + $0xa8] sm:$0xff]
          %v1587 = vld [vmem:[#allocation4 + $0xb0] sm:$0xff]
          %v1588 = vld [vmem:[#allocation4 + $0xb8] sm:$0xff]
          %v1589 = vld [vmem:[#allocation4 + $0xc0] sm:$0xff]
          %v1590 = vld [vmem:[#allocation4 + $0xc8] sm:$0xff]
          %v1591 = vld [vmem:[#allocation4 + $0xd0] sm:$0xff]
          %v1592 = vld [vmem:[#allocation4 + $0xd8] sm:$0xff]
          %v1593 = vld [vmem:[#allocation4 + $0xe0] sm:$0xff]
          %v1594 = vld [vmem:[#allocation4 + $0xe8] sm:$0xff]
          %v1595 = vld [vmem:[#allocation4 + $0xf0] sm:$0xff]
          %v1596 = vld [vmem:[#allocation4 + $0xf8] sm:$0xff]
          %v1597 = vld [vmem:[#allocation3] sm:$0xff]
          %v1598 = vld [vmem:[#allocation3 + $0x8] sm:$0xff]
          %v1599 = vld [vmem:[#allocation3 + $0x10] sm:$0xff]
          %v1600 = vld [vmem:[#allocation3 + $0x18] sm:$0xff]
          %v1601 = vld [vmem:[#allocation3 + $0x20] sm:$0xff]
          %v1602 = vld [vmem:[#allocation3 + $0x28] sm:$0xff]
          %v1603 = vld [vmem:[#allocation3 + $0x30] sm:$0xff]
          %v1604 = vld [vmem:[#allocation3 + $0x38] sm:$0xff]
          %v1605 = vld [vmem:[#allocation3 + $0x40] sm:$0xff]
          %v1606 = vld [vmem:[#allocation3 + $0x48] sm:$0xff]
          %v1607 = vld [vmem:[#allocation3 + $0x50] sm:$0xff]
          %v1608 = vld [vmem:[#allocation3 + $0x58] sm:$0xff]
          %v1609 = vld [vmem:[#allocation3 + $0x60] sm:$0xff]
          %v1610 = vld [vmem:[#allocation3 + $0x68] sm:$0xff]
          %v1611 = vld [vmem:[#allocation3 + $0x70] sm:$0xff]
          %v1612 = vld [vmem:[#allocation3 + $0x78] sm:$0xff]
          %1614 = vset.pattern.permute.xlu0 0
          %1615 = vperm.xlu0 %1614, %v1597
          %v1616 = vpop.permute.xlu0 %1615
          %1619 = vset.pattern.permute.xlu0 0
          %1620 = vperm.xlu0 %1619, %v1598
          %v1621 = vpop.permute.xlu0 %1620
          %1624 = vset.pattern.permute.xlu0 0
          %1625 = vperm.xlu0 %1624, %v1599
          %v1626 = vpop.permute.xlu0 %1625
          %1629 = vset.pattern.permute.xlu0 0
          %1630 = vperm.xlu0 %1629, %v1600
          %v1631 = vpop.permute.xlu0 %1630
          %1634 = vset.pattern.permute.xlu0 0
          %1635 = vperm.xlu0 %1634, %v1601
          %v1636 = vpop.permute.xlu0 %1635
          %1639 = vset.pattern.permute.xlu0 0
          %1640 = vperm.xlu0 %1639, %v1602
          %v1641 = vpop.permute.xlu0 %1640
          %1644 = vset.pattern.permute.xlu0 0
          %1645 = vperm.xlu0 %1644, %v1603
          %v1646 = vpop.permute.xlu0 %1645
          %1649 = vset.pattern.permute.xlu0 0
          %1650 = vperm.xlu0 %1649, %v1604
          %v1651 = vpop.permute.xlu0 %1650
          %1654 = vset.pattern.permute.xlu0 0
          %1655 = vperm.xlu0 %1654, %v1605
          %v1656 = vpop.permute.xlu0 %1655
          %1659 = vset.pattern.permute.xlu0 0
          %1660 = vperm.xlu0 %1659, %v1606
          %v1661 = vpop.permute.xlu0 %1660
          %1664 = vset.pattern.permute.xlu0 0
          %1665 = vperm.xlu0 %1664, %v1607
          %v1666 = vpop.permute.xlu0 %1665
          %1669 = vset.pattern.permute.xlu0 0
          %1670 = vperm.xlu0 %1669, %v1608
          %v1671 = vpop.permute.xlu0 %1670
          %1674 = vset.pattern.permute.xlu0 0
          %1675 = vperm.xlu0 %1674, %v1609
          %v1676 = vpop.permute.xlu0 %1675
          %1679 = vset.pattern.permute.xlu0 0
          %1680 = vperm.xlu0 %1679, %v1610
          %v1681 = vpop.permute.xlu0 %1680
          %1684 = vset.pattern.permute.xlu0 0
          %1685 = vperm.xlu0 %1684, %v1611
          %v1686 = vpop.permute.xlu0 %1685
          %1689 = vset.pattern.permute.xlu0 0
          %1690 = vperm.xlu0 %1689, %v1612
          %v1691 = vpop.permute.xlu0 %1690
          %v1693 = vrcp.pop %v1616
          %v1694 = vmul.f32 %v1565, %v1693
          %v1695 = vmul.f32 %v1566, %v1693
          %v1696 = vrcp.pop %v1621
          %v1697 = vmul.f32 %v1567, %v1696
          %v1698 = vmul.f32 %v1568, %v1696
          %v1699 = vrcp.pop %v1626
          %v1700 = vmul.f32 %v1569, %v1699
          %v1701 = vmul.f32 %v1570, %v1699
          %v1702 = vrcp.pop %v1631
          %v1703 = vmul.f32 %v1571, %v1702
          %v1704 = vmul.f32 %v1572, %v1702
          %v1705 = vrcp.pop %v1636
          %v1706 = vmul.f32 %v1573, %v1705
          %v1707 = vmul.f32 %v1574, %v1705
          %v1708 = vrcp.pop %v1641
          %v1709 = vmul.f32 %v1575, %v1708
          %v1710 = vmul.f32 %v1576, %v1708
          %v1711 = vrcp.pop %v1646
          %v1712 = vmul.f32 %v1577, %v1711
          %v1713 = vmul.f32 %v1578, %v1711
          %v1714 = vrcp.pop %v1651
          %v1715 = vmul.f32 %v1579, %v1714
          %v1716 = vmul.f32 %v1580, %v1714
          %v1717 = vrcp.pop %v1656
          %v1718 = vmul.f32 %v1581, %v1717
          %v1719 = vmul.f32 %v1582, %v1717
          %v1720 = vrcp.pop %v1661
          %v1721 = vmul.f32 %v1583, %v1720
          %v1722 = vmul.f32 %v1584, %v1720
          %v1723 = vrcp.pop %v1666
          %v1724 = vmul.f32 %v1585, %v1723
          %v1725 = vmul.f32 %v1586, %v1723
          %v1726 = vrcp.pop %v1671
          %v1727 = vmul.f32 %v1587, %v1726
          %v1728 = vmul.f32 %v1588, %v1726
          %v1729 = vrcp.pop %v1676
          %v1730 = vmul.f32 %v1589, %v1729
          %v1731 = vmul.f32 %v1590, %v1729
          %v1732 = vrcp.pop %v1681
          %v1733 = vmul.f32 %v1591, %v1732
          %v1734 = vmul.f32 %v1592, %v1732
          %v1735 = vrcp.pop %v1686
          %v1736 = vmul.f32 %v1593, %v1735
          %v1737 = vmul.f32 %v1594, %v1735
          %v1738 = vrcp.pop %v1691
          %v1739 = vmul.f32 %v1595, %v1738
          %v1740 = vmul.f32 %v1596, %v1738
          %v1741 = vld [vmem:[%s5] sm:$0x3]
          %v1743 = vlaneseq
          %v1744 = vshrl.u32 %v1743, 7
          %v1745 = vsub.s32 0, %v1744
          %v1746 = vrot.slane %v1741, %v1745
          %v1747 = vlaneseq
          %v1748 = vshrl.u32 %v1747, 7
          %v1749 = vsub.s32 1, %v1748
          %v1750 = vrot.slane %v1741, %v1749
          %v1753 = vadd.f32 %v1694, %v1746
          %v1754 = vadd.f32 %v1695, %v1750
          %v1755 = vadd.f32 %v1697, %v1746
          %v1756 = vadd.f32 %v1698, %v1750
          %v1757 = vadd.f32 %v1700, %v1746
          %v1758 = vadd.f32 %v1701, %v1750
          %v1759 = vadd.f32 %v1703, %v1746
          %v1760 = vadd.f32 %v1704, %v1750
          %v1761 = vadd.f32 %v1706, %v1746
          %v1762 = vadd.f32 %v1707, %v1750
          %v1763 = vadd.f32 %v1709, %v1746
          %v1764 = vadd.f32 %v1710, %v1750
          %v1765 = vadd.f32 %v1712, %v1746
          %v1766 = vadd.f32 %v1713, %v1750
          %v1767 = vadd.f32 %v1715, %v1746
          %v1768 = vadd.f32 %v1716, %v1750
          %v1769 = vadd.f32 %v1718, %v1746
          %v1770 = vadd.f32 %v1719, %v1750
          %v1771 = vadd.f32 %v1721, %v1746
          %v1772 = vadd.f32 %v1722, %v1750
          %v1773 = vadd.f32 %v1724, %v1746
          %v1774 = vadd.f32 %v1725, %v1750
          %v1775 = vadd.f32 %v1727, %v1746
          %v1776 = vadd.f32 %v1728, %v1750
          %v1777 = vadd.f32 %v1730, %v1746
          %v1778 = vadd.f32 %v1731, %v1750
          %v1779 = vadd.f32 %v1733, %v1746
          %v1780 = vadd.f32 %v1734, %v1750
          %v1781 = vadd.f32 %v1736, %v1746
          %v1782 = vadd.f32 %v1737, %v1750
          %v1783 = vadd.f32 %v1739, %v1746
          %v1784 = vadd.f32 %v1740, %v1750
          %v1785 = vmax.f32 %v1753, 0.0
          %v1786 = vmax.f32 %v1754, 0.0
          %v1787 = vmax.f32 %v1755, 0.0
          %v1788 = vmax.f32 %v1756, 0.0
          %v1789 = vmax.f32 %v1757, 0.0
          %v1790 = vmax.f32 %v1758, 0.0
          %v1791 = vmax.f32 %v1759, 0.0
          %v1792 = vmax.f32 %v1760, 0.0
          %v1793 = vmax.f32 %v1761, 0.0
          %v1794 = vmax.f32 %v1762, 0.0
          %v1795 = vmax.f32 %v1763, 0.0
          %v1796 = vmax.f32 %v1764, 0.0
          %v1797 = vmax.f32 %v1765, 0.0
          %v1798 = vmax.f32 %v1766, 0.0
          %v1799 = vmax.f32 %v1767, 0.0
          %v1800 = vmax.f32 %v1768, 0.0
          %v1801 = vmax.f32 %v1769, 0.0
          %v1802 = vmax.f32 %v1770, 0.0
          %v1803 = vmax.f32 %v1771, 0.0
          %v1804 = vmax.f32 %v1772, 0.0
          %v1805 = vmax.f32 %v1773, 0.0
          %v1806 = vmax.f32 %v1774, 0.0
          %v1807 = vmax.f32 %v1775, 0.0
          %v1808 = vmax.f32 %v1776, 0.0
          %v1809 = vmax.f32 %v1777, 0.0
          %v1810 = vmax.f32 %v1778, 0.0
          %v1811 = vmax.f32 %v1779, 0.0
          %v1812 = vmax.f32 %v1780, 0.0
          %v1813 = vmax.f32 %v1781, 0.0
          %v1814 = vmax.f32 %v1782, 0.0
          %v1815 = vmax.f32 %v1783, 0.0
          %v1816 = vmax.f32 %v1784, 0.0
          %v1817 = vpack.c.bf16 %v1787, %v1785
          %v1818 = vpack.c.bf16 %v1788, %v1786
          %v1819 = vpack.c.bf16 %v1791, %v1789
          %v1820 = vpack.c.bf16 %v1792, %v1790
          %v1821 = vpack.c.bf16 %v1795, %v1793
          %v1822 = vpack.c.bf16 %v1796, %v1794
          %v1823 = vpack.c.bf16 %v1799, %v1797
          %v1824 = vpack.c.bf16 %v1800, %v1798
          %v1825 = vpack.c.bf16 %v1803, %v1801
          %v1826 = vpack.c.bf16 %v1804, %v1802
          %v1827 = vpack.c.bf16 %v1807, %v1805
          %v1828 = vpack.c.bf16 %v1808, %v1806
          %v1829 = vpack.c.bf16 %v1811, %v1809
          %v1830 = vpack.c.bf16 %v1812, %v1810
          %v1831 = vpack.c.bf16 %v1815, %v1813
          %v1832 = vpack.c.bf16 %v1816, %v1814
          %v1833 = vld [vmem:[%s6] sm:$0xf]
          %v1834 = vld [vmem:[%s6 + $0x4] sm:$0xf]
          %v1835 = vld [vmem:[%s6 + $0x8] sm:$0xf]
          %v1836 = vld [vmem:[%s6 + $0xc] sm:$0xf]
          %v1837 = vld [vmem:[%s6 + $0x10] sm:$0xf]
          %v1838 = vld [vmem:[%s6 + $0x14] sm:$0xf]
          %v1839 = vld [vmem:[%s6 + $0x18] sm:$0xf]
          %v1840 = vld [vmem:[%s6 + $0x1c] sm:$0xf]
          %v1841 = vld [vmem:[%s6 + $0x20] sm:$0xf]
          %v1842 = vld [vmem:[%s6 + $0x24] sm:$0xf]
          %v1843 = vld [vmem:[%s6 + $0x28] sm:$0xf]
          %v1844 = vld [vmem:[%s6 + $0x2c] sm:$0xf]
          %v1845 = vld [vmem:[%s6 + $0x30] sm:$0xf]
          %v1846 = vld [vmem:[%s6 + $0x34] sm:$0xf]
          %v1847 = vld [vmem:[%s6 + $0x38] sm:$0xf]
          %v1848 = vld [vmem:[%s6 + $0x3c] sm:$0xf]
          %v1849 = vld [vmem:[%s6 + $0x40] sm:$0xf]
          %v1850 = vld [vmem:[%s6 + $0x44] sm:$0xf]
          %v1851 = vld [vmem:[%s6 + $0x48] sm:$0xf]
          %v1852 = vld [vmem:[%s6 + $0x4c] sm:$0xf]
          %v1853 = vld [vmem:[%s6 + $0x50] sm:$0xf]
          %v1854 = vld [vmem:[%s6 + $0x54] sm:$0xf]
          %v1855 = vld [vmem:[%s6 + $0x58] sm:$0xf]
          %v1856 = vld [vmem:[%s6 + $0x5c] sm:$0xf]
          %v1857 = vld [vmem:[%s6 + $0x60] sm:$0xf]
          %v1858 = vld [vmem:[%s6 + $0x64] sm:$0xf]
          %v1859 = vld [vmem:[%s6 + $0x68] sm:$0xf]
          %v1860 = vld [vmem:[%s6 + $0x6c] sm:$0xf]
          %v1861 = vld [vmem:[%s6 + $0x70] sm:$0xf]
          %v1862 = vld [vmem:[%s6 + $0x74] sm:$0xf]
          %v1863 = vld [vmem:[%s6 + $0x78] sm:$0xf]
          %v1864 = vld [vmem:[%s6 + $0x7c] sm:$0xf]
          %v1865 = vld [vmem:[%s7] sm:$0x1]
          %v1867 = vlaneseq
          %v1868 = vshrl.u32 %v1867, 7
          %v1869 = vsub.s32 0, %v1868
          %v1870 = vrot.slane %v1865, %v1869
          %v1904 = vunpack.c.l.b16 %v1833
          %v1905 = vunpack.c.l.b16 %v1834
          %v1906 = vunpack.c.l.b16 %v1835
          %v1907 = vunpack.c.l.b16 %v1836
          %v1908 = vunpack.c.l.b16 %v1837
          %v1909 = vunpack.c.l.b16 %v1838
          %v1910 = vunpack.c.l.b16 %v1839
          %v1911 = vunpack.c.l.b16 %v1840
          %v1912 = vunpack.c.l.b16 %v1841
          %v1913 = vunpack.c.l.b16 %v1842
          %v1914 = vunpack.c.l.b16 %v1843
          %v1915 = vunpack.c.l.b16 %v1844
          %v1916 = vunpack.c.l.b16 %v1845
          %v1917 = vunpack.c.l.b16 %v1846
          %v1918 = vunpack.c.l.b16 %v1847
          %v1919 = vunpack.c.l.b16 %v1848
          %v1920 = vunpack.c.l.b16 %v1849
          %v1921 = vunpack.c.l.b16 %v1850
          %v1922 = vunpack.c.l.b16 %v1851
          %v1923 = vunpack.c.l.b16 %v1852
          %v1924 = vunpack.c.l.b16 %v1853
          %v1925 = vunpack.c.l.b16 %v1854
          %v1926 = vunpack.c.l.b16 %v1855
          %v1927 = vunpack.c.l.b16 %v1856
          %v1928 = vunpack.c.l.b16 %v1857
          %v1929 = vunpack.c.l.b16 %v1858
          %v1930 = vunpack.c.l.b16 %v1859
          %v1931 = vunpack.c.l.b16 %v1860
          %v1932 = vunpack.c.l.b16 %v1861
          %v1933 = vunpack.c.l.b16 %v1862
          %v1934 = vunpack.c.l.b16 %v1863
          %v1935 = vunpack.c.l.b16 %v1864
          %v1936 = vpack.c.b16 %v1905, %v1904
          %v1937 = vpack.c.b16 %v1907, %v1906
          %v1938 = vpack.c.b16 %v1909, %v1908
          %v1939 = vpack.c.b16 %v1911, %v1910
          %v1940 = vpack.c.b16 %v1913, %v1912
          %v1941 = vpack.c.b16 %v1915, %v1914
          %v1942 = vpack.c.b16 %v1917, %v1916
          %v1943 = vpack.c.b16 %v1919, %v1918
          %v1944 = vpack.c.b16 %v1921, %v1920
          %v1945 = vpack.c.b16 %v1923, %v1922
          %v1946 = vpack.c.b16 %v1925, %v1924
          %v1947 = vpack.c.b16 %v1927, %v1926
          %v1948 = vpack.c.b16 %v1929, %v1928
          %v1949 = vpack.c.b16 %v1931, %v1930
          %v1950 = vpack.c.b16 %v1933, %v1932
          %v1951 = vpack.c.b16 %v1935, %v1934
          %1968 = vmatprep.subr.bf16.mxu0 0
          %1969 = vmatpush1.bf16.msra.mxu0 %v1943
          %1970 = vmatprep.subr.bf16.mxu0 0
          %1971 = vmatpush1.bf16.msra.mxu0 %v1942
          %1972 = vmatprep.subr.bf16.mxu0 0
          %1973 = vmatpush1.bf16.msra.mxu0 %v1941
          %1974 = vmatprep.subr.bf16.mxu0 0
          %1975 = vmatpush1.bf16.msra.mxu0 %v1940
          %1976 = vmatprep.subr.bf16.mxu0 0
          %1977 = vmatpush1.bf16.msra.mxu0 %v1939
          %1978 = vmatprep.subr.bf16.mxu0 0
          %1979 = vmatpush1.bf16.msra.mxu0 %v1938
          %1980 = vmatprep.subr.bf16.mxu0 0
          %1981 = vmatpush1.bf16.msra.mxu0 %v1937
          %1982 = vmatprep.subr.bf16.mxu0 0
          %1983 = vmatpush1.bf16.msra.mxu0 %v1936
          %1984 = vmatprep.subr.bf16.mxu0 0
          %1985 = vmatpush2.bf16.msra.mxu0 %v1951
          %1986 = vmatprep.subr.bf16.mxu0 0
          %1987 = vmatpush2.bf16.msra.mxu0 %v1950
          %1988 = vmatprep.subr.bf16.mxu0 0
          %1989 = vmatpush2.bf16.msra.mxu0 %v1949
          %1990 = vmatprep.subr.bf16.mxu0 0
          %1991 = vmatpush2.bf16.msra.mxu0 %v1948
          %1992 = vmatprep.subr.bf16.mxu0 0
          %1993 = vmatpush2.bf16.msra.mxu0 %v1947
          %1994 = vmatprep.subr.bf16.mxu0 0
          %1995 = vmatpush2.bf16.msra.mxu0 %v1946
          %1996 = vmatprep.subr.bf16.mxu0 0
          %1997 = vmatpush2.bf16.msra.mxu0 %v1945
          %1998 = vmatprep.subr.bf16.mxu0 0
          %1999 = vmatpush2.bf16.msra.mxu0 %v1944
          %2000 = vmatprep.mubr.bf16.mxu0 %v1818
          %2001 = vmatmul.mubr.bf16.gmra.mxu0 %v1817
          %v2002 = vpop.f32.mrf.mxu0
          %v2003 = vadd.f32 %v1870, %v2002
          %v2004 = vpop.f32.mrf.mxu0
          %v2005 = vpop.f32.mrf.mxu0
          %v2006 = vadd.f32 %v1870, %v2005
          %v2007 = vpop.f32.mrf.mxu0
          %2008 = vmatprep.mubr.bf16.mxu0 %v1820
          %2009 = vmatmul.mubr.bf16.gmra.mxu0 %v1819
          %v2010 = vpop.f32.mrf.mxu0
          %v2011 = vadd.f32 %v1870, %v2010
          %v2012 = vpop.f32.mrf.mxu0
          %v2013 = vpop.f32.mrf.mxu0
          %v2014 = vadd.f32 %v1870, %v2013
          %v2015 = vpop.f32.mrf.mxu0
          %2016 = vmatprep.mubr.bf16.mxu0 %v1822
          %2017 = vmatmul.mubr.bf16.gmra.mxu0 %v1821
          %v2018 = vpop.f32.mrf.mxu0
          %v2019 = vadd.f32 %v1870, %v2018
          %v2020 = vpop.f32.mrf.mxu0
          %v2021 = vpop.f32.mrf.mxu0
          %v2022 = vadd.f32 %v1870, %v2021
          %v2023 = vpop.f32.mrf.mxu0
          %2024 = vmatprep.mubr.bf16.mxu0 %v1824
          %2025 = vmatmul.mubr.bf16.gmra.mxu0 %v1823
          %v2026 = vpop.f32.mrf.mxu0
          %v2027 = vadd.f32 %v1870, %v2026
          %v2028 = vpop.f32.mrf.mxu0
          %v2029 = vpop.f32.mrf.mxu0
          %v2030 = vadd.f32 %v1870, %v2029
          %v2031 = vpop.f32.mrf.mxu0
          %2032 = vmatprep.mubr.bf16.mxu0 %v1826
          %2033 = vmatmul.mubr.bf16.gmra.mxu0 %v1825
          %v2034 = vpop.f32.mrf.mxu0
          %v2035 = vadd.f32 %v1870, %v2034
          %v2036 = vpop.f32.mrf.mxu0
          %v2037 = vpop.f32.mrf.mxu0
          %v2038 = vadd.f32 %v1870, %v2037
          %v2039 = vpop.f32.mrf.mxu0
          %2040 = vmatprep.mubr.bf16.mxu0 %v1828
          %2041 = vmatmul.mubr.bf16.gmra.mxu0 %v1827
          %v2042 = vpop.f32.mrf.mxu0
          %v2043 = vadd.f32 %v1870, %v2042
          %v2044 = vpop.f32.mrf.mxu0
          %v2045 = vpop.f32.mrf.mxu0
          %v2046 = vadd.f32 %v1870, %v2045
          %v2047 = vpop.f32.mrf.mxu0
          %2048 = vmatprep.mubr.bf16.mxu0 %v1830
          %2049 = vmatmul.mubr.bf16.gmra.mxu0 %v1829
          %v2050 = vpop.f32.mrf.mxu0
          %v2051 = vadd.f32 %v1870, %v2050
          %v2052 = vpop.f32.mrf.mxu0
          %v2053 = vpop.f32.mrf.mxu0
          %v2054 = vadd.f32 %v1870, %v2053
          %v2055 = vpop.f32.mrf.mxu0
          %2056 = vmatprep.mubr.bf16.mxu0 %v1832
          %2057 = vmatmul.mubr.bf16.gmra.mxu0 %v1831
          %v2058 = vpop.f32.mrf.mxu0
          %v2059 = vadd.f32 %v1870, %v2058
          %v2060 = vpop.f32.mrf.mxu0
          %v2061 = vpop.f32.mrf.mxu0
          %v2062 = vadd.f32 %v1870, %v2061
          %v2063 = vpop.f32.mrf.mxu0
          %2064 = vdwg.mxu0
          %2065 = vmax.xlane.f32.xlu0 %v2003
          %v2066 = vpop.xlane.xlu0 %2065
          %2067 = vmax.xlane.f32.xlu0 %v2006
          %v2068 = vpop.xlane.xlu0 %2067
          %2069 = vmax.xlane.f32.xlu0 %v2011
          %v2070 = vpop.xlane.xlu0 %2069
          %2071 = vmax.xlane.f32.xlu0 %v2014
          %v2072 = vpop.xlane.xlu0 %2071
          %2073 = vmax.xlane.f32.xlu0 %v2019
          %v2074 = vpop.xlane.xlu0 %2073
          %2075 = vmax.xlane.f32.xlu0 %v2022
          %v2076 = vpop.xlane.xlu0 %2075
          %2077 = vmax.xlane.f32.xlu0 %v2027
          %v2078 = vpop.xlane.xlu0 %2077
          %2079 = vmax.xlane.f32.xlu0 %v2030
          %v2080 = vpop.xlane.xlu0 %2079
          %2081 = vmax.xlane.f32.xlu0 %v2035
          %v2082 = vpop.xlane.xlu0 %2081
          %2083 = vmax.xlane.f32.xlu0 %v2038
          %v2084 = vpop.xlane.xlu0 %2083
          %2085 = vmax.xlane.f32.xlu0 %v2043
          %v2086 = vpop.xlane.xlu0 %2085
          %2087 = vmax.xlane.f32.xlu0 %v2046
          %v2088 = vpop.xlane.xlu0 %2087
          %2089 = vmax.xlane.f32.xlu0 %v2051
          %v2090 = vpop.xlane.xlu0 %2089
          %2091 = vmax.xlane.f32.xlu0 %v2054
          %v2092 = vpop.xlane.xlu0 %2091
          %2093 = vmax.xlane.f32.xlu0 %v2059
          %v2094 = vpop.xlane.xlu0 %2093
          %2095 = vmax.xlane.f32.xlu0 %v2062
          %v2096 = vpop.xlane.xlu0 %2095
          %v2097 = vsub.f32 %v2003, %v2066
          %v2098 = vsub.f32 %v2006, %v2068
          %v2099 = vsub.f32 %v2011, %v2070
          %v2100 = vsub.f32 %v2014, %v2072
          %v2101 = vsub.f32 %v2019, %v2074
          %v2102 = vsub.f32 %v2022, %v2076
          %v2103 = vsub.f32 %v2027, %v2078
          %v2104 = vsub.f32 %v2030, %v2080
          %v2105 = vsub.f32 %v2035, %v2082
          %v2106 = vsub.f32 %v2038, %v2084
          %v2107 = vsub.f32 %v2043, %v2086
          %v2108 = vsub.f32 %v2046, %v2088
          %v2109 = vsub.f32 %v2051, %v2090
          %v2110 = vsub.f32 %v2054, %v2092
          %v2111 = vsub.f32 %v2059, %v2094
          %v2112 = vsub.f32 %v2062, %v2096
          %v2113 = vmul.f32 %v2097, 1.442695
          %v2114 = vpow.pop %v2113
          %v2115 = vmul.f32 %v2098, 1.442695
          %v2116 = vpow.pop %v2115
          %v2117 = vmul.f32 %v2099, 1.442695
          %v2118 = vpow.pop %v2117
          %v2119 = vmul.f32 %v2100, 1.442695
          %v2120 = vpow.pop %v2119
          %v2121 = vmul.f32 %v2101, 1.442695
          %v2122 = vpow.pop %v2121
          %v2123 = vmul.f32 %v2102, 1.442695
          %v2124 = vpow.pop %v2123
          %v2125 = vmul.f32 %v2103, 1.442695
          %v2126 = vpow.pop %v2125
          %v2127 = vmul.f32 %v2104, 1.442695
          %v2128 = vpow.pop %v2127
          %v2129 = vmul.f32 %v2105, 1.442695
          %v2130 = vpow.pop %v2129
          %v2131 = vmul.f32 %v2106, 1.442695
          %v2132 = vpow.pop %v2131
          %v2133 = vmul.f32 %v2107, 1.442695
          %v2134 = vpow.pop %v2133
          %v2135 = vmul.f32 %v2108, 1.442695
          %v2136 = vpow.pop %v2135
          %v2137 = vmul.f32 %v2109, 1.442695
          %v2138 = vpow.pop %v2137
          %v2139 = vmul.f32 %v2110, 1.442695
          %v2140 = vpow.pop %v2139
          %v2141 = vmul.f32 %v2111, 1.442695
          %v2142 = vpow.pop %v2141
          %v2143 = vmul.f32 %v2112, 1.442695
          %v2144 = vpow.pop %v2143
          %2145 = vadd.xlane.f32.xlu0 %v2114
          %v2146 = vpop.xlane.xlu0 %2145
          %2147 = vadd.xlane.f32.xlu0 %v2116
          %v2148 = vpop.xlane.xlu0 %2147
          %2149 = vadd.xlane.f32.xlu0 %v2118
          %v2150 = vpop.xlane.xlu0 %2149
          %2151 = vadd.xlane.f32.xlu0 %v2120
          %v2152 = vpop.xlane.xlu0 %2151
          %2153 = vadd.xlane.f32.xlu0 %v2122
          %v2154 = vpop.xlane.xlu0 %2153
          %2155 = vadd.xlane.f32.xlu0 %v2124
          %v2156 = vpop.xlane.xlu0 %2155
          %2157 = vadd.xlane.f32.xlu0 %v2126
          %v2158 = vpop.xlane.xlu0 %2157
          %2159 = vadd.xlane.f32.xlu0 %v2128
          %v2160 = vpop.xlane.xlu0 %2159
          %2161 = vadd.xlane.f32.xlu0 %v2130
          %v2162 = vpop.xlane.xlu0 %2161
          %2163 = vadd.xlane.f32.xlu0 %v2132
          %v2164 = vpop.xlane.xlu0 %2163
          %2165 = vadd.xlane.f32.xlu0 %v2134
          %v2166 = vpop.xlane.xlu0 %2165
          %2167 = vadd.xlane.f32.xlu0 %v2136
          %v2168 = vpop.xlane.xlu0 %2167
          %2169 = vadd.xlane.f32.xlu0 %v2138
          %v2170 = vpop.xlane.xlu0 %2169
          %2171 = vadd.xlane.f32.xlu0 %v2140
          %v2172 = vpop.xlane.xlu0 %2171
          %2173 = vadd.xlane.f32.xlu0 %v2142
          %v2174 = vpop.xlane.xlu0 %2173
          %2175 = vadd.xlane.f32.xlu0 %v2144
          %v2176 = vpop.xlane.xlu0 %2175
          %v2177 = vrcp.pop %v2146
          %v2178 = vmul.f32 %v2114, %v2177
          %v2179 = vrcp.pop %v2148
          %v2180 = vmul.f32 %v2116, %v2179
          %v2181 = vrcp.pop %v2150
          %v2182 = vmul.f32 %v2118, %v2181
          %v2183 = vrcp.pop %v2152
          %v2184 = vmul.f32 %v2120, %v2183
          %v2185 = vrcp.pop %v2154
          %v2186 = vmul.f32 %v2122, %v2185
          %v2187 = vrcp.pop %v2156
          %v2188 = vmul.f32 %v2124, %v2187
          %v2189 = vrcp.pop %v2158
          %v2190 = vmul.f32 %v2126, %v2189
          %v2191 = vrcp.pop %v2160
          %v2192 = vmul.f32 %v2128, %v2191
          %v2193 = vrcp.pop %v2162
          %v2194 = vmul.f32 %v2130, %v2193
          %v2195 = vrcp.pop %v2164
          %v2196 = vmul.f32 %v2132, %v2195
          %v2197 = vrcp.pop %v2166
          %v2198 = vmul.f32 %v2134, %v2197
          %v2199 = vrcp.pop %v2168
          %v2200 = vmul.f32 %v2136, %v2199
          %v2201 = vrcp.pop %v2170
          %v2202 = vmul.f32 %v2138, %v2201
          %v2203 = vrcp.pop %v2172
          %v2204 = vmul.f32 %v2140, %v2203
          %v2205 = vrcp.pop %v2174
          %v2206 = vmul.f32 %v2142, %v2205
          %v2207 = vrcp.pop %v2176
          %v2208 = vmul.f32 %v2144, %v2207
          %2209 = vst [vmem:[%s411] sm:$0xff] %v2178
          %2210 = vst [vmem:[%s411 + $0x8] sm:$0xff] %v2180
          %2211 = vst [vmem:[%s411 + $0x10] sm:$0xff] %v2182
          %2212 = vst [vmem:[%s411 + $0x18] sm:$0xff] %v2184
          %2213 = vst [vmem:[%s411 + $0x20] sm:$0xff] %v2186
          %2214 = vst [vmem:[%s411 + $0x28] sm:$0xff] %v2188
          %2215 = vst [vmem:[%s411 + $0x30] sm:$0xff] %v2190
          %2216 = vst [vmem:[%s411 + $0x38] sm:$0xff] %v2192
          %2217 = vst [vmem:[%s411 + $0x40] sm:$0xff] %v2194
          %2218 = vst [vmem:[%s411 + $0x48] sm:$0xff] %v2196
          %2219 = vst [vmem:[%s411 + $0x50] sm:$0xff] %v2198
          %2220 = vst [vmem:[%s411 + $0x58] sm:$0xff] %v2200
          %2221 = vst [vmem:[%s411 + $0x60] sm:$0xff] %v2202
          %2222 = vst [vmem:[%s411 + $0x68] sm:$0xff] %v2204
          %2223 = vst [vmem:[%s411 + $0x70] sm:$0xff] %v2206
          %2224 = vst [vmem:[%s411 + $0x78] sm:$0xff] %v2208
        $region98: #{gat_forward.5} parent=81 // pred_fallthru
          _
        %s2225 = smul.u32 16, %s29
        %p2226 = scmp.lt.s32.totalorder %s2225, 63
        %s2227 = scalar_select %p2226, %s2225, 63
        %s2228 = smul.addr %s2227, 8
        %s2229 = scalar_lea.vmem %s8, %s2228
        // Predicated region
        $region99: #{gat_forward.5} parent=81 // pred_check
          %p2230 = pneg %p224
        $region100: #{gat_forward.5} parent=81 // pred_check_branch
          %2232 = sbr.rel (%p2230) target = $region102
        $region101: #{gat_forward.5} parent=81 // pred_region
          %s2233 = smul.u32 16, %s29
        $region102: #{gat_forward.5} parent=81 // pred_fallthru
          _
      $region82: #{gat_forward.5} parent=5 // pred_fallthru
        _
      %p2234 = scmp.le.s32.totalorder 2, %s20
      // Predicated region
      $region103: #{gat_forward.5} parent=5 // pred_check
        %p2235 = pneg %p2234
      $region104: #{gat_forward.5} parent=5 // pred_check_branch
        %2237 = sbr.rel (%p2235) target = $region106
      $region105: #{gat_forward.5} parent=5 // pred_region
        %s2238 = ssub.s32 %s20, 2
        // Predicated region
        $region107: #{gat_forward.5} parent=105 // pred_check
          %p2239 = pneg %p230
        $region108: #{gat_forward.5} parent=105 // pred_check_branch
          %2241 = sbr.rel (%p2239) target = $region110
        $region109: #{gat_forward.5} parent=105 // pred_region
          %s2242 = smul.u32 16, %s31
          %p2243 = scmp.lt.s32.totalorder %s2242, 63
          %s2244 = scalar_select %p2243, %s2242, 63
          %s2245 = smul.addr %s2244, 8
          %s2246 = scalar_lea.vmem %s8, %s2245
        $region110: #{gat_forward.5} parent=105 // pred_fallthru
          _
      $region106: #{gat_forward.5} parent=5 // pred_fallthru
        _
    $region6: #{gat_forward.5} parent=1 // loop_footer
      %s24 = sadd.s32 1, %s20
    $region7: #{gat_forward.5} parent=1 // loop_footer_branch
      %19 = sbr.rel target = $region3
    $region8: #{gat_forward.5} parent=1 // loop_exit
      _

// kernel: gat_forward.4
$region0: #{gat_forward.4}
  #allocation0 [shape = 'u32[]', space=smem, size = 0x4, offset = 0x4, fixed_abs, tag = 'smem constant byte address 0x4 - core index']
  #allocation1 [shape = 'u32[144,128]{1,0:T(1,128)}', space=vmem, size = 0x12000, scoped, tag = 'internal scratch']
  #allocation2 [shape = 'f32[128,1]{1,0:T(8,128)}', space=vmem, size = 0x10000, scoped, tag = 'scratch operand']
  #allocation3 [shape = 'f32[128,1]{1,0:T(8,128)}', space=vmem, size = 0x10000, scoped, tag = 'scratch operand']
  #allocation4 [shape = 'f32[128,256]{1,0:T(8,128)}', space=vmem, size = 0x20000, scoped, tag = 'scratch operand']
  #allocation5 [shape = 's32[1]{0}', space=sflag, size = 0x4, scoped, tag = 'scoped memory for gat_forward.4']
  #allocation6 [shape = 'u8[512]{0}', space=smem, size = 0x200, scoped, tag = 'prefetched SMEM operand 0']
  %s0 = inlined_call_operand.vmem [shape: s32[16], index: 0, kind: input, shape index: {}]
  %s1 = inlined_call_operand.vmem [shape: s8[512,512], index: 1, kind: input, shape index: {}]
  %s2 = inlined_call_operand.vmem [shape: f32[512,1], index: 2, kind: input, shape index: {}]
  %s3 = inlined_call_operand.vmem [shape: f32[1,512], index: 3, kind: input, shape index: {}]
  %s4 = inlined_call_operand.vmem [shape: bf16[512,256], index: 4, kind: input, shape index: {}]
  %s5 = inlined_call_operand.vmem [shape: f32[1,256], index: 5, kind: input, shape index: {}]
  %s6 = inlined_call_operand.vmem [shape: bf16[256,384], index: 6, kind: input, shape index: {}]
  %s7 = inlined_call_operand.vmem [shape: bf16[512,256], index: 7, kind: output, shape index: {0}]
  %s8 = inlined_call_operand.vmem [shape: f32[512,128], index: 8, kind: output, shape index: {1}]
  %9 = xla_tuple %s7, %s8
  %s10 = sld [smem:[#allocation0]]
  $region115: #{gat_forward.4} parent=0
    _
  %s12 = ssub.s32 1, %s10
  %s13 = scalar_select 0, %s12, %s10
  %s14 = sshll.u32 %s0, 4
  %s15 = int_to_ptr.vmem [resolvable:$true] %s14
  %17 = dma.vmem_to_smem %s15, 16, [#allocation6], [#allocation5]
  %18 = dma.done [#allocation5], 16
  %19 = sfence
  $region1: #{gat_forward.4} parent=0
    #allocation7 [shape = 'u8[32768]{0}', space=vmem, size = 0x8000, scoped, tag = 'input window, operand 1']
    loop: start=0, step=1, limit=18
    $region2: #{gat_forward.4} parent=1 // loop_pre_header
      _
    $region3: #{gat_forward.4} parent=1 // loop_header
      %s21 = sphi 0, %s25
      %p22 = scmp.ge.s32.totalorder %s21, 18
      %s28 = sphi 0, %s40
      %s29 = sphi 0, %s36
      %s30 = sphi 0, %s28
      %s31 = sphi 0, %s29
      %s32 = sphi 0, %s30
      %s33 = sphi 0, %s31
      %s45 = sphi 0, %s47
      %s48 = sphi 0, %s45
      %s49 = sphi 0, %s48
      %s65 = sphi 0, %s49
      %s71 = sphi 0, %s73
      %s74 = sphi 0, %s71
      %s75 = sphi 0, %s74
      %s91 = sphi 0, %s75
      %s97 = sphi 0, %s99
      %s100 = sphi 0, %s97
      %s101 = sphi 0, %s100
      %s117 = sphi 0, %s101
      %s123 = sphi 0, %s125
      %s126 = sphi 0, %s123
      %s127 = sphi 0, %s126
      %s143 = sphi 0, %s127
      %s147 = sphi 0, %s147
      %s149 = sphi 0, %s147
      %s150 = sphi 0, %s149
      %s164 = sphi 0, %s150
      %s168 = sphi 0, %s168
      %s170 = sphi 0, %s168
      %s171 = sphi 0, %s170
      %s185 = sphi 0, %s171
      %s191 = sphi 0, %s193
      %s194 = sphi 0, %s191
      %s195 = sphi 0, %s194
      %s211 = sphi 0, %s195
      %s217 = sphi 0, %s219
      %s220 = sphi 0, %s217
      %s221 = sphi 0, %s220
      %s237 = sphi 0, %s221
    $region4: #{gat_forward.4} parent=1 // loop_header_branch
      %24 = sbr.rel (%p22) target = $region8
    $region5: #{gat_forward.4} parent=1 // loop_body
      %s26 = ssub.s32 %s21, 1
      %s27 = ssub.s32 %s21, 2
      %s34 = sadd.s32 1, %s29
      %p35 = scmp.ge.s32.totalorder %s34, 4
      %s36 = scalar_select %p35, 0, %s34
      %s37 = sadd.s32 1, %s28
      %s38 = scalar_select %p35, %s37, %s28
      %p39 = scmp.ge.s32.totalorder %s38, 4
      %s40 = scalar_select %p39, 0, %s38
      %s41 = ssub.s32 %s28, %s40
      %s42 = ssub.s32 %s29, %s36
      %s43 = sor.u32 %s41, %s42
      %p44 = scmp.eq.s32.totalorder %s43, 0
      %s46 = sadd.s32 %s45, 1
      %s47 = scalar_select %p44, %s45, %s46
      %p50 = pneg %p44
      %p51 = scmp.eq.s32.totalorder %s21, 15
      %p52 = por %p50, %p51
      %p53 = scmp.ne.s32.totalorder %s45, %s48
      %p54 = scmp.eq.s32.totalorder %s21, 0
      %p55 = por %p53, %p54
      %p56 = scmp.ne.s32.totalorder %s45, %s48
      %p57 = scmp.eq.s32.totalorder %s26, 15
      %p58 = por %p56, %p57
      %p59 = scmp.ne.s32.totalorder %s48, %s49
      %p60 = scmp.eq.s32.totalorder %s26, 0
      %p61 = por %p59, %p60
      %p62 = scmp.ne.s32.totalorder %s48, %s49
      %p63 = scmp.eq.s32.totalorder %s27, 15
      %p64 = por %p62, %p63
      %p66 = scmp.ne.s32.totalorder %s49, %s65
      %p67 = scmp.eq.s32.totalorder %s27, 0
      %p68 = por %p66, %p67
      %s69 = ssub.s32 %s28, %s40
      %p70 = scmp.eq.s32.totalorder %s69, 0
      %s72 = sadd.s32 %s71, 1
      %s73 = scalar_select %p70, %s71, %s72
      %p76 = pneg %p70
      %p77 = scmp.eq.s32.totalorder %s21, 15
      %p78 = por %p76, %p77
      %p79 = scmp.ne.s32.totalorder %s71, %s74
      %p80 = scmp.eq.s32.totalorder %s21, 0
      %p81 = por %p79, %p80
      %p82 = scmp.ne.s32.totalorder %s71, %s74
      %p83 = scmp.eq.s32.totalorder %s26, 15
      %p84 = por %p82, %p83
      %p85 = scmp.ne.s32.totalorder %s74, %s75
      %p86 = scmp.eq.s32.totalorder %s26, 0
      %p87 = por %p85, %p86
      %p88 = scmp.ne.s32.totalorder %s74, %s75
      %p89 = scmp.eq.s32.totalorder %s27, 15
      %p90 = por %p88, %p89
      %p92 = scmp.ne.s32.totalorder %s75, %s91
      %p93 = scmp.eq.s32.totalorder %s27, 0
      %p94 = por %p92, %p93
      %s95 = ssub.s32 %s29, %s36
      %p96 = scmp.eq.s32.totalorder %s95, 0
      %s98 = sadd.s32 %s97, 1
      %s99 = scalar_select %p96, %s97, %s98
      %p102 = pneg %p96
      %p103 = scmp.eq.s32.totalorder %s21, 15
      %p104 = por %p102, %p103
      %p105 = scmp.ne.s32.totalorder %s97, %s100
      %p106 = scmp.eq.s32.totalorder %s21, 0
      %p107 = por %p105, %p106
      %p108 = scmp.ne.s32.totalorder %s97, %s100
      %p109 = scmp.eq.s32.totalorder %s26, 15
      %p110 = por %p108, %p109
      %p111 = scmp.ne.s32.totalorder %s100, %s101
      %p112 = scmp.eq.s32.totalorder %s26, 0
      %p113 = por %p111, %p112
      %p114 = scmp.ne.s32.totalorder %s100, %s101
      %p115 = scmp.eq.s32.totalorder %s27, 15
      %p116 = por %p114, %p115
      %p118 = scmp.ne.s32.totalorder %s101, %s117
      %p119 = scmp.eq.s32.totalorder %s27, 0
      %p120 = por %p118, %p119
      %s121 = ssub.s32 %s29, %s36
      %p122 = scmp.eq.s32.totalorder %s121, 0
      %s124 = sadd.s32 %s123, 1
      %s125 = scalar_select %p122, %s123, %s124
      %p128 = pneg %p122
      %p129 = scmp.eq.s32.totalorder %s21, 15
      %p130 = por %p128, %p129
      %p131 = scmp.ne.s32.totalorder %s123, %s126
      %p132 = scmp.eq.s32.totalorder %s21, 0
      %p133 = por %p131, %p132
      %p134 = scmp.ne.s32.totalorder %s123, %s126
      %p135 = scmp.eq.s32.totalorder %s26, 15
      %p136 = por %p134, %p135
      %p137 = scmp.ne.s32.totalorder %s126, %s127
      %p138 = scmp.eq.s32.totalorder %s26, 0
      %p139 = por %p137, %p138
      %p140 = scmp.ne.s32.totalorder %s126, %s127
      %p141 = scmp.eq.s32.totalorder %s27, 15
      %p142 = por %p140, %p141
      %p144 = scmp.ne.s32.totalorder %s127, %s143
      %p145 = scmp.eq.s32.totalorder %s27, 0
      %p146 = por %p144, %p145
      %s148 = sadd.s32 %s147, 1
      %p151 = scmp.eq.s32.totalorder %s21, 15
      %p152 = scmp.ne.s32.totalorder %s147, %s149
      %p153 = scmp.eq.s32.totalorder %s21, 0
      %p154 = por %p152, %p153
      %p155 = scmp.ne.s32.totalorder %s147, %s149
      %p156 = scmp.eq.s32.totalorder %s26, 15
      %p157 = por %p155, %p156
      %p158 = scmp.ne.s32.totalorder %s149, %s150
      %p159 = scmp.eq.s32.totalorder %s26, 0
      %p160 = por %p158, %p159
      %p161 = scmp.ne.s32.totalorder %s149, %s150
      %p162 = scmp.eq.s32.totalorder %s27, 15
      %p163 = por %p161, %p162
      %p165 = scmp.ne.s32.totalorder %s150, %s164
      %p166 = scmp.eq.s32.totalorder %s27, 0
      %p167 = por %p165, %p166
      %s169 = sadd.s32 %s168, 1
      %p172 = scmp.eq.s32.totalorder %s21, 15
      %p173 = scmp.ne.s32.totalorder %s168, %s170
      %p174 = scmp.eq.s32.totalorder %s21, 0
      %p175 = por %p173, %p174
      %p176 = scmp.ne.s32.totalorder %s168, %s170
      %p177 = scmp.eq.s32.totalorder %s26, 15
      %p178 = por %p176, %p177
      %p179 = scmp.ne.s32.totalorder %s170, %s171
      %p180 = scmp.eq.s32.totalorder %s26, 0
      %p181 = por %p179, %p180
      %p182 = scmp.ne.s32.totalorder %s170, %s171
      %p183 = scmp.eq.s32.totalorder %s27, 15
      %p184 = por %p182, %p183
      %p186 = scmp.ne.s32.totalorder %s171, %s185
      %p187 = scmp.eq.s32.totalorder %s27, 0
      %p188 = por %p186, %p187
      %s189 = ssub.s32 %s28, %s40
      %p190 = scmp.eq.s32.totalorder %s189, 0
      %s192 = sadd.s32 %s191, 1
      %s193 = scalar_select %p190, %s191, %s192
      %p196 = pneg %p190
      %p197 = scmp.eq.s32.totalorder %s21, 15
      %p198 = por %p196, %p197
      %p199 = scmp.ne.s32.totalorder %s191, %s194
      %p200 = scmp.eq.s32.totalorder %s21, 0
      %p201 = por %p199, %p200
      %p202 = scmp.ne.s32.totalorder %s191, %s194
      %p203 = scmp.eq.s32.totalorder %s26, 15
      %p204 = por %p202, %p203
      %p205 = scmp.ne.s32.totalorder %s194, %s195
      %p206 = scmp.eq.s32.totalorder %s26, 0
      %p207 = por %p205, %p206
      %p208 = scmp.ne.s32.totalorder %s194, %s195
      %p209 = scmp.eq.s32.totalorder %s27, 15
      %p210 = por %p208, %p209
      %p212 = scmp.ne.s32.totalorder %s195, %s211
      %p213 = scmp.eq.s32.totalorder %s27, 0
      %p214 = por %p212, %p213
      %s215 = ssub.s32 %s28, %s40
      %p216 = scmp.eq.s32.totalorder %s215, 0
      %s218 = sadd.s32 %s217, 1
      %s219 = scalar_select %p216, %s217, %s218
      %p222 = pneg %p216
      %p223 = scmp.eq.s32.totalorder %s21, 15
      %p224 = por %p222, %p223
      %p225 = scmp.ne.s32.totalorder %s217, %s220
      %p226 = scmp.eq.s32.totalorder %s21, 0
      %p227 = por %p225, %p226
      %p228 = scmp.ne.s32.totalorder %s217, %s220
      %p229 = scmp.eq.s32.totalorder %s26, 15
      %p230 = por %p228, %p229
      %p231 = scmp.ne.s32.totalorder %s220, %s221
      %p232 = scmp.eq.s32.totalorder %s26, 0
      %p233 = por %p231, %p232
      %p234 = scmp.ne.s32.totalorder %s220, %s221
      %p235 = scmp.eq.s32.totalorder %s27, 15
      %p236 = por %p234, %p235
      %p238 = scmp.ne.s32.totalorder %s221, %s237
      %p239 = scmp.eq.s32.totalorder %s27, 0
      %p240 = por %p238, %p239
      %p241 = scmp.le.s32.totalorder 1, %s21
      %p242 = scmp.lt.s32.totalorder %s21, 17
      %p243 = pnand %p241, %p242
      %p244 = pneg %p243
      // Predicated region
      $region9: #{gat_forward.4} parent=5 // pred_check
        _
      $region10: #{gat_forward.4} parent=5 // pred_check_branch
        %246 = sbr.rel (%p243) target = $region12
      $region11: #{gat_forward.4} parent=5 // pred_region
        %s247 = ssub.s32 %s21, 1
        // Predicated region
        $region13: #{gat_forward.4} parent=11 // pred_check
          %p248 = pneg %p160
        $region14: #{gat_forward.4} parent=11 // pred_check_branch
          %250 = sbr.rel (%p248) target = $region16
        $region15: #{gat_forward.4} parent=11 // pred_region
          _
        $region16: #{gat_forward.4} parent=11 // pred_fallthru
          _
        // Predicated region
        $region17: #{gat_forward.4} parent=11 // pred_check
          %p251 = pneg %p181
        $region18: #{gat_forward.4} parent=11 // pred_check_branch
          %253 = sbr.rel (%p251) target = $region20
        $region19: #{gat_forward.4} parent=11 // pred_region
          _
        $region20: #{gat_forward.4} parent=11 // pred_fallthru
          _
      $region12: #{gat_forward.4} parent=5 // pred_fallthru
        _
      %p254 = scmp.lt.s32.totalorder %s21, 16
      // Predicated region
      $region21: #{gat_forward.4} parent=5 // pred_check
        %p255 = pneg %p254
      $region22: #{gat_forward.4} parent=5 // pred_check_branch
        %257 = sbr.rel (%p255) target = $region24
      $region23: #{gat_forward.4} parent=5 // pred_region
        // Predicated region
        $region25: #{gat_forward.4} parent=23 // pred_check
          %p258 = pneg %p55
        $region26: #{gat_forward.4} parent=23 // pred_check_branch
          %260 = sbr.rel (%p258) target = $region28
        $region27: #{gat_forward.4} parent=23 // pred_region
          %s261 = sand.u32 %s45, 1
          %s262 = sand.u32 %s45, 1
          %s263 = smul.addr %s262, 32
          %s264 = scalar_lea.vmem [#allocation7], %s263
          %s265 = smul.u32 4, %s28
          %s266 = smul.addr %s265, 4
          %s267 = sadd.s32 %s29, %s266
          %s268 = smul.addr %s267, 8
          %s269 = scalar_lea.vmem %s1, %s268
          // Predicated region
          $region29: #{gat_forward.4} parent=27 // pred_check
            _
          $region30: #{gat_forward.4} parent=27 // pred_check_branch
            %271 = sbr.rel (0) target = $region32
          $region31: #{gat_forward.4} parent=27 // pred_region
            // Predicated region
            $region33: #{gat_forward.4} parent=31 // pred_check
              _
            $region34: #{gat_forward.4} parent=31 // pred_check_branch
              %273 = sbr.rel (0) target = $region36
            $region35: #{gat_forward.4} parent=31 // pred_region
              // Predicated region
              $region48: #{gat_forward.4} parent=35 // pred_check
                _
              $region49: #{gat_forward.4} parent=35 // pred_check_branch
                %295 = sbr.rel (0) target = $region51
              $region50: #{gat_forward.4} parent=35 // pred_region
                loop: start=0, step=1, limit=1
                $region52: #{gat_forward.4} parent=50 // loop_pre_header
                  _
                $region53: #{gat_forward.4} parent=50 // loop_header
                  %s297 = sphi 0, %s301
                  %p298 = scmp.ge.s32.totalorder %s297, 1
                  %s302 = sphi %s269, %s269
                  %s303 = sphi %s264, %s264
                $region54: #{gat_forward.4} parent=50 // loop_header_branch
                  %300 = sbr.rel (%p298) target = $region58
                $region55: #{gat_forward.4} parent=50 // loop_body
                  %v304 = vld [vmem:[%s302] sm:$0xff]
                  %305 = vst [vmem:[%s303] sm:$0xff] %v304
                  %v306 = vld [vmem:[%s302 + $0x20] sm:$0xff]
                  %307 = vst [vmem:[%s303 + $0x8] sm:$0xff] %v306
                  %v308 = vld [vmem:[%s302 + $0x40] sm:$0xff]
                  %309 = vst [vmem:[%s303 + $0x10] sm:$0xff] %v308
                  %v310 = vld [vmem:[%s302 + $0x60] sm:$0xff]
                  %311 = vst [vmem:[%s303 + $0x18] sm:$0xff] %v310
                $region56: #{gat_forward.4} parent=50 // loop_footer
                  %s301 = sadd.s32 1, %s297
                $region57: #{gat_forward.4} parent=50 // loop_footer_branch
                  %296 = sbr.rel target = $region53
                $region58: #{gat_forward.4} parent=50 // loop_exit
                  _
              $region51: #{gat_forward.4} parent=35 // pred_fallthru
                _
              // Predicated region
              $region59: #{gat_forward.4} parent=35 // pred_check
                _
              $region60: #{gat_forward.4} parent=35 // pred_check_branch
                %313 = sbr.rel target = $region62
              $region61: #{gat_forward.4} parent=35 // pred_region
                _
              $region62: #{gat_forward.4} parent=35 // pred_fallthru
                _
            $region36: #{gat_forward.4} parent=31 // pred_fallthru
              _
            // Predicated region
            $region37: #{gat_forward.4} parent=31 // pred_check
              _
            $region38: #{gat_forward.4} parent=31 // pred_check_branch
              %275 = sbr.rel target = $region40
            $region39: #{gat_forward.4} parent=31 // pred_region
              %s277 = ssub.s32 256, 1
              loop: start=0, step=1, limit=1
              $region41: #{gat_forward.4} parent=39 // loop_pre_header
                _
              $region42: #{gat_forward.4} parent=39 // loop_header
                %s279 = sphi 0, %s283
                %p280 = scmp.ge.s32.totalorder %s279, 1
                %s284 = sphi %s269, %s269
                %s285 = sphi %s264, %s264
              $region43: #{gat_forward.4} parent=39 // loop_header_branch
                %282 = sbr.rel (%p280) target = $region47
              $region44: #{gat_forward.4} parent=39 // loop_body
                %v286 = vld [vmem:[%s284] sm:%s277]
                %287 = vst [vmem:[%s285] sm:%s277] %v286
                %v288 = vld [vmem:[%s284 + $0x20] sm:%s277]
                %289 = vst [vmem:[%s285 + $0x8] sm:%s277] %v288
                %v290 = vld [vmem:[%s284 + $0x40] sm:%s277]
                %291 = vst [vmem:[%s285 + $0x10] sm:%s277] %v290
                %v292 = vld [vmem:[%s284 + $0x60] sm:%s277]
                %293 = vst [vmem:[%s285 + $0x18] sm:%s277] %v292
              $region45: #{gat_forward.4} parent=39 // loop_footer
                %s283 = sadd.s32 1, %s279
              $region46: #{gat_forward.4} parent=39 // loop_footer_branch
                %278 = sbr.rel target = $region42
              $region47: #{gat_forward.4} parent=39 // loop_exit
                _
            $region40: #{gat_forward.4} parent=31 // pred_fallthru
              _
          $region32: #{gat_forward.4} parent=27 // pred_fallthru
            _
          %314 = vnop
        $region28: #{gat_forward.4} parent=23 // pred_fallthru
          _
        // Predicated region
        $region63: #{gat_forward.4} parent=23 // pred_check
          %p315 = pneg %p81
        $region64: #{gat_forward.4} parent=23 // pred_check_branch
          %317 = sbr.rel (%p315) target = $region66
        $region65: #{gat_forward.4} parent=23 // pred_region
          %s318 = smul.u32 16, %s28
          %p319 = scmp.lt.s32.totalorder %s318, 63
          %s320 = scalar_select %p319, %s318, 63
          %s321 = smul.addr %s320, 8
          %s322 = scalar_lea.vmem %s2, %s321
          %s323 = smul.u32 16, %s28
        $region66: #{gat_forward.4} parent=23 // pred_fallthru
          _
        // Predicated region
        $region67: #{gat_forward.4} parent=23 // pred_check
          %p324 = pneg %p107
        $region68: #{gat_forward.4} parent=23 // pred_check_branch
          %326 = sbr.rel (%p324) target = $region70
        $region69: #{gat_forward.4} parent=23 // pred_region
          %p327 = scmp.lt.s32.totalorder %s29, 3
          %s328 = scalar_select %p327, %s29, 3
          %s329 = scalar_lea.vmem %s3, %s328
        $region70: #{gat_forward.4} parent=23 // pred_fallthru
          _
        // Predicated region
        $region71: #{gat_forward.4} parent=23 // pred_check
          %p330 = pneg %p133
        $region72: #{gat_forward.4} parent=23 // pred_check_branch
          %332 = sbr.rel (%p330) target = $region74
        $region73: #{gat_forward.4} parent=23 // pred_region
          %s333 = smul.u32 16, %s29
          %p334 = scmp.lt.s32.totalorder %s333, 63
          %s335 = scalar_select %p334, %s333, 63
          %s336 = smul.addr %s335, 2
          %s337 = smul.addr %s336, 4
          %s338 = scalar_lea.vmem %s4, %s337
          %s339 = smul.u32 16, %s29
        $region74: #{gat_forward.4} parent=23 // pred_fallthru
          _
      $region24: #{gat_forward.4} parent=5 // pred_fallthru
        _
      %p340 = scmp.le.s32.totalorder 1, %s21
      %p341 = scmp.lt.s32.totalorder %s21, 17
      %p342 = pnand %p340, %p341
      %p343 = pneg %p342
      // Predicated region
      $region75: #{gat_forward.4} parent=5 // pred_check
        _
      $region76: #{gat_forward.4} parent=5 // pred_check_branch
        %345 = sbr.rel (%p342) target = $region78
      $region77: #{gat_forward.4} parent=5 // pred_region
        %s346 = ssub.s32 %s21, 1
        %s347 = sand.u32 %s48, 1
        %s348 = sand.u32 %s48, 1
        %s349 = smul.addr %s348, 32
        %s350 = scalar_lea.vmem [#allocation7], %s349
        // Predicated region
        $region79: #{gat_forward.4} parent=77 // pred_check
          %p351 = pneg %p61
        $region80: #{gat_forward.4} parent=77 // pred_check_branch
          %353 = sbr.rel (%p351) target = $region82
        $region81: #{gat_forward.4} parent=77 // pred_region
          _
        $region82: #{gat_forward.4} parent=77 // pred_fallthru
          _
        %s354 = sand.u32 %s48, 1
        %s355 = sand.u32 %s48, 1
        %s356 = smul.addr %s355, 32
        %s357 = scalar_lea.vmem [#allocation7], %s356
        %p358 = pneg %p61
        %p359 = pneg %p58
        %s360 = smul.u32 16, %s30
        %p361 = scmp.lt.s32.totalorder %s360, 63
        %s362 = scalar_select %p361, %s360, 63
        %s363 = smul.addr %s362, 8
        %s364 = scalar_lea.vmem %s2, %s363
        %p365 = pneg %p87
        %p366 = pneg %p84
        %p367 = scmp.lt.s32.totalorder %s31, 3
        %s368 = scalar_select %p367, %s31, 3
        %s369 = scalar_lea.vmem %s3, %s368
        %p370 = pneg %p113
        %p371 = pneg %p110
        %s372 = smul.u32 16, %s31
        %p373 = scmp.lt.s32.totalorder %s372, 63
        %s374 = scalar_select %p373, %s372, 63
        %s375 = smul.addr %s374, 2
        %s376 = smul.addr %s375, 4
        %s377 = scalar_lea.vmem %s4, %s376
        %p378 = pneg %p139
        %p379 = pneg %p136
        %p380 = pneg %p160
        %p381 = pneg %p157
        %p382 = pneg %p181
        %p383 = pneg %p178
        %p384 = pneg %p207
        %p385 = pneg %p204
        %s386 = smul.u32 16, %s30
        %p387 = scmp.lt.s32.totalorder %s386, 63
        %s388 = scalar_select %p387, %s386, 63
        %s389 = smul.addr %s388, 2
        %s390 = smul.addr %s389, 4
        %s391 = scalar_lea.vmem %s7, %s390
        %p392 = pneg %p233
        %p393 = pneg %p230
        %s394 = smul.u32 16, %s30
        %p395 = scmp.lt.s32.totalorder %s394, 63
        %s396 = scalar_select %p395, %s394, 63
        %s397 = smul.addr %s396, 8
        %s398 = scalar_lea.vmem %s8, %s397
        %s399 = smul.u32 4, %s30
        %s400 = smul.u32 16, %s30
        %p401 = scmp.lt.s32.totalorder %s400, 63
        %s402 = scalar_select %p401, %s400, 63
        %s403 = smul.addr %s402, 8
        %s404 = scalar_lea.vmem %s2, %s403
        %s405 = smul.u32 16, %s30
        %p406 = scmp.lt.s32.totalorder %s31, 3
        %s407 = scalar_select %p406, %s31, 3
        %s408 = scalar_lea.vmem %s3, %s407
        %s409 = smul.u32 16, %s31
        %p410 = scmp.lt.s32.totalorder %s409, 63
        %s411 = scalar_select %p410, %s409, 63
        %s412 = smul.addr %s411, 2
        %s413 = smul.addr %s412, 4
        %s414 = scalar_lea.vmem %s4, %s413
        %s415 = smul.u32 16, %s31
        %s416 = smul.u32 16, %s30
        %p417 = scmp.lt.s32.totalorder %s416, 63
        %s418 = scalar_select %p417, %s416, 63
        %s419 = smul.addr %s418, 2
        %s420 = smul.addr %s419, 4
        %s421 = scalar_lea.vmem %s7, %s420
        %s422 = smul.u32 16, %s30
        %s423 = smul.u32 16, %s30
        %p424 = scmp.lt.s32.totalorder %s423, 63
        %s425 = scalar_select %p424, %s423, 63
        %s426 = smul.addr %s425, 8
        %s427 = scalar_lea.vmem %s8, %s426
        %s428 = smul.u32 16, %s30
        %p432 = scmp.eq.s32.totalorder %s31, 0
        // Predicated region
        $region83: #{gat_forward.4} parent=77 // pred_check
          %p433 = pneg %p432
        $region84: #{gat_forward.4} parent=77 // pred_check_branch
          %435 = sbr.rel (%p433) target = $region86
        $region85: #{gat_forward.4} parent=77 // pred_region
          %vm436 = vcmask 7168
          %437 = vst.msk [vmem:[#allocation2] sm:$0xff] %vm436, -1e+30
          %438 = vst.msk [vmem:[#allocation2 + $0x8] sm:$0xff] %vm436, -1e+30
          %439 = vst.msk [vmem:[#allocation2 + $0x10] sm:$0xff] %vm436, -1e+30
          %440 = vst.msk [vmem:[#allocation2 + $0x18] sm:$0xff] %vm436, -1e+30
          %441 = vst.msk [vmem:[#allocation2 + $0x20] sm:$0xff] %vm436, -1e+30
          %442 = vst.msk [vmem:[#allocation2 + $0x28] sm:$0xff] %vm436, -1e+30
          %443 = vst.msk [vmem:[#allocation2 + $0x30] sm:$0xff] %vm436, -1e+30
          %444 = vst.msk [vmem:[#allocation2 + $0x38] sm:$0xff] %vm436, -1e+30
          %445 = vst.msk [vmem:[#allocation2 + $0x40] sm:$0xff] %vm436, -1e+30
          %446 = vst.msk [vmem:[#allocation2 + $0x48] sm:$0xff] %vm436, -1e+30
          %447 = vst.msk [vmem:[#allocation2 + $0x50] sm:$0xff] %vm436, -1e+30
          %448 = vst.msk [vmem:[#allocation2 + $0x58] sm:$0xff] %vm436, -1e+30
          %449 = vst.msk [vmem:[#allocation2 + $0x60] sm:$0xff] %vm436, -1e+30
          %450 = vst.msk [vmem:[#allocation2 + $0x68] sm:$0xff] %vm436, -1e+30
          %451 = vst.msk [vmem:[#allocation2 + $0x70] sm:$0xff] %vm436, -1e+30
          %452 = vst.msk [vmem:[#allocation2 + $0x78] sm:$0xff] %vm436, -1e+30
          %453 = vst.msk [vmem:[#allocation3] sm:$0xff] %vm436, 0.0
          %454 = vst.msk [vmem:[#allocation3 + $0x8] sm:$0xff] %vm436, 0.0
          %455 = vst.msk [vmem:[#allocation3 + $0x10] sm:$0xff] %vm436, 0.0
          %456 = vst.msk [vmem:[#allocation3 + $0x18] sm:$0xff] %vm436, 0.0
          %457 = vst.msk [vmem:[#allocation3 + $0x20] sm:$0xff] %vm436, 0.0
          %458 = vst.msk [vmem:[#allocation3 + $0x28] sm:$0xff] %vm436, 0.0
          %459 = vst.msk [vmem:[#allocation3 + $0x30] sm:$0xff] %vm436, 0.0
          %460 = vst.msk [vmem:[#allocation3 + $0x38] sm:$0xff] %vm436, 0.0
          %461 = vst.msk [vmem:[#allocation3 + $0x40] sm:$0xff] %vm436, 0.0
          %462 = vst.msk [vmem:[#allocation3 + $0x48] sm:$0xff] %vm436, 0.0
          %463 = vst.msk [vmem:[#allocation3 + $0x50] sm:$0xff] %vm436, 0.0
          %464 = vst.msk [vmem:[#allocation3 + $0x58] sm:$0xff] %vm436, 0.0
          %465 = vst.msk [vmem:[#allocation3 + $0x60] sm:$0xff] %vm436, 0.0
          %466 = vst.msk [vmem:[#allocation3 + $0x68] sm:$0xff] %vm436, 0.0
          %467 = vst.msk [vmem:[#allocation3 + $0x70] sm:$0xff] %vm436, 0.0
          %468 = vst.msk [vmem:[#allocation3 + $0x78] sm:$0xff] %vm436, 0.0
          %469 = vst [vmem:[#allocation4] sm:$0xff] 0.0
          %470 = vst [vmem:[#allocation4 + $0x8] sm:$0xff] 0.0
          %471 = vst [vmem:[#allocation4 + $0x10] sm:$0xff] 0.0
          %472 = vst [vmem:[#allocation4 + $0x18] sm:$0xff] 0.0
          %473 = vst [vmem:[#allocation4 + $0x20] sm:$0xff] 0.0
          %474 = vst [vmem:[#allocation4 + $0x28] sm:$0xff] 0.0
          %475 = vst [vmem:[#allocation4 + $0x30] sm:$0xff] 0.0
          %476 = vst [vmem:[#allocation4 + $0x38] sm:$0xff] 0.0
          %477 = vst [vmem:[#allocation4 + $0x40] sm:$0xff] 0.0
          %478 = vst [vmem:[#allocation4 + $0x48] sm:$0xff] 0.0
          %479 = vst [vmem:[#allocation4 + $0x50] sm:$0xff] 0.0
          %480 = vst [vmem:[#allocation4 + $0x58] sm:$0xff] 0.0
          %481 = vst [vmem:[#allocation4 + $0x60] sm:$0xff] 0.0
          %482 = vst [vmem:[#allocation4 + $0x68] sm:$0xff] 0.0
          %483 = vst [vmem:[#allocation4 + $0x70] sm:$0xff] 0.0
          %484 = vst [vmem:[#allocation4 + $0x78] sm:$0xff] 0.0
          %485 = vst [vmem:[#allocation4 + $0x80] sm:$0xff] 0.0
          %486 = vst [vmem:[#allocation4 + $0x88] sm:$0xff] 0.0
          %487 = vst [vmem:[#allocation4 + $0x90] sm:$0xff] 0.0
          %488 = vst [vmem:[#allocation4 + $0x98] sm:$0xff] 0.0
          %489 = vst [vmem:[#allocation4 + $0xa0] sm:$0xff] 0.0
          %490 = vst [vmem:[#allocation4 + $0xa8] sm:$0xff] 0.0
          %491 = vst [vmem:[#allocation4 + $0xb0] sm:$0xff] 0.0
          %492 = vst [vmem:[#allocation4 + $0xb8] sm:$0xff] 0.0
          %493 = vst [vmem:[#allocation4 + $0xc0] sm:$0xff] 0.0
          %494 = vst [vmem:[#allocation4 + $0xc8] sm:$0xff] 0.0
          %495 = vst [vmem:[#allocation4 + $0xd0] sm:$0xff] 0.0
          %496 = vst [vmem:[#allocation4 + $0xd8] sm:$0xff] 0.0
          %497 = vst [vmem:[#allocation4 + $0xe0] sm:$0xff] 0.0
          %498 = vst [vmem:[#allocation4 + $0xe8] sm:$0xff] 0.0
          %499 = vst [vmem:[#allocation4 + $0xf0] sm:$0xff] 0.0
          %500 = vst [vmem:[#allocation4 + $0xf8] sm:$0xff] 0.0
        $region86: #{gat_forward.4} parent=77 // pred_fallthru
          _
        %s501 = smul.u32 %s30, 4
        %s502 = sadd.s32 %s501, %s31
        %s503 = sld [smem:[#allocation6 + %s502]]
        %p504 = scmp.ne.s32.totalorder %s503, 0
        // Predicated region
        $region87: #{gat_forward.4} parent=77 // pred_check
          %p505 = pneg %p504
        $region88: #{gat_forward.4} parent=77 // pred_check_branch
          %507 = sbr.rel (%p505) target = $region90
        $region89: #{gat_forward.4} parent=77 // pred_region
          %v508 = vld [vmem:[%s404] sm:$0xff]
          %v509 = vld [vmem:[%s404 + $0x8] sm:$0xff]
          %v510 = vld [vmem:[%s404 + $0x10] sm:$0xff]
          %v511 = vld [vmem:[%s404 + $0x18] sm:$0xff]
          %v512 = vld [vmem:[%s404 + $0x20] sm:$0xff]
          %v513 = vld [vmem:[%s404 + $0x28] sm:$0xff]
          %v514 = vld [vmem:[%s404 + $0x30] sm:$0xff]
          %v515 = vld [vmem:[%s404 + $0x38] sm:$0xff]
          %v516 = vld [vmem:[%s404 + $0x40] sm:$0xff]
          %v517 = vld [vmem:[%s404 + $0x48] sm:$0xff]
          %v518 = vld [vmem:[%s404 + $0x50] sm:$0xff]
          %v519 = vld [vmem:[%s404 + $0x58] sm:$0xff]
          %v520 = vld [vmem:[%s404 + $0x60] sm:$0xff]
          %v521 = vld [vmem:[%s404 + $0x68] sm:$0xff]
          %v522 = vld [vmem:[%s404 + $0x70] sm:$0xff]
          %v523 = vld [vmem:[%s404 + $0x78] sm:$0xff]
          %v524 = vld [vmem:[%s408] sm:$0x1]
          %526 = vset.pattern.permute.xlu0 0
          %527 = vperm.xlu0 %526, %v508
          %v528 = vpop.permute.xlu0 %527
          %531 = vset.pattern.permute.xlu0 0
          %532 = vperm.xlu0 %531, %v509
          %v533 = vpop.permute.xlu0 %532
          %536 = vset.pattern.permute.xlu0 0
          %537 = vperm.xlu0 %536, %v510
          %v538 = vpop.permute.xlu0 %537
          %541 = vset.pattern.permute.xlu0 0
          %542 = vperm.xlu0 %541, %v511
          %v543 = vpop.permute.xlu0 %542
          %546 = vset.pattern.permute.xlu0 0
          %547 = vperm.xlu0 %546, %v512
          %v548 = vpop.permute.xlu0 %547
          %551 = vset.pattern.permute.xlu0 0
          %552 = vperm.xlu0 %551, %v513
          %v553 = vpop.permute.xlu0 %552
          %556 = vset.pattern.permute.xlu0 0
          %557 = vperm.xlu0 %556, %v514
          %v558 = vpop.permute.xlu0 %557
          %561 = vset.pattern.permute.xlu0 0
          %562 = vperm.xlu0 %561, %v515
          %v563 = vpop.permute.xlu0 %562
          %566 = vset.pattern.permute.xlu0 0
          %567 = vperm.xlu0 %566, %v516
          %v568 = vpop.permute.xlu0 %567
          %571 = vset.pattern.permute.xlu0 0
          %572 = vperm.xlu0 %571, %v517
          %v573 = vpop.permute.xlu0 %572
          %576 = vset.pattern.permute.xlu0 0
          %577 = vperm.xlu0 %576, %v518
          %v578 = vpop.permute.xlu0 %577
          %581 = vset.pattern.permute.xlu0 0
          %582 = vperm.xlu0 %581, %v519
          %v583 = vpop.permute.xlu0 %582
          %586 = vset.pattern.permute.xlu0 0
          %587 = vperm.xlu0 %586, %v520
          %v588 = vpop.permute.xlu0 %587
          %591 = vset.pattern.permute.xlu0 0
          %592 = vperm.xlu0 %591, %v521
          %v593 = vpop.permute.xlu0 %592
          %596 = vset.pattern.permute.xlu0 0
          %597 = vperm.xlu0 %596, %v522
          %v598 = vpop.permute.xlu0 %597
          %601 = vset.pattern.permute.xlu0 0
          %602 = vperm.xlu0 %601, %v523
          %v603 = vpop.permute.xlu0 %602
          %v606 = vlaneseq
          %v607 = vshrl.u32 %v606, 7
          %v608 = vsub.s32 0, %v607
          %v609 = vrot.slane %v524, %v608
          %v611 = vadd.f32 %v528, %v609
          %v612 = vadd.f32 %v533, %v609
          %v613 = vadd.f32 %v538, %v609
          %v614 = vadd.f32 %v543, %v609
          %v615 = vadd.f32 %v548, %v609
          %v616 = vadd.f32 %v553, %v609
          %v617 = vadd.f32 %v558, %v609
          %v618 = vadd.f32 %v563, %v609
          %v619 = vadd.f32 %v568, %v609
          %v620 = vadd.f32 %v573, %v609
          %v621 = vadd.f32 %v578, %v609
          %v622 = vadd.f32 %v583, %v609
          %v623 = vadd.f32 %v588, %v609
          %v624 = vadd.f32 %v593, %v609
          %v625 = vadd.f32 %v598, %v609
          %v626 = vadd.f32 %v603, %v609
          %v627 = vmul.f32 %v611, 0.2
          %v628 = vmul.f32 %v612, 0.2
          %v629 = vmul.f32 %v613, 0.2
          %v630 = vmul.f32 %v614, 0.2
          %v631 = vmul.f32 %v615, 0.2
          %v632 = vmul.f32 %v616, 0.2
          %v633 = vmul.f32 %v617, 0.2
          %v634 = vmul.f32 %v618, 0.2
          %v635 = vmul.f32 %v619, 0.2
          %v636 = vmul.f32 %v620, 0.2
          %v637 = vmul.f32 %v621, 0.2
          %v638 = vmul.f32 %v622, 0.2
          %v639 = vmul.f32 %v623, 0.2
          %v640 = vmul.f32 %v624, 0.2
          %v641 = vmul.f32 %v625, 0.2
          %v642 = vmul.f32 %v626, 0.2
          %v643 = vmax.f32 %v611, %v627
          %v644 = vmax.f32 %v612, %v628
          %v645 = vmax.f32 %v613, %v629
          %v646 = vmax.f32 %v614, %v630
          %v647 = vmax.f32 %v615, %v631
          %v648 = vmax.f32 %v616, %v632
          %v649 = vmax.f32 %v617, %v633
          %v650 = vmax.f32 %v618, %v634
          %v651 = vmax.f32 %v619, %v635
          %v652 = vmax.f32 %v620, %v636
          %v653 = vmax.f32 %v621, %v637
          %v654 = vmax.f32 %v622, %v638
          %v655 = vmax.f32 %v623, %v639
          %v656 = vmax.f32 %v624, %v640
          %v657 = vmax.f32 %v625, %v641
          %v658 = vmax.f32 %v626, %v642
          %v659 = vld [vmem:[%s350] sm:$0xff]
          %v660 = vld [vmem:[%s350 + $0x8] sm:$0xff]
          %v661 = vld [vmem:[%s350 + $0x10] sm:$0xff]
          %v662 = vld [vmem:[%s350 + $0x18] sm:$0xff]
          %vm663 = vnez %v659
          %vm664 = vnez %v660
          %vm665 = vnez %v661
          %vm666 = vnez %v662
          %v667 = vsel %vm663, 16843009, 0
          %v668 = vsel %vm664, 16843009, 0
          %v669 = vsel %vm665, 16843009, 0
          %v670 = vsel %vm666, 16843009, 0
          %v671 = vunpack.c.0.s8 %v667
          %v672 = vunpack.c.1.s8 %v667
          %v673 = vunpack.c.2.s8 %v667
          %v674 = vunpack.c.3.s8 %v667
          %v675 = vunpack.c.0.s8 %v668
          %v676 = vunpack.c.1.s8 %v668
          %v677 = vunpack.c.2.s8 %v668
          %v678 = vunpack.c.3.s8 %v668
          %v679 = vunpack.c.0.s8 %v669
          %v680 = vunpack.c.1.s8 %v669
          %v681 = vunpack.c.2.s8 %v669
          %v682 = vunpack.c.3.s8 %v669
          %v683 = vunpack.c.0.s8 %v670
          %v684 = vunpack.c.1.s8 %v670
          %v685 = vunpack.c.2.s8 %v670
          %v686 = vunpack.c.3.s8 %v670
          %v687 = vpack.c.b16 %v671, %v671
          %v688 = vpack.c.b8 %v687, %v687
          %v689 = vpack.c.b16 %v672, %v672
          %v690 = vpack.c.b8 %v689, %v689
          %v691 = vpack.c.b16 %v673, %v673
          %v692 = vpack.c.b8 %v691, %v691
          %v693 = vpack.c.b16 %v674, %v674
          %v694 = vpack.c.b8 %v693, %v693
          %v695 = vpack.c.b16 %v675, %v675
          %v696 = vpack.c.b8 %v695, %v695
          %v697 = vpack.c.b16 %v676, %v676
          %v698 = vpack.c.b8 %v697, %v697
          %v699 = vpack.c.b16 %v677, %v677
          %v700 = vpack.c.b8 %v699, %v699
          %v701 = vpack.c.b16 %v678, %v678
          %v702 = vpack.c.b8 %v701, %v701
          %v703 = vpack.c.b16 %v679, %v679
          %v704 = vpack.c.b8 %v703, %v703
          %v705 = vpack.c.b16 %v680, %v680
          %v706 = vpack.c.b8 %v705, %v705
          %v707 = vpack.c.b16 %v681, %v681
          %v708 = vpack.c.b8 %v707, %v707
          %v709 = vpack.c.b16 %v682, %v682
          %v710 = vpack.c.b8 %v709, %v709
          %v711 = vpack.c.b16 %v683, %v683
          %v712 = vpack.c.b8 %v711, %v711
          %v713 = vpack.c.b16 %v684, %v684
          %v714 = vpack.c.b8 %v713, %v713
          %v715 = vpack.c.b16 %v685, %v685
          %v716 = vpack.c.b8 %v715, %v715
          %v717 = vpack.c.b16 %v686, %v686
          %v718 = vpack.c.b8 %v717, %v717
          %vm719 = vnez %v688
          %vm720 = vnez %v690
          %vm721 = vnez %v692
          %vm722 = vnez %v694
          %vm723 = vnez %v696
          %vm724 = vnez %v698
          %vm725 = vnez %v700
          %vm726 = vnez %v702
          %vm727 = vnez %v704
          %vm728 = vnez %v706
          %vm729 = vnez %v708
          %vm730 = vnez %v710
          %vm731 = vnez %v712
          %vm732 = vnez %v714
          %vm733 = vnez %v716
          %vm734 = vnez %v718
          %v735 = vsel %vm719, 16843009, 0
          %v736 = vsel %vm720, 16843009, 0
          %v737 = vsel %vm721, 16843009, 0
          %v738 = vsel %vm722, 16843009, 0
          %v739 = vsel %vm723, 16843009, 0
          %v740 = vsel %vm724, 16843009, 0
          %v741 = vsel %vm725, 16843009, 0
          %v742 = vsel %vm726, 16843009, 0
          %v743 = vsel %vm727, 16843009, 0
          %v744 = vsel %vm728, 16843009, 0
          %v745 = vsel %vm729, 16843009, 0
          %v746 = vsel %vm730, 16843009, 0
          %v747 = vsel %vm731, 16843009, 0
          %v748 = vsel %vm732, 16843009, 0
          %v749 = vsel %vm733, 16843009, 0
          %v750 = vsel %vm734, 16843009, 0
          %v751 = vunpack.c.0.s8 %v735
          %v752 = vunpack.c.0.s8 %v736
          %v753 = vunpack.c.0.s8 %v737
          %v754 = vunpack.c.0.s8 %v738
          %v755 = vunpack.c.0.s8 %v739
          %v756 = vunpack.c.0.s8 %v740
          %v757 = vunpack.c.0.s8 %v741
          %v758 = vunpack.c.0.s8 %v742
          %v759 = vunpack.c.0.s8 %v743
          %v760 = vunpack.c.0.s8 %v744
          %v761 = vunpack.c.0.s8 %v745
          %v762 = vunpack.c.0.s8 %v746
          %v763 = vunpack.c.0.s8 %v747
          %v764 = vunpack.c.0.s8 %v748
          %v765 = vunpack.c.0.s8 %v749
          %v766 = vunpack.c.0.s8 %v750
          %vm767 = vcmp.ne.s32.totalorder %v751, 0
          %vm768 = vcmp.ne.s32.totalorder %v752, 0
          %vm769 = vcmp.ne.s32.totalorder %v753, 0
          %vm770 = vcmp.ne.s32.totalorder %v754, 0
          %vm771 = vcmp.ne.s32.totalorder %v755, 0
          %vm772 = vcmp.ne.s32.totalorder %v756, 0
          %vm773 = vcmp.ne.s32.totalorder %v757, 0
          %vm774 = vcmp.ne.s32.totalorder %v758, 0
          %vm775 = vcmp.ne.s32.totalorder %v759, 0
          %vm776 = vcmp.ne.s32.totalorder %v760, 0
          %vm777 = vcmp.ne.s32.totalorder %v761, 0
          %vm778 = vcmp.ne.s32.totalorder %v762, 0
          %vm779 = vcmp.ne.s32.totalorder %v763, 0
          %vm780 = vcmp.ne.s32.totalorder %v764, 0
          %vm781 = vcmp.ne.s32.totalorder %v765, 0
          %vm782 = vcmp.ne.s32.totalorder %v766, 0
          %v783 = vsel %vm767, %v643, -1e+30
          %v784 = vsel %vm768, %v644, -1e+30
          %v785 = vsel %vm769, %v645, -1e+30
          %v786 = vsel %vm770, %v646, -1e+30
          %v787 = vsel %vm771, %v647, -1e+30
          %v788 = vsel %vm772, %v648, -1e+30
          %v789 = vsel %vm773, %v649, -1e+30
          %v790 = vsel %vm774, %v650, -1e+30
          %v791 = vsel %vm775, %v651, -1e+30
          %v792 = vsel %vm776, %v652, -1e+30
          %v793 = vsel %vm777, %v653, -1e+30
          %v794 = vsel %vm778, %v654, -1e+30
          %v795 = vsel %vm779, %v655, -1e+30
          %v796 = vsel %vm780, %v656, -1e+30
          %v797 = vsel %vm781, %v657, -1e+30
          %v798 = vsel %vm782, %v658, -1e+30
          %v799 = vld [vmem:[#allocation2] sm:$0xff]
          %v800 = vld [vmem:[#allocation2 + $0x8] sm:$0xff]
          %v801 = vld [vmem:[#allocation2 + $0x10] sm:$0xff]
          %v802 = vld [vmem:[#allocation2 + $0x18] sm:$0xff]
          %v803 = vld [vmem:[#allocation2 + $0x20] sm:$0xff]
          %v804 = vld [vmem:[#allocation2 + $0x28] sm:$0xff]
          %v805 = vld [vmem:[#allocation2 + $0x30] sm:$0xff]
          %v806 = vld [vmem:[#allocation2 + $0x38] sm:$0xff]
          %v807 = vld [vmem:[#allocation2 + $0x40] sm:$0xff]
          %v808 = vld [vmem:[#allocation2 + $0x48] sm:$0xff]
          %v809 = vld [vmem:[#allocation2 + $0x50] sm:$0xff]
          %v810 = vld [vmem:[#allocation2 + $0x58] sm:$0xff]
          %v811 = vld [vmem:[#allocation2 + $0x60] sm:$0xff]
          %v812 = vld [vmem:[#allocation2 + $0x68] sm:$0xff]
          %v813 = vld [vmem:[#allocation2 + $0x70] sm:$0xff]
          %v814 = vld [vmem:[#allocation2 + $0x78] sm:$0xff]
          %815 = vmax.xlane.f32.xlu0 %v783
          %v816 = vpop.xlane.xlu0 %815
          %817 = vmax.xlane.f32.xlu0 %v784
          %v818 = vpop.xlane.xlu0 %817
          %819 = vmax.xlane.f32.xlu0 %v785
          %v820 = vpop.xlane.xlu0 %819
          %821 = vmax.xlane.f32.xlu0 %v786
          %v822 = vpop.xlane.xlu0 %821
          %823 = vmax.xlane.f32.xlu0 %v787
          %v824 = vpop.xlane.xlu0 %823
          %825 = vmax.xlane.f32.xlu0 %v788
          %v826 = vpop.xlane.xlu0 %825
          %827 = vmax.xlane.f32.xlu0 %v789
          %v828 = vpop.xlane.xlu0 %827
          %829 = vmax.xlane.f32.xlu0 %v790
          %v830 = vpop.xlane.xlu0 %829
          %831 = vmax.xlane.f32.xlu0 %v791
          %v832 = vpop.xlane.xlu0 %831
          %833 = vmax.xlane.f32.xlu0 %v792
          %v834 = vpop.xlane.xlu0 %833
          %835 = vmax.xlane.f32.xlu0 %v793
          %v836 = vpop.xlane.xlu0 %835
          %837 = vmax.xlane.f32.xlu0 %v794
          %v838 = vpop.xlane.xlu0 %837
          %839 = vmax.xlane.f32.xlu0 %v795
          %v840 = vpop.xlane.xlu0 %839
          %841 = vmax.xlane.f32.xlu0 %v796
          %v842 = vpop.xlane.xlu0 %841
          %843 = vmax.xlane.f32.xlu0 %v797
          %v844 = vpop.xlane.xlu0 %843
          %845 = vmax.xlane.f32.xlu0 %v798
          %v846 = vpop.xlane.xlu0 %845
          %v847 = vmax.f32 %v799, %v816
          %v848 = vmax.f32 %v800, %v818
          %v849 = vmax.f32 %v801, %v820
          %v850 = vmax.f32 %v802, %v822
          %v851 = vmax.f32 %v803, %v824
          %v852 = vmax.f32 %v804, %v826
          %v853 = vmax.f32 %v805, %v828
          %v854 = vmax.f32 %v806, %v830
          %v855 = vmax.f32 %v807, %v832
          %v856 = vmax.f32 %v808, %v834
          %v857 = vmax.f32 %v809, %v836
          %v858 = vmax.f32 %v810, %v838
          %v859 = vmax.f32 %v811, %v840
          %v860 = vmax.f32 %v812, %v842
          %v861 = vmax.f32 %v813, %v844
          %v862 = vmax.f32 %v814, %v846
          %v863 = vsub.f32 %v799, %v847
          %v864 = vsub.f32 %v800, %v848
          %v865 = vsub.f32 %v801, %v849
          %v866 = vsub.f32 %v802, %v850
          %v867 = vsub.f32 %v803, %v851
          %v868 = vsub.f32 %v804, %v852
          %v869 = vsub.f32 %v805, %v853
          %v870 = vsub.f32 %v806, %v854
          %v871 = vsub.f32 %v807, %v855
          %v872 = vsub.f32 %v808, %v856
          %v873 = vsub.f32 %v809, %v857
          %v874 = vsub.f32 %v810, %v858
          %v875 = vsub.f32 %v811, %v859
          %v876 = vsub.f32 %v812, %v860
          %v877 = vsub.f32 %v813, %v861
          %v878 = vsub.f32 %v814, %v862
          %v879 = vmul.f32 %v863, 1.442695
          %v880 = vpow.pop %v879
          %v881 = vmul.f32 %v864, 1.442695
          %v882 = vpow.pop %v881
          %v883 = vmul.f32 %v865, 1.442695
          %v884 = vpow.pop %v883
          %v885 = vmul.f32 %v866, 1.442695
          %v886 = vpow.pop %v885
          %v887 = vmul.f32 %v867, 1.442695
          %v888 = vpow.pop %v887
          %v889 = vmul.f32 %v868, 1.442695
          %v890 = vpow.pop %v889
          %v891 = vmul.f32 %v869, 1.442695
          %v892 = vpow.pop %v891
          %v893 = vmul.f32 %v870, 1.442695
          %v894 = vpow.pop %v893
          %v895 = vmul.f32 %v871, 1.442695
          %v896 = vpow.pop %v895
          %v897 = vmul.f32 %v872, 1.442695
          %v898 = vpow.pop %v897
          %v899 = vmul.f32 %v873, 1.442695
          %v900 = vpow.pop %v899
          %v901 = vmul.f32 %v874, 1.442695
          %v902 = vpow.pop %v901
          %v903 = vmul.f32 %v875, 1.442695
          %v904 = vpow.pop %v903
          %v905 = vmul.f32 %v876, 1.442695
          %v906 = vpow.pop %v905
          %v907 = vmul.f32 %v877, 1.442695
          %v908 = vpow.pop %v907
          %v909 = vmul.f32 %v878, 1.442695
          %v910 = vpow.pop %v909
          %912 = vset.pattern.permute.xlu0 0
          %913 = vperm.xlu0 %912, %v847
          %v914 = vpop.permute.xlu0 %913
          %917 = vset.pattern.permute.xlu0 0
          %918 = vperm.xlu0 %917, %v848
          %v919 = vpop.permute.xlu0 %918
          %922 = vset.pattern.permute.xlu0 0
          %923 = vperm.xlu0 %922, %v849
          %v924 = vpop.permute.xlu0 %923
          %927 = vset.pattern.permute.xlu0 0
          %928 = vperm.xlu0 %927, %v850
          %v929 = vpop.permute.xlu0 %928
          %932 = vset.pattern.permute.xlu0 0
          %933 = vperm.xlu0 %932, %v851
          %v934 = vpop.permute.xlu0 %933
          %937 = vset.pattern.permute.xlu0 0
          %938 = vperm.xlu0 %937, %v852
          %v939 = vpop.permute.xlu0 %938
          %942 = vset.pattern.permute.xlu0 0
          %943 = vperm.xlu0 %942, %v853
          %v944 = vpop.permute.xlu0 %943
          %947 = vset.pattern.permute.xlu0 0
          %948 = vperm.xlu0 %947, %v854
          %v949 = vpop.permute.xlu0 %948
          %952 = vset.pattern.permute.xlu0 0
          %953 = vperm.xlu0 %952, %v855
          %v954 = vpop.permute.xlu0 %953
          %957 = vset.pattern.permute.xlu0 0
          %958 = vperm.xlu0 %957, %v856
          %v959 = vpop.permute.xlu0 %958
          %962 = vset.pattern.permute.xlu0 0
          %963 = vperm.xlu0 %962, %v857
          %v964 = vpop.permute.xlu0 %963
          %967 = vset.pattern.permute.xlu0 0
          %968 = vperm.xlu0 %967, %v858
          %v969 = vpop.permute.xlu0 %968
          %972 = vset.pattern.permute.xlu0 0
          %973 = vperm.xlu0 %972, %v859
          %v974 = vpop.permute.xlu0 %973
          %977 = vset.pattern.permute.xlu0 0
          %978 = vperm.xlu0 %977, %v860
          %v979 = vpop.permute.xlu0 %978
          %982 = vset.pattern.permute.xlu0 0
          %983 = vperm.xlu0 %982, %v861
          %v984 = vpop.permute.xlu0 %983
          %987 = vset.pattern.permute.xlu0 0
          %988 = vperm.xlu0 %987, %v862
          %v989 = vpop.permute.xlu0 %988
          %v991 = vsub.f32 %v783, %v914
          %v992 = vsub.f32 %v784, %v919
          %v993 = vsub.f32 %v785, %v924
          %v994 = vsub.f32 %v786, %v929
          %v995 = vsub.f32 %v787, %v934
          %v996 = vsub.f32 %v788, %v939
          %v997 = vsub.f32 %v789, %v944
          %v998 = vsub.f32 %v790, %v949
          %v999 = vsub.f32 %v791, %v954
          %v1000 = vsub.f32 %v792, %v959
          %v1001 = vsub.f32 %v793, %v964
          %v1002 = vsub.f32 %v794, %v969
          %v1003 = vsub.f32 %v795, %v974
          %v1004 = vsub.f32 %v796, %v979
          %v1005 = vsub.f32 %v797, %v984
          %v1006 = vsub.f32 %v798, %v989
          %v1007 = vmul.f32 %v991, 1.442695
          %v1008 = vpow.pop %v1007
          %v1009 = vmul.f32 %v992, 1.442695
          %v1010 = vpow.pop %v1009
          %v1011 = vmul.f32 %v993, 1.442695
          %v1012 = vpow.pop %v1011
          %v1013 = vmul.f32 %v994, 1.442695
          %v1014 = vpow.pop %v1013
          %v1015 = vmul.f32 %v995, 1.442695
          %v1016 = vpow.pop %v1015
          %v1017 = vmul.f32 %v996, 1.442695
          %v1018 = vpow.pop %v1017
          %v1019 = vmul.f32 %v997, 1.442695
          %v1020 = vpow.pop %v1019
          %v1021 = vmul.f32 %v998, 1.442695
          %v1022 = vpow.pop %v1021
          %v1023 = vmul.f32 %v999, 1.442695
          %v1024 = vpow.pop %v1023
          %v1025 = vmul.f32 %v1000, 1.442695
          %v1026 = vpow.pop %v1025
          %v1027 = vmul.f32 %v1001, 1.442695
          %v1028 = vpow.pop %v1027
          %v1029 = vmul.f32 %v1002, 1.442695
          %v1030 = vpow.pop %v1029
          %v1031 = vmul.f32 %v1003, 1.442695
          %v1032 = vpow.pop %v1031
          %v1033 = vmul.f32 %v1004, 1.442695
          %v1034 = vpow.pop %v1033
          %v1035 = vmul.f32 %v1005, 1.442695
          %v1036 = vpow.pop %v1035
          %v1037 = vmul.f32 %v1006, 1.442695
          %v1038 = vpow.pop %v1037
          %v1039 = vld [vmem:[#allocation3] sm:$0xff]
          %v1040 = vld [vmem:[#allocation3 + $0x8] sm:$0xff]
          %v1041 = vld [vmem:[#allocation3 + $0x10] sm:$0xff]
          %v1042 = vld [vmem:[#allocation3 + $0x18] sm:$0xff]
          %v1043 = vld [vmem:[#allocation3 + $0x20] sm:$0xff]
          %v1044 = vld [vmem:[#allocation3 + $0x28] sm:$0xff]
          %v1045 = vld [vmem:[#allocation3 + $0x30] sm:$0xff]
          %v1046 = vld [vmem:[#allocation3 + $0x38] sm:$0xff]
          %v1047 = vld [vmem:[#allocation3 + $0x40] sm:$0xff]
          %v1048 = vld [vmem:[#allocation3 + $0x48] sm:$0xff]
          %v1049 = vld [vmem:[#allocation3 + $0x50] sm:$0xff]
          %v1050 = vld [vmem:[#allocation3 + $0x58] sm:$0xff]
          %v1051 = vld [vmem:[#allocation3 + $0x60] sm:$0xff]
          %v1052 = vld [vmem:[#allocation3 + $0x68] sm:$0xff]
          %v1053 = vld [vmem:[#allocation3 + $0x70] sm:$0xff]
          %v1054 = vld [vmem:[#allocation3 + $0x78] sm:$0xff]
          %v1055 = vmul.f32 %v880, %v1039
          %v1056 = vmul.f32 %v882, %v1040
          %v1057 = vmul.f32 %v884, %v1041
          %v1058 = vmul.f32 %v886, %v1042
          %v1059 = vmul.f32 %v888, %v1043
          %v1060 = vmul.f32 %v890, %v1044
          %v1061 = vmul.f32 %v892, %v1045
          %v1062 = vmul.f32 %v894, %v1046
          %v1063 = vmul.f32 %v896, %v1047
          %v1064 = vmul.f32 %v898, %v1048
          %v1065 = vmul.f32 %v900, %v1049
          %v1066 = vmul.f32 %v902, %v1050
          %v1067 = vmul.f32 %v904, %v1051
          %v1068 = vmul.f32 %v906, %v1052
          %v1069 = vmul.f32 %v908, %v1053
          %v1070 = vmul.f32 %v910, %v1054
          %1071 = vadd.xlane.f32.xlu0 %v1008
          %v1072 = vpop.xlane.xlu0 %1071
          %1073 = vadd.xlane.f32.xlu0 %v1010
          %v1074 = vpop.xlane.xlu0 %1073
          %1075 = vadd.xlane.f32.xlu0 %v1012
          %v1076 = vpop.xlane.xlu0 %1075
          %1077 = vadd.xlane.f32.xlu0 %v1014
          %v1078 = vpop.xlane.xlu0 %1077
          %1079 = vadd.xlane.f32.xlu0 %v1016
          %v1080 = vpop.xlane.xlu0 %1079
          %1081 = vadd.xlane.f32.xlu0 %v1018
          %v1082 = vpop.xlane.xlu0 %1081
          %1083 = vadd.xlane.f32.xlu0 %v1020
          %v1084 = vpop.xlane.xlu0 %1083
          %1085 = vadd.xlane.f32.xlu0 %v1022
          %v1086 = vpop.xlane.xlu0 %1085
          %1087 = vadd.xlane.f32.xlu0 %v1024
          %v1088 = vpop.xlane.xlu0 %1087
          %1089 = vadd.xlane.f32.xlu0 %v1026
          %v1090 = vpop.xlane.xlu0 %1089
          %1091 = vadd.xlane.f32.xlu0 %v1028
          %v1092 = vpop.xlane.xlu0 %1091
          %1093 = vadd.xlane.f32.xlu0 %v1030
          %v1094 = vpop.xlane.xlu0 %1093
          %1095 = vadd.xlane.f32.xlu0 %v1032
          %v1096 = vpop.xlane.xlu0 %1095
          %1097 = vadd.xlane.f32.xlu0 %v1034
          %v1098 = vpop.xlane.xlu0 %1097
          %1099 = vadd.xlane.f32.xlu0 %v1036
          %v1100 = vpop.xlane.xlu0 %1099
          %1101 = vadd.xlane.f32.xlu0 %v1038
          %v1102 = vpop.xlane.xlu0 %1101
          %v1103 = vadd.f32 %v1055, %v1072
          %v1104 = vadd.f32 %v1056, %v1074
          %v1105 = vadd.f32 %v1057, %v1076
          %v1106 = vadd.f32 %v1058, %v1078
          %v1107 = vadd.f32 %v1059, %v1080
          %v1108 = vadd.f32 %v1060, %v1082
          %v1109 = vadd.f32 %v1061, %v1084
          %v1110 = vadd.f32 %v1062, %v1086
          %v1111 = vadd.f32 %v1063, %v1088
          %v1112 = vadd.f32 %v1064, %v1090
          %v1113 = vadd.f32 %v1065, %v1092
          %v1114 = vadd.f32 %v1066, %v1094
          %v1115 = vadd.f32 %v1067, %v1096
          %v1116 = vadd.f32 %v1068, %v1098
          %v1117 = vadd.f32 %v1069, %v1100
          %v1118 = vadd.f32 %v1070, %v1102
          %vm1119 = vcmask 7168
          %1120 = vst.msk [vmem:[#allocation3] sm:$0xff] %vm1119, %v1103
          %1121 = vst.msk [vmem:[#allocation3 + $0x8] sm:$0xff] %vm1119, %v1104
          %1122 = vst.msk [vmem:[#allocation3 + $0x10] sm:$0xff] %vm1119, %v1105
          %1123 = vst.msk [vmem:[#allocation3 + $0x18] sm:$0xff] %vm1119, %v1106
          %1124 = vst.msk [vmem:[#allocation3 + $0x20] sm:$0xff] %vm1119, %v1107
          %1125 = vst.msk [vmem:[#allocation3 + $0x28] sm:$0xff] %vm1119, %v1108
          %1126 = vst.msk [vmem:[#allocation3 + $0x30] sm:$0xff] %vm1119, %v1109
          %1127 = vst.msk [vmem:[#allocation3 + $0x38] sm:$0xff] %vm1119, %v1110
          %1128 = vst.msk [vmem:[#allocation3 + $0x40] sm:$0xff] %vm1119, %v1111
          %1129 = vst.msk [vmem:[#allocation3 + $0x48] sm:$0xff] %vm1119, %v1112
          %1130 = vst.msk [vmem:[#allocation3 + $0x50] sm:$0xff] %vm1119, %v1113
          %1131 = vst.msk [vmem:[#allocation3 + $0x58] sm:$0xff] %vm1119, %v1114
          %1132 = vst.msk [vmem:[#allocation3 + $0x60] sm:$0xff] %vm1119, %v1115
          %1133 = vst.msk [vmem:[#allocation3 + $0x68] sm:$0xff] %vm1119, %v1116
          %1134 = vst.msk [vmem:[#allocation3 + $0x70] sm:$0xff] %vm1119, %v1117
          %1135 = vst.msk [vmem:[#allocation3 + $0x78] sm:$0xff] %vm1119, %v1118
          %v1136 = vld [vmem:[#allocation4] sm:$0xff]
          %v1137 = vld [vmem:[#allocation4 + $0x8] sm:$0xff]
          %v1138 = vld [vmem:[#allocation4 + $0x10] sm:$0xff]
          %v1139 = vld [vmem:[#allocation4 + $0x18] sm:$0xff]
          %v1140 = vld [vmem:[#allocation4 + $0x20] sm:$0xff]
          %v1141 = vld [vmem:[#allocation4 + $0x28] sm:$0xff]
          %v1142 = vld [vmem:[#allocation4 + $0x30] sm:$0xff]
          %v1143 = vld [vmem:[#allocation4 + $0x38] sm:$0xff]
          %v1144 = vld [vmem:[#allocation4 + $0x40] sm:$0xff]
          %v1145 = vld [vmem:[#allocation4 + $0x48] sm:$0xff]
          %v1146 = vld [vmem:[#allocation4 + $0x50] sm:$0xff]
          %v1147 = vld [vmem:[#allocation4 + $0x58] sm:$0xff]
          %v1148 = vld [vmem:[#allocation4 + $0x60] sm:$0xff]
          %v1149 = vld [vmem:[#allocation4 + $0x68] sm:$0xff]
          %v1150 = vld [vmem:[#allocation4 + $0x70] sm:$0xff]
          %v1151 = vld [vmem:[#allocation4 + $0x78] sm:$0xff]
          %v1152 = vld [vmem:[#allocation4 + $0x80] sm:$0xff]
          %v1153 = vld [vmem:[#allocation4 + $0x88] sm:$0xff]
          %v1154 = vld [vmem:[#allocation4 + $0x90] sm:$0xff]
          %v1155 = vld [vmem:[#allocation4 + $0x98] sm:$0xff]
          %v1156 = vld [vmem:[#allocation4 + $0xa0] sm:$0xff]
          %v1157 = vld [vmem:[#allocation4 + $0xa8] sm:$0xff]
          %v1158 = vld [vmem:[#allocation4 + $0xb0] sm:$0xff]
          %v1159 = vld [vmem:[#allocation4 + $0xb8] sm:$0xff]
          %v1160 = vld [vmem:[#allocation4 + $0xc0] sm:$0xff]
          %v1161 = vld [vmem:[#allocation4 + $0xc8] sm:$0xff]
          %v1162 = vld [vmem:[#allocation4 + $0xd0] sm:$0xff]
          %v1163 = vld [vmem:[#allocation4 + $0xd8] sm:$0xff]
          %v1164 = vld [vmem:[#allocation4 + $0xe0] sm:$0xff]
          %v1165 = vld [vmem:[#allocation4 + $0xe8] sm:$0xff]
          %v1166 = vld [vmem:[#allocation4 + $0xf0] sm:$0xff]
          %v1167 = vld [vmem:[#allocation4 + $0xf8] sm:$0xff]
          %1169 = vset.pattern.permute.xlu0 0
          %1170 = vperm.xlu0 %1169, %v880
          %v1171 = vpop.permute.xlu0 %1170
          %1174 = vset.pattern.permute.xlu0 0
          %1175 = vperm.xlu0 %1174, %v882
          %v1176 = vpop.permute.xlu0 %1175
          %1179 = vset.pattern.permute.xlu0 0
          %1180 = vperm.xlu0 %1179, %v884
          %v1181 = vpop.permute.xlu0 %1180
          %1184 = vset.pattern.permute.xlu0 0
          %1185 = vperm.xlu0 %1184, %v886
          %v1186 = vpop.permute.xlu0 %1185
          %1189 = vset.pattern.permute.xlu0 0
          %1190 = vperm.xlu0 %1189, %v888
          %v1191 = vpop.permute.xlu0 %1190
          %1194 = vset.pattern.permute.xlu0 0
          %1195 = vperm.xlu0 %1194, %v890
          %v1196 = vpop.permute.xlu0 %1195
          %1199 = vset.pattern.permute.xlu0 0
          %1200 = vperm.xlu0 %1199, %v892
          %v1201 = vpop.permute.xlu0 %1200
          %1204 = vset.pattern.permute.xlu0 0
          %1205 = vperm.xlu0 %1204, %v894
          %v1206 = vpop.permute.xlu0 %1205
          %1209 = vset.pattern.permute.xlu0 0
          %1210 = vperm.xlu0 %1209, %v896
          %v1211 = vpop.permute.xlu0 %1210
          %1214 = vset.pattern.permute.xlu0 0
          %1215 = vperm.xlu0 %1214, %v898
          %v1216 = vpop.permute.xlu0 %1215
          %1219 = vset.pattern.permute.xlu0 0
          %1220 = vperm.xlu0 %1219, %v900
          %v1221 = vpop.permute.xlu0 %1220
          %1224 = vset.pattern.permute.xlu0 0
          %1225 = vperm.xlu0 %1224, %v902
          %v1226 = vpop.permute.xlu0 %1225
          %1229 = vset.pattern.permute.xlu0 0
          %1230 = vperm.xlu0 %1229, %v904
          %v1231 = vpop.permute.xlu0 %1230
          %1234 = vset.pattern.permute.xlu0 0
          %1235 = vperm.xlu0 %1234, %v906
          %v1236 = vpop.permute.xlu0 %1235
          %1239 = vset.pattern.permute.xlu0 0
          %1240 = vperm.xlu0 %1239, %v908
          %v1241 = vpop.permute.xlu0 %1240
          %1244 = vset.pattern.permute.xlu0 0
          %1245 = vperm.xlu0 %1244, %v910
          %v1246 = vpop.permute.xlu0 %1245
          %v1248 = vmul.f32 %v1171, %v1136
          %v1249 = vmul.f32 %v1171, %v1137
          %v1250 = vmul.f32 %v1176, %v1138
          %v1251 = vmul.f32 %v1176, %v1139
          %v1252 = vmul.f32 %v1181, %v1140
          %v1253 = vmul.f32 %v1181, %v1141
          %v1254 = vmul.f32 %v1186, %v1142
          %v1255 = vmul.f32 %v1186, %v1143
          %v1256 = vmul.f32 %v1191, %v1144
          %v1257 = vmul.f32 %v1191, %v1145
          %v1258 = vmul.f32 %v1196, %v1146
          %v1259 = vmul.f32 %v1196, %v1147
          %v1260 = vmul.f32 %v1201, %v1148
          %v1261 = vmul.f32 %v1201, %v1149
          %v1262 = vmul.f32 %v1206, %v1150
          %v1263 = vmul.f32 %v1206, %v1151
          %v1264 = vmul.f32 %v1211, %v1152
          %v1265 = vmul.f32 %v1211, %v1153
          %v1266 = vmul.f32 %v1216, %v1154
          %v1267 = vmul.f32 %v1216, %v1155
          %v1268 = vmul.f32 %v1221, %v1156
          %v1269 = vmul.f32 %v1221, %v1157
          %v1270 = vmul.f32 %v1226, %v1158
          %v1271 = vmul.f32 %v1226, %v1159
          %v1272 = vmul.f32 %v1231, %v1160
          %v1273 = vmul.f32 %v1231, %v1161
          %v1274 = vmul.f32 %v1236, %v1162
          %v1275 = vmul.f32 %v1236, %v1163
          %v1276 = vmul.f32 %v1241, %v1164
          %v1277 = vmul.f32 %v1241, %v1165
          %v1278 = vmul.f32 %v1246, %v1166
          %v1279 = vmul.f32 %v1246, %v1167
          %v1280 = vpack.c.bf16 %v1010, %v1008
          %v1281 = vpack.c.bf16 %v1014, %v1012
          %v1282 = vpack.c.bf16 %v1018, %v1016
          %v1283 = vpack.c.bf16 %v1022, %v1020
          %v1284 = vpack.c.bf16 %v1026, %v1024
          %v1285 = vpack.c.bf16 %v1030, %v1028
          %v1286 = vpack.c.bf16 %v1034, %v1032
          %v1287 = vpack.c.bf16 %v1038, %v1036
          %v1288 = vld [vmem:[%s414] sm:$0xff]
          %v1289 = vld [vmem:[%s414 + $0x8] sm:$0xff]
          %v1290 = vld [vmem:[%s414 + $0x10] sm:$0xff]
          %v1291 = vld [vmem:[%s414 + $0x18] sm:$0xff]
          %v1292 = vld [vmem:[%s414 + $0x20] sm:$0xff]
          %v1293 = vld [vmem:[%s414 + $0x28] sm:$0xff]
          %v1294 = vld [vmem:[%s414 + $0x30] sm:$0xff]
          %v1295 = vld [vmem:[%s414 + $0x38] sm:$0xff]
          %v1296 = vld [vmem:[%s414 + $0x40] sm:$0xff]
          %v1297 = vld [vmem:[%s414 + $0x48] sm:$0xff]
          %v1298 = vld [vmem:[%s414 + $0x50] sm:$0xff]
          %v1299 = vld [vmem:[%s414 + $0x58] sm:$0xff]
          %v1300 = vld [vmem:[%s414 + $0x60] sm:$0xff]
          %v1301 = vld [vmem:[%s414 + $0x68] sm:$0xff]
          %v1302 = vld [vmem:[%s414 + $0x70] sm:$0xff]
          %v1303 = vld [vmem:[%s414 + $0x78] sm:$0xff]
          %v1320 = vunpack.c.l.b16 %v1288
          %v1321 = vunpack.c.h.b16 %v1288
          %v1322 = vunpack.c.l.b16 %v1289
          %v1323 = vunpack.c.h.b16 %v1289
          %v1324 = vunpack.c.l.b16 %v1290
          %v1325 = vunpack.c.h.b16 %v1290
          %v1326 = vunpack.c.l.b16 %v1291
          %v1327 = vunpack.c.h.b16 %v1291
          %v1328 = vunpack.c.l.b16 %v1292
          %v1329 = vunpack.c.h.b16 %v1292
          %v1330 = vunpack.c.l.b16 %v1293
          %v1331 = vunpack.c.h.b16 %v1293
          %v1332 = vunpack.c.l.b16 %v1294
          %v1333 = vunpack.c.h.b16 %v1294
          %v1334 = vunpack.c.l.b16 %v1295
          %v1335 = vunpack.c.h.b16 %v1295
          %v1336 = vunpack.c.l.b16 %v1296
          %v1337 = vunpack.c.h.b16 %v1296
          %v1338 = vunpack.c.l.b16 %v1297
          %v1339 = vunpack.c.h.b16 %v1297
          %v1340 = vunpack.c.l.b16 %v1298
          %v1341 = vunpack.c.h.b16 %v1298
          %v1342 = vunpack.c.l.b16 %v1299
          %v1343 = vunpack.c.h.b16 %v1299
          %v1344 = vunpack.c.l.b16 %v1300
          %v1345 = vunpack.c.h.b16 %v1300
          %v1346 = vunpack.c.l.b16 %v1301
          %v1347 = vunpack.c.h.b16 %v1301
          %v1348 = vunpack.c.l.b16 %v1302
          %v1349 = vunpack.c.h.b16 %v1302
          %v1350 = vunpack.c.l.b16 %v1303
          %v1351 = vunpack.c.h.b16 %v1303
          %v1352 = vpack.c.b16 %v1322, %v1320
          %v1353 = vpack.c.b16 %v1323, %v1321
          %v1354 = vpack.c.b16 %v1326, %v1324
          %v1355 = vpack.c.b16 %v1327, %v1325
          %v1356 = vpack.c.b16 %v1330, %v1328
          %v1357 = vpack.c.b16 %v1331, %v1329
          %v1358 = vpack.c.b16 %v1334, %v1332
          %v1359 = vpack.c.b16 %v1335, %v1333
          %v1360 = vpack.c.b16 %v1338, %v1336
          %v1361 = vpack.c.b16 %v1339, %v1337
          %v1362 = vpack.c.b16 %v1342, %v1340
          %v1363 = vpack.c.b16 %v1343, %v1341
          %v1364 = vpack.c.b16 %v1346, %v1344
          %v1365 = vpack.c.b16 %v1347, %v1345
          %v1366 = vpack.c.b16 %v1350, %v1348
          %v1367 = vpack.c.b16 %v1351, %v1349
          %1384 = vmatprep.subr.bf16.mxu0 %v1367
          %1385 = vmatpush1.bf16.msra.mxu0 %v1366
          %1386 = vmatprep.subr.bf16.mxu0 %v1365
          %1387 = vmatpush1.bf16.msra.mxu0 %v1364
          %1388 = vmatprep.subr.bf16.mxu0 %v1363
          %1389 = vmatpush1.bf16.msra.mxu0 %v1362
          %1390 = vmatprep.subr.bf16.mxu0 %v1361
          %1391 = vmatpush1.bf16.msra.mxu0 %v1360
          %1392 = vmatprep.subr.bf16.mxu0 %v1359
          %1393 = vmatpush1.bf16.msra.mxu0 %v1358
          %1394 = vmatprep.subr.bf16.mxu0 %v1357
          %1395 = vmatpush1.bf16.msra.mxu0 %v1356
          %1396 = vmatprep.subr.bf16.mxu0 %v1355
          %1397 = vmatpush1.bf16.msra.mxu0 %v1354
          %1398 = vmatprep.subr.bf16.mxu0 %v1353
          %1399 = vmatpush1.bf16.msra.mxu0 %v1352
          %1400 = vmatprep.subr.bf16.mxu0 0
          %1401 = vmatpush2.bf16.msra.mxu0 0
          %1402 = vmatprep.subr.bf16.mxu0 0
          %1403 = vmatpush2.bf16.msra.mxu0 0
          %1404 = vmatprep.subr.bf16.mxu0 0
          %1405 = vmatpush2.bf16.msra.mxu0 0
          %1406 = vmatprep.subr.bf16.mxu0 0
          %1407 = vmatpush2.bf16.msra.mxu0 0
          %1408 = vmatprep.subr.bf16.mxu0 0
          %1409 = vmatpush2.bf16.msra.mxu0 0
          %1410 = vmatprep.subr.bf16.mxu0 0
          %1411 = vmatpush2.bf16.msra.mxu0 0
          %1412 = vmatprep.subr.bf16.mxu0 0
          %1413 = vmatpush2.bf16.msra.mxu0 0
          %1414 = vmatprep.subr.bf16.mxu0 0
          %1415 = vmatpush2.bf16.msra.mxu0 0
          %1416 = vmatprep.mubr.bf16.mxu0 0
          %1417 = vmatmul.mubr.bf16.gmra.mxu0 %v1280
          %v1418 = vpop.f32.mrf.mxu0
          %v1419 = vadd.f32 0.0, %v1418
          %v1420 = vpop.f32.mrf.mxu0
          %v1421 = vadd.f32 0.0, %v1420
          %v1422 = vpop.f32.mrf.mxu0
          %v1423 = vadd.f32 0.0, %v1422
          %v1424 = vpop.f32.mrf.mxu0
          %v1425 = vadd.f32 0.0, %v1424
          %1426 = vmatprep.mubr.bf16.mxu0 0
          %1427 = vmatmul.mubr.bf16.gmra.mxu0 %v1281
          %v1428 = vpop.f32.mrf.mxu0
          %v1429 = vadd.f32 0.0, %v1428
          %v1430 = vpop.f32.mrf.mxu0
          %v1431 = vadd.f32 0.0, %v1430
          %v1432 = vpop.f32.mrf.mxu0
          %v1433 = vadd.f32 0.0, %v1432
          %v1434 = vpop.f32.mrf.mxu0
          %v1435 = vadd.f32 0.0, %v1434
          %1436 = vmatprep.mubr.bf16.mxu0 0
          %1437 = vmatmul.mubr.bf16.gmra.mxu0 %v1282
          %v1438 = vpop.f32.mrf.mxu0
          %v1439 = vadd.f32 0.0, %v1438
          %v1440 = vpop.f32.mrf.mxu0
          %v1441 = vadd.f32 0.0, %v1440
          %v1442 = vpop.f32.mrf.mxu0
          %v1443 = vadd.f32 0.0, %v1442
          %v1444 = vpop.f32.mrf.mxu0
          %v1445 = vadd.f32 0.0, %v1444
          %1446 = vmatprep.mubr.bf16.mxu0 0
          %1447 = vmatmul.mubr.bf16.gmra.mxu0 %v1283
          %v1448 = vpop.f32.mrf.mxu0
          %v1449 = vadd.f32 0.0, %v1448
          %v1450 = vpop.f32.mrf.mxu0
          %v1451 = vadd.f32 0.0, %v1450
          %v1452 = vpop.f32.mrf.mxu0
          %v1453 = vadd.f32 0.0, %v1452
          %v1454 = vpop.f32.mrf.mxu0
          %v1455 = vadd.f32 0.0, %v1454
          %1456 = vmatprep.mubr.bf16.mxu0 0
          %1457 = vmatmul.mubr.bf16.gmra.mxu0 %v1284
          %v1458 = vpop.f32.mrf.mxu0
          %v1459 = vadd.f32 0.0, %v1458
          %v1460 = vpop.f32.mrf.mxu0
          %v1461 = vadd.f32 0.0, %v1460
          %v1462 = vpop.f32.mrf.mxu0
          %v1463 = vadd.f32 0.0, %v1462
          %v1464 = vpop.f32.mrf.mxu0
          %v1465 = vadd.f32 0.0, %v1464
          %1466 = vmatprep.mubr.bf16.mxu0 0
          %1467 = vmatmul.mubr.bf16.gmra.mxu0 %v1285
          %v1468 = vpop.f32.mrf.mxu0
          %v1469 = vadd.f32 0.0, %v1468
          %v1470 = vpop.f32.mrf.mxu0
          %v1471 = vadd.f32 0.0, %v1470
          %v1472 = vpop.f32.mrf.mxu0
          %v1473 = vadd.f32 0.0, %v1472
          %v1474 = vpop.f32.mrf.mxu0
          %v1475 = vadd.f32 0.0, %v1474
          %1476 = vmatprep.mubr.bf16.mxu0 0
          %1477 = vmatmul.mubr.bf16.gmra.mxu0 %v1286
          %v1478 = vpop.f32.mrf.mxu0
          %v1479 = vadd.f32 0.0, %v1478
          %v1480 = vpop.f32.mrf.mxu0
          %v1481 = vadd.f32 0.0, %v1480
          %v1482 = vpop.f32.mrf.mxu0
          %v1483 = vadd.f32 0.0, %v1482
          %v1484 = vpop.f32.mrf.mxu0
          %v1485 = vadd.f32 0.0, %v1484
          %1486 = vmatprep.mubr.bf16.mxu0 0
          %1487 = vmatmul.mubr.bf16.gmra.mxu0 %v1287
          %v1488 = vpop.f32.mrf.mxu0
          %v1489 = vadd.f32 0.0, %v1488
          %v1490 = vpop.f32.mrf.mxu0
          %v1491 = vadd.f32 0.0, %v1490
          %v1492 = vpop.f32.mrf.mxu0
          %v1493 = vadd.f32 0.0, %v1492
          %v1494 = vpop.f32.mrf.mxu0
          %v1495 = vadd.f32 0.0, %v1494
          %1496 = vdwg.mxu0
          %v1497 = vadd.f32 %v1248, %v1419
          %v1498 = vadd.f32 %v1249, %v1421
          %v1499 = vadd.f32 %v1250, %v1423
          %v1500 = vadd.f32 %v1251, %v1425
          %v1501 = vadd.f32 %v1252, %v1429
          %v1502 = vadd.f32 %v1253, %v1431
          %v1503 = vadd.f32 %v1254, %v1433
          %v1504 = vadd.f32 %v1255, %v1435
          %v1505 = vadd.f32 %v1256, %v1439
          %v1506 = vadd.f32 %v1257, %v1441
          %v1507 = vadd.f32 %v1258, %v1443
          %v1508 = vadd.f32 %v1259, %v1445
          %v1509 = vadd.f32 %v1260, %v1449
          %v1510 = vadd.f32 %v1261, %v1451
          %v1511 = vadd.f32 %v1262, %v1453
          %v1512 = vadd.f32 %v1263, %v1455
          %v1513 = vadd.f32 %v1264, %v1459
          %v1514 = vadd.f32 %v1265, %v1461
          %v1515 = vadd.f32 %v1266, %v1463
          %v1516 = vadd.f32 %v1267, %v1465
          %v1517 = vadd.f32 %v1268, %v1469
          %v1518 = vadd.f32 %v1269, %v1471
          %v1519 = vadd.f32 %v1270, %v1473
          %v1520 = vadd.f32 %v1271, %v1475
          %v1521 = vadd.f32 %v1272, %v1479
          %v1522 = vadd.f32 %v1273, %v1481
          %v1523 = vadd.f32 %v1274, %v1483
          %v1524 = vadd.f32 %v1275, %v1485
          %v1525 = vadd.f32 %v1276, %v1489
          %v1526 = vadd.f32 %v1277, %v1491
          %v1527 = vadd.f32 %v1278, %v1493
          %v1528 = vadd.f32 %v1279, %v1495
          %1529 = vst [vmem:[#allocation4] sm:$0xff] %v1497
          %1530 = vst [vmem:[#allocation4 + $0x8] sm:$0xff] %v1498
          %1531 = vst [vmem:[#allocation4 + $0x10] sm:$0xff] %v1499
          %1532 = vst [vmem:[#allocation4 + $0x18] sm:$0xff] %v1500
          %1533 = vst [vmem:[#allocation4 + $0x20] sm:$0xff] %v1501
          %1534 = vst [vmem:[#allocation4 + $0x28] sm:$0xff] %v1502
          %1535 = vst [vmem:[#allocation4 + $0x30] sm:$0xff] %v1503
          %1536 = vst [vmem:[#allocation4 + $0x38] sm:$0xff] %v1504
          %1537 = vst [vmem:[#allocation4 + $0x40] sm:$0xff] %v1505
          %1538 = vst [vmem:[#allocation4 + $0x48] sm:$0xff] %v1506
          %1539 = vst [vmem:[#allocation4 + $0x50] sm:$0xff] %v1507
          %1540 = vst [vmem:[#allocation4 + $0x58] sm:$0xff] %v1508
          %1541 = vst [vmem:[#allocation4 + $0x60] sm:$0xff] %v1509
          %1542 = vst [vmem:[#allocation4 + $0x68] sm:$0xff] %v1510
          %1543 = vst [vmem:[#allocation4 + $0x70] sm:$0xff] %v1511
          %1544 = vst [vmem:[#allocation4 + $0x78] sm:$0xff] %v1512
          %1545 = vst [vmem:[#allocation4 + $0x80] sm:$0xff] %v1513
          %1546 = vst [vmem:[#allocation4 + $0x88] sm:$0xff] %v1514
          %1547 = vst [vmem:[#allocation4 + $0x90] sm:$0xff] %v1515
          %1548 = vst [vmem:[#allocation4 + $0x98] sm:$0xff] %v1516
          %1549 = vst [vmem:[#allocation4 + $0xa0] sm:$0xff] %v1517
          %1550 = vst [vmem:[#allocation4 + $0xa8] sm:$0xff] %v1518
          %1551 = vst [vmem:[#allocation4 + $0xb0] sm:$0xff] %v1519
          %1552 = vst [vmem:[#allocation4 + $0xb8] sm:$0xff] %v1520
          %1553 = vst [vmem:[#allocation4 + $0xc0] sm:$0xff] %v1521
          %1554 = vst [vmem:[#allocation4 + $0xc8] sm:$0xff] %v1522
          %1555 = vst [vmem:[#allocation4 + $0xd0] sm:$0xff] %v1523
          %1556 = vst [vmem:[#allocation4 + $0xd8] sm:$0xff] %v1524
          %1557 = vst [vmem:[#allocation4 + $0xe0] sm:$0xff] %v1525
          %1558 = vst [vmem:[#allocation4 + $0xe8] sm:$0xff] %v1526
          %1559 = vst [vmem:[#allocation4 + $0xf0] sm:$0xff] %v1527
          %1560 = vst [vmem:[#allocation4 + $0xf8] sm:$0xff] %v1528
          %1561 = vst.msk [vmem:[#allocation2] sm:$0xff] %vm1119, %v847
          %1562 = vst.msk [vmem:[#allocation2 + $0x8] sm:$0xff] %vm1119, %v848
          %1563 = vst.msk [vmem:[#allocation2 + $0x10] sm:$0xff] %vm1119, %v849
          %1564 = vst.msk [vmem:[#allocation2 + $0x18] sm:$0xff] %vm1119, %v850
          %1565 = vst.msk [vmem:[#allocation2 + $0x20] sm:$0xff] %vm1119, %v851
          %1566 = vst.msk [vmem:[#allocation2 + $0x28] sm:$0xff] %vm1119, %v852
          %1567 = vst.msk [vmem:[#allocation2 + $0x30] sm:$0xff] %vm1119, %v853
          %1568 = vst.msk [vmem:[#allocation2 + $0x38] sm:$0xff] %vm1119, %v854
          %1569 = vst.msk [vmem:[#allocation2 + $0x40] sm:$0xff] %vm1119, %v855
          %1570 = vst.msk [vmem:[#allocation2 + $0x48] sm:$0xff] %vm1119, %v856
          %1571 = vst.msk [vmem:[#allocation2 + $0x50] sm:$0xff] %vm1119, %v857
          %1572 = vst.msk [vmem:[#allocation2 + $0x58] sm:$0xff] %vm1119, %v858
          %1573 = vst.msk [vmem:[#allocation2 + $0x60] sm:$0xff] %vm1119, %v859
          %1574 = vst.msk [vmem:[#allocation2 + $0x68] sm:$0xff] %vm1119, %v860
          %1575 = vst.msk [vmem:[#allocation2 + $0x70] sm:$0xff] %vm1119, %v861
          %1576 = vst.msk [vmem:[#allocation2 + $0x78] sm:$0xff] %vm1119, %v862
        $region90: #{gat_forward.4} parent=77 // pred_fallthru
          _
        %p1577 = scmp.eq.s32.totalorder %s31, 3
        // Predicated region
        $region91: #{gat_forward.4} parent=77 // pred_check
          %p1578 = pneg %p1577
        $region92: #{gat_forward.4} parent=77 // pred_check_branch
          %1580 = sbr.rel (%p1578) target = $region94
        $region93: #{gat_forward.4} parent=77 // pred_region
          %v1581 = vld [vmem:[#allocation4] sm:$0xff]
          %v1582 = vld [vmem:[#allocation4 + $0x8] sm:$0xff]
          %v1583 = vld [vmem:[#allocation4 + $0x10] sm:$0xff]
          %v1584 = vld [vmem:[#allocation4 + $0x18] sm:$0xff]
          %v1585 = vld [vmem:[#allocation4 + $0x20] sm:$0xff]
          %v1586 = vld [vmem:[#allocation4 + $0x28] sm:$0xff]
          %v1587 = vld [vmem:[#allocation4 + $0x30] sm:$0xff]
          %v1588 = vld [vmem:[#allocation4 + $0x38] sm:$0xff]
          %v1589 = vld [vmem:[#allocation4 + $0x40] sm:$0xff]
          %v1590 = vld [vmem:[#allocation4 + $0x48] sm:$0xff]
          %v1591 = vld [vmem:[#allocation4 + $0x50] sm:$0xff]
          %v1592 = vld [vmem:[#allocation4 + $0x58] sm:$0xff]
          %v1593 = vld [vmem:[#allocation4 + $0x60] sm:$0xff]
          %v1594 = vld [vmem:[#allocation4 + $0x68] sm:$0xff]
          %v1595 = vld [vmem:[#allocation4 + $0x70] sm:$0xff]
          %v1596 = vld [vmem:[#allocation4 + $0x78] sm:$0xff]
          %v1597 = vld [vmem:[#allocation4 + $0x80] sm:$0xff]
          %v1598 = vld [vmem:[#allocation4 + $0x88] sm:$0xff]
          %v1599 = vld [vmem:[#allocation4 + $0x90] sm:$0xff]
          %v1600 = vld [vmem:[#allocation4 + $0x98] sm:$0xff]
          %v1601 = vld [vmem:[#allocation4 + $0xa0] sm:$0xff]
          %v1602 = vld [vmem:[#allocation4 + $0xa8] sm:$0xff]
          %v1603 = vld [vmem:[#allocation4 + $0xb0] sm:$0xff]
          %v1604 = vld [vmem:[#allocation4 + $0xb8] sm:$0xff]
          %v1605 = vld [vmem:[#allocation4 + $0xc0] sm:$0xff]
          %v1606 = vld [vmem:[#allocation4 + $0xc8] sm:$0xff]
          %v1607 = vld [vmem:[#allocation4 + $0xd0] sm:$0xff]
          %v1608 = vld [vmem:[#allocation4 + $0xd8] sm:$0xff]
          %v1609 = vld [vmem:[#allocation4 + $0xe0] sm:$0xff]
          %v1610 = vld [vmem:[#allocation4 + $0xe8] sm:$0xff]
          %v1611 = vld [vmem:[#allocation4 + $0xf0] sm:$0xff]
          %v1612 = vld [vmem:[#allocation4 + $0xf8] sm:$0xff]
          %v1613 = vld [vmem:[#allocation3] sm:$0xff]
          %v1614 = vld [vmem:[#allocation3 + $0x8] sm:$0xff]
          %v1615 = vld [vmem:[#allocation3 + $0x10] sm:$0xff]
          %v1616 = vld [vmem:[#allocation3 + $0x18] sm:$0xff]
          %v1617 = vld [vmem:[#allocation3 + $0x20] sm:$0xff]
          %v1618 = vld [vmem:[#allocation3 + $0x28] sm:$0xff]
          %v1619 = vld [vmem:[#allocation3 + $0x30] sm:$0xff]
          %v1620 = vld [vmem:[#allocation3 + $0x38] sm:$0xff]
          %v1621 = vld [vmem:[#allocation3 + $0x40] sm:$0xff]
          %v1622 = vld [vmem:[#allocation3 + $0x48] sm:$0xff]
          %v1623 = vld [vmem:[#allocation3 + $0x50] sm:$0xff]
          %v1624 = vld [vmem:[#allocation3 + $0x58] sm:$0xff]
          %v1625 = vld [vmem:[#allocation3 + $0x60] sm:$0xff]
          %v1626 = vld [vmem:[#allocation3 + $0x68] sm:$0xff]
          %v1627 = vld [vmem:[#allocation3 + $0x70] sm:$0xff]
          %v1628 = vld [vmem:[#allocation3 + $0x78] sm:$0xff]
          %1630 = vset.pattern.permute.xlu0 0
          %1631 = vperm.xlu0 %1630, %v1613
          %v1632 = vpop.permute.xlu0 %1631
          %1635 = vset.pattern.permute.xlu0 0
          %1636 = vperm.xlu0 %1635, %v1614
          %v1637 = vpop.permute.xlu0 %1636
          %1640 = vset.pattern.permute.xlu0 0
          %1641 = vperm.xlu0 %1640, %v1615
          %v1642 = vpop.permute.xlu0 %1641
          %1645 = vset.pattern.permute.xlu0 0
          %1646 = vperm.xlu0 %1645, %v1616
          %v1647 = vpop.permute.xlu0 %1646
          %1650 = vset.pattern.permute.xlu0 0
          %1651 = vperm.xlu0 %1650, %v1617
          %v1652 = vpop.permute.xlu0 %1651
          %1655 = vset.pattern.permute.xlu0 0
          %1656 = vperm.xlu0 %1655, %v1618
          %v1657 = vpop.permute.xlu0 %1656
          %1660 = vset.pattern.permute.xlu0 0
          %1661 = vperm.xlu0 %1660, %v1619
          %v1662 = vpop.permute.xlu0 %1661
          %1665 = vset.pattern.permute.xlu0 0
          %1666 = vperm.xlu0 %1665, %v1620
          %v1667 = vpop.permute.xlu0 %1666
          %1670 = vset.pattern.permute.xlu0 0
          %1671 = vperm.xlu0 %1670, %v1621
          %v1672 = vpop.permute.xlu0 %1671
          %1675 = vset.pattern.permute.xlu0 0
          %1676 = vperm.xlu0 %1675, %v1622
          %v1677 = vpop.permute.xlu0 %1676
          %1680 = vset.pattern.permute.xlu0 0
          %1681 = vperm.xlu0 %1680, %v1623
          %v1682 = vpop.permute.xlu0 %1681
          %1685 = vset.pattern.permute.xlu0 0
          %1686 = vperm.xlu0 %1685, %v1624
          %v1687 = vpop.permute.xlu0 %1686
          %1690 = vset.pattern.permute.xlu0 0
          %1691 = vperm.xlu0 %1690, %v1625
          %v1692 = vpop.permute.xlu0 %1691
          %1695 = vset.pattern.permute.xlu0 0
          %1696 = vperm.xlu0 %1695, %v1626
          %v1697 = vpop.permute.xlu0 %1696
          %1700 = vset.pattern.permute.xlu0 0
          %1701 = vperm.xlu0 %1700, %v1627
          %v1702 = vpop.permute.xlu0 %1701
          %1705 = vset.pattern.permute.xlu0 0
          %1706 = vperm.xlu0 %1705, %v1628
          %v1707 = vpop.permute.xlu0 %1706
          %v1709 = vrcp.pop %v1632
          %v1710 = vmul.f32 %v1581, %v1709
          %v1711 = vmul.f32 %v1582, %v1709
          %v1712 = vrcp.pop %v1637
          %v1713 = vmul.f32 %v1583, %v1712
          %v1714 = vmul.f32 %v1584, %v1712
          %v1715 = vrcp.pop %v1642
          %v1716 = vmul.f32 %v1585, %v1715
          %v1717 = vmul.f32 %v1586, %v1715
          %v1718 = vrcp.pop %v1647
          %v1719 = vmul.f32 %v1587, %v1718
          %v1720 = vmul.f32 %v1588, %v1718
          %v1721 = vrcp.pop %v1652
          %v1722 = vmul.f32 %v1589, %v1721
          %v1723 = vmul.f32 %v1590, %v1721
          %v1724 = vrcp.pop %v1657
          %v1725 = vmul.f32 %v1591, %v1724
          %v1726 = vmul.f32 %v1592, %v1724
          %v1727 = vrcp.pop %v1662
          %v1728 = vmul.f32 %v1593, %v1727
          %v1729 = vmul.f32 %v1594, %v1727
          %v1730 = vrcp.pop %v1667
          %v1731 = vmul.f32 %v1595, %v1730
          %v1732 = vmul.f32 %v1596, %v1730
          %v1733 = vrcp.pop %v1672
          %v1734 = vmul.f32 %v1597, %v1733
          %v1735 = vmul.f32 %v1598, %v1733
          %v1736 = vrcp.pop %v1677
          %v1737 = vmul.f32 %v1599, %v1736
          %v1738 = vmul.f32 %v1600, %v1736
          %v1739 = vrcp.pop %v1682
          %v1740 = vmul.f32 %v1601, %v1739
          %v1741 = vmul.f32 %v1602, %v1739
          %v1742 = vrcp.pop %v1687
          %v1743 = vmul.f32 %v1603, %v1742
          %v1744 = vmul.f32 %v1604, %v1742
          %v1745 = vrcp.pop %v1692
          %v1746 = vmul.f32 %v1605, %v1745
          %v1747 = vmul.f32 %v1606, %v1745
          %v1748 = vrcp.pop %v1697
          %v1749 = vmul.f32 %v1607, %v1748
          %v1750 = vmul.f32 %v1608, %v1748
          %v1751 = vrcp.pop %v1702
          %v1752 = vmul.f32 %v1609, %v1751
          %v1753 = vmul.f32 %v1610, %v1751
          %v1754 = vrcp.pop %v1707
          %v1755 = vmul.f32 %v1611, %v1754
          %v1756 = vmul.f32 %v1612, %v1754
          %v1757 = vld [vmem:[%s5] sm:$0x3]
          %v1759 = vlaneseq
          %v1760 = vshrl.u32 %v1759, 7
          %v1761 = vsub.s32 0, %v1760
          %v1762 = vrot.slane %v1757, %v1761
          %v1763 = vlaneseq
          %v1764 = vshrl.u32 %v1763, 7
          %v1765 = vsub.s32 1, %v1764
          %v1766 = vrot.slane %v1757, %v1765
          %v1769 = vadd.f32 %v1710, %v1762
          %v1770 = vadd.f32 %v1711, %v1766
          %v1771 = vadd.f32 %v1713, %v1762
          %v1772 = vadd.f32 %v1714, %v1766
          %v1773 = vadd.f32 %v1716, %v1762
          %v1774 = vadd.f32 %v1717, %v1766
          %v1775 = vadd.f32 %v1719, %v1762
          %v1776 = vadd.f32 %v1720, %v1766
          %v1777 = vadd.f32 %v1722, %v1762
          %v1778 = vadd.f32 %v1723, %v1766
          %v1779 = vadd.f32 %v1725, %v1762
          %v1780 = vadd.f32 %v1726, %v1766
          %v1781 = vadd.f32 %v1728, %v1762
          %v1782 = vadd.f32 %v1729, %v1766
          %v1783 = vadd.f32 %v1731, %v1762
          %v1784 = vadd.f32 %v1732, %v1766
          %v1785 = vadd.f32 %v1734, %v1762
          %v1786 = vadd.f32 %v1735, %v1766
          %v1787 = vadd.f32 %v1737, %v1762
          %v1788 = vadd.f32 %v1738, %v1766
          %v1789 = vadd.f32 %v1740, %v1762
          %v1790 = vadd.f32 %v1741, %v1766
          %v1791 = vadd.f32 %v1743, %v1762
          %v1792 = vadd.f32 %v1744, %v1766
          %v1793 = vadd.f32 %v1746, %v1762
          %v1794 = vadd.f32 %v1747, %v1766
          %v1795 = vadd.f32 %v1749, %v1762
          %v1796 = vadd.f32 %v1750, %v1766
          %v1797 = vadd.f32 %v1752, %v1762
          %v1798 = vadd.f32 %v1753, %v1766
          %v1799 = vadd.f32 %v1755, %v1762
          %v1800 = vadd.f32 %v1756, %v1766
          %v1801 = vmax.f32 %v1769, 0.0
          %v1802 = vmax.f32 %v1770, 0.0
          %v1803 = vmax.f32 %v1771, 0.0
          %v1804 = vmax.f32 %v1772, 0.0
          %v1805 = vmax.f32 %v1773, 0.0
          %v1806 = vmax.f32 %v1774, 0.0
          %v1807 = vmax.f32 %v1775, 0.0
          %v1808 = vmax.f32 %v1776, 0.0
          %v1809 = vmax.f32 %v1777, 0.0
          %v1810 = vmax.f32 %v1778, 0.0
          %v1811 = vmax.f32 %v1779, 0.0
          %v1812 = vmax.f32 %v1780, 0.0
          %v1813 = vmax.f32 %v1781, 0.0
          %v1814 = vmax.f32 %v1782, 0.0
          %v1815 = vmax.f32 %v1783, 0.0
          %v1816 = vmax.f32 %v1784, 0.0
          %v1817 = vmax.f32 %v1785, 0.0
          %v1818 = vmax.f32 %v1786, 0.0
          %v1819 = vmax.f32 %v1787, 0.0
          %v1820 = vmax.f32 %v1788, 0.0
          %v1821 = vmax.f32 %v1789, 0.0
          %v1822 = vmax.f32 %v1790, 0.0
          %v1823 = vmax.f32 %v1791, 0.0
          %v1824 = vmax.f32 %v1792, 0.0
          %v1825 = vmax.f32 %v1793, 0.0
          %v1826 = vmax.f32 %v1794, 0.0
          %v1827 = vmax.f32 %v1795, 0.0
          %v1828 = vmax.f32 %v1796, 0.0
          %v1829 = vmax.f32 %v1797, 0.0
          %v1830 = vmax.f32 %v1798, 0.0
          %v1831 = vmax.f32 %v1799, 0.0
          %v1832 = vmax.f32 %v1800, 0.0
          %v1833 = vpack.c.bf16 %v1803, %v1801
          %v1834 = vpack.c.bf16 %v1804, %v1802
          %v1835 = vpack.c.bf16 %v1807, %v1805
          %v1836 = vpack.c.bf16 %v1808, %v1806
          %v1837 = vpack.c.bf16 %v1811, %v1809
          %v1838 = vpack.c.bf16 %v1812, %v1810
          %v1839 = vpack.c.bf16 %v1815, %v1813
          %v1840 = vpack.c.bf16 %v1816, %v1814
          %v1841 = vpack.c.bf16 %v1819, %v1817
          %v1842 = vpack.c.bf16 %v1820, %v1818
          %v1843 = vpack.c.bf16 %v1823, %v1821
          %v1844 = vpack.c.bf16 %v1824, %v1822
          %v1845 = vpack.c.bf16 %v1827, %v1825
          %v1846 = vpack.c.bf16 %v1828, %v1826
          %v1847 = vpack.c.bf16 %v1831, %v1829
          %v1848 = vpack.c.bf16 %v1832, %v1830
          %v1849 = vld [vmem:[%s6] sm:$0xff]
          %v1850 = vld [vmem:[%s6 + $0x8] sm:$0xf]
          %v1851 = vld [vmem:[%s6 + $0xc] sm:$0xff]
          %v1852 = vld [vmem:[%s6 + $0x14] sm:$0xf]
          %v1853 = vld [vmem:[%s6 + $0x18] sm:$0xff]
          %v1854 = vld [vmem:[%s6 + $0x20] sm:$0xf]
          %v1855 = vld [vmem:[%s6 + $0x24] sm:$0xff]
          %v1856 = vld [vmem:[%s6 + $0x2c] sm:$0xf]
          %v1857 = vld [vmem:[%s6 + $0x30] sm:$0xff]
          %v1858 = vld [vmem:[%s6 + $0x38] sm:$0xf]
          %v1859 = vld [vmem:[%s6 + $0x3c] sm:$0xff]
          %v1860 = vld [vmem:[%s6 + $0x44] sm:$0xf]
          %v1861 = vld [vmem:[%s6 + $0x48] sm:$0xff]
          %v1862 = vld [vmem:[%s6 + $0x50] sm:$0xf]
          %v1863 = vld [vmem:[%s6 + $0x54] sm:$0xff]
          %v1864 = vld [vmem:[%s6 + $0x5c] sm:$0xf]
          %v1865 = vld [vmem:[%s6 + $0x60] sm:$0xff]
          %v1866 = vld [vmem:[%s6 + $0x68] sm:$0xf]
          %v1867 = vld [vmem:[%s6 + $0x6c] sm:$0xff]
          %v1868 = vld [vmem:[%s6 + $0x74] sm:$0xf]
          %v1869 = vld [vmem:[%s6 + $0x78] sm:$0xff]
          %v1870 = vld [vmem:[%s6 + $0x80] sm:$0xf]
          %v1871 = vld [vmem:[%s6 + $0x84] sm:$0xff]
          %v1872 = vld [vmem:[%s6 + $0x8c] sm:$0xf]
          %v1873 = vld [vmem:[%s6 + $0x90] sm:$0xff]
          %v1874 = vld [vmem:[%s6 + $0x98] sm:$0xf]
          %v1875 = vld [vmem:[%s6 + $0x9c] sm:$0xff]
          %v1876 = vld [vmem:[%s6 + $0xa4] sm:$0xf]
          %v1877 = vld [vmem:[%s6 + $0xa8] sm:$0xff]
          %v1878 = vld [vmem:[%s6 + $0xb0] sm:$0xf]
          %v1879 = vld [vmem:[%s6 + $0xb4] sm:$0xff]
          %v1880 = vld [vmem:[%s6 + $0xbc] sm:$0xf]
          %v1881 = vld [vmem:[%s6 + $0xc0] sm:$0xff]
          %v1882 = vld [vmem:[%s6 + $0xc8] sm:$0xf]
          %v1883 = vld [vmem:[%s6 + $0xcc] sm:$0xff]
          %v1884 = vld [vmem:[%s6 + $0xd4] sm:$0xf]
          %v1885 = vld [vmem:[%s6 + $0xd8] sm:$0xff]
          %v1886 = vld [vmem:[%s6 + $0xe0] sm:$0xf]
          %v1887 = vld [vmem:[%s6 + $0xe4] sm:$0xff]
          %v1888 = vld [vmem:[%s6 + $0xec] sm:$0xf]
          %v1889 = vld [vmem:[%s6 + $0xf0] sm:$0xff]
          %v1890 = vld [vmem:[%s6 + $0xf8] sm:$0xf]
          %v1891 = vld [vmem:[%s6 + $0xfc] sm:$0xff]
          %v1892 = vld [vmem:[%s6 + $0x104] sm:$0xf]
          %v1893 = vld [vmem:[%s6 + $0x108] sm:$0xff]
          %v1894 = vld [vmem:[%s6 + $0x110] sm:$0xf]
          %v1895 = vld [vmem:[%s6 + $0x114] sm:$0xff]
          %v1896 = vld [vmem:[%s6 + $0x11c] sm:$0xf]
          %v1897 = vld [vmem:[%s6 + $0x120] sm:$0xff]
          %v1898 = vld [vmem:[%s6 + $0x128] sm:$0xf]
          %v1899 = vld [vmem:[%s6 + $0x12c] sm:$0xff]
          %v1900 = vld [vmem:[%s6 + $0x134] sm:$0xf]
          %v1901 = vld [vmem:[%s6 + $0x138] sm:$0xff]
          %v1902 = vld [vmem:[%s6 + $0x140] sm:$0xf]
          %v1903 = vld [vmem:[%s6 + $0x144] sm:$0xff]
          %v1904 = vld [vmem:[%s6 + $0x14c] sm:$0xf]
          %v1905 = vld [vmem:[%s6 + $0x150] sm:$0xff]
          %v1906 = vld [vmem:[%s6 + $0x158] sm:$0xf]
          %v1907 = vld [vmem:[%s6 + $0x15c] sm:$0xff]
          %v1908 = vld [vmem:[%s6 + $0x164] sm:$0xf]
          %v1909 = vld [vmem:[%s6 + $0x168] sm:$0xff]
          %v1910 = vld [vmem:[%s6 + $0x170] sm:$0xf]
          %v1911 = vld [vmem:[%s6 + $0x174] sm:$0xff]
          %v1912 = vld [vmem:[%s6 + $0x17c] sm:$0xf]
          %v1977 = vunpack.c.l.b16 %v1849
          %v1978 = vunpack.c.h.b16 %v1849
          %v1979 = vunpack.c.l.b16 %v1850
          %v1980 = vunpack.c.l.b16 %v1851
          %v1981 = vunpack.c.h.b16 %v1851
          %v1982 = vunpack.c.l.b16 %v1852
          %v1983 = vunpack.c.l.b16 %v1853
          %v1984 = vunpack.c.h.b16 %v1853
          %v1985 = vunpack.c.l.b16 %v1854
          %v1986 = vunpack.c.l.b16 %v1855
          %v1987 = vunpack.c.h.b16 %v1855
          %v1988 = vunpack.c.l.b16 %v1856
          %v1989 = vunpack.c.l.b16 %v1857
          %v1990 = vunpack.c.h.b16 %v1857
          %v1991 = vunpack.c.l.b16 %v1858
          %v1992 = vunpack.c.l.b16 %v1859
          %v1993 = vunpack.c.h.b16 %v1859
          %v1994 = vunpack.c.l.b16 %v1860
          %v1995 = vunpack.c.l.b16 %v1861
          %v1996 = vunpack.c.h.b16 %v1861
          %v1997 = vunpack.c.l.b16 %v1862
          %v1998 = vunpack.c.l.b16 %v1863
          %v1999 = vunpack.c.h.b16 %v1863
          %v2000 = vunpack.c.l.b16 %v1864
          %v2001 = vunpack.c.l.b16 %v1865
          %v2002 = vunpack.c.h.b16 %v1865
          %v2003 = vunpack.c.l.b16 %v1866
          %v2004 = vunpack.c.l.b16 %v1867
          %v2005 = vunpack.c.h.b16 %v1867
          %v2006 = vunpack.c.l.b16 %v1868
          %v2007 = vunpack.c.l.b16 %v1869
          %v2008 = vunpack.c.h.b16 %v1869
          %v2009 = vunpack.c.l.b16 %v1870
          %v2010 = vunpack.c.l.b16 %v1871
          %v2011 = vunpack.c.h.b16 %v1871
          %v2012 = vunpack.c.l.b16 %v1872
          %v2013 = vunpack.c.l.b16 %v1873
          %v2014 = vunpack.c.h.b16 %v1873
          %v2015 = vunpack.c.l.b16 %v1874
          %v2016 = vunpack.c.l.b16 %v1875
          %v2017 = vunpack.c.h.b16 %v1875
          %v2018 = vunpack.c.l.b16 %v1876
          %v2019 = vunpack.c.l.b16 %v1877
          %v2020 = vunpack.c.h.b16 %v1877
          %v2021 = vunpack.c.l.b16 %v1878
          %v2022 = vunpack.c.l.b16 %v1879
          %v2023 = vunpack.c.h.b16 %v1879
          %v2024 = vunpack.c.l.b16 %v1880
          %v2025 = vunpack.c.l.b16 %v1881
          %v2026 = vunpack.c.h.b16 %v1881
          %v2027 = vunpack.c.l.b16 %v1882
          %v2028 = vunpack.c.l.b16 %v1883
          %v2029 = vunpack.c.h.b16 %v1883
          %v2030 = vunpack.c.l.b16 %v1884
          %v2031 = vunpack.c.l.b16 %v1885
          %v2032 = vunpack.c.h.b16 %v1885
          %v2033 = vunpack.c.l.b16 %v1886
          %v2034 = vunpack.c.l.b16 %v1887
          %v2035 = vunpack.c.h.b16 %v1887
          %v2036 = vunpack.c.l.b16 %v1888
          %v2037 = vunpack.c.l.b16 %v1889
          %v2038 = vunpack.c.h.b16 %v1889
          %v2039 = vunpack.c.l.b16 %v1890
          %v2040 = vunpack.c.l.b16 %v1891
          %v2041 = vunpack.c.h.b16 %v1891
          %v2042 = vunpack.c.l.b16 %v1892
          %v2043 = vunpack.c.l.b16 %v1893
          %v2044 = vunpack.c.h.b16 %v1893
          %v2045 = vunpack.c.l.b16 %v1894
          %v2046 = vunpack.c.l.b16 %v1895
          %v2047 = vunpack.c.h.b16 %v1895
          %v2048 = vunpack.c.l.b16 %v1896
          %v2049 = vunpack.c.l.b16 %v1897
          %v2050 = vunpack.c.h.b16 %v1897
          %v2051 = vunpack.c.l.b16 %v1898
          %v2052 = vunpack.c.l.b16 %v1899
          %v2053 = vunpack.c.h.b16 %v1899
          %v2054 = vunpack.c.l.b16 %v1900
          %v2055 = vunpack.c.l.b16 %v1901
          %v2056 = vunpack.c.h.b16 %v1901
          %v2057 = vunpack.c.l.b16 %v1902
          %v2058 = vunpack.c.l.b16 %v1903
          %v2059 = vunpack.c.h.b16 %v1903
          %v2060 = vunpack.c.l.b16 %v1904
          %v2061 = vunpack.c.l.b16 %v1905
          %v2062 = vunpack.c.h.b16 %v1905
          %v2063 = vunpack.c.l.b16 %v1906
          %v2064 = vunpack.c.l.b16 %v1907
          %v2065 = vunpack.c.h.b16 %v1907
          %v2066 = vunpack.c.l.b16 %v1908
          %v2067 = vunpack.c.l.b16 %v1909
          %v2068 = vunpack.c.h.b16 %v1909
          %v2069 = vunpack.c.l.b16 %v1910
          %v2070 = vunpack.c.l.b16 %v1911
          %v2071 = vunpack.c.h.b16 %v1911
          %v2072 = vunpack.c.l.b16 %v1912
          %v2073 = vpack.c.b16 %v1980, %v1977
          %v2074 = vpack.c.b16 %v1981, %v1978
          %v2075 = vpack.c.b16 %v1982, %v1979
          %v2076 = vpack.c.b16 %v1986, %v1983
          %v2077 = vpack.c.b16 %v1987, %v1984
          %v2078 = vpack.c.b16 %v1988, %v1985
          %v2079 = vpack.c.b16 %v1992, %v1989
          %v2080 = vpack.c.b16 %v1993, %v1990
          %v2081 = vpack.c.b16 %v1994, %v1991
          %v2082 = vpack.c.b16 %v1998, %v1995
          %v2083 = vpack.c.b16 %v1999, %v1996
          %v2084 = vpack.c.b16 %v2000, %v1997
          %v2085 = vpack.c.b16 %v2004, %v2001
          %v2086 = vpack.c.b16 %v2005, %v2002
          %v2087 = vpack.c.b16 %v2006, %v2003
          %v2088 = vpack.c.b16 %v2010, %v2007
          %v2089 = vpack.c.b16 %v2011, %v2008
          %v2090 = vpack.c.b16 %v2012, %v2009
          %v2091 = vpack.c.b16 %v2016, %v2013
          %v2092 = vpack.c.b16 %v2017, %v2014
          %v2093 = vpack.c.b16 %v2018, %v2015
          %v2094 = vpack.c.b16 %v2022, %v2019
          %v2095 = vpack.c.b16 %v2023, %v2020
          %v2096 = vpack.c.b16 %v2024, %v2021
          %v2097 = vpack.c.b16 %v2028, %v2025
          %v2098 = vpack.c.b16 %v2029, %v2026
          %v2099 = vpack.c.b16 %v2030, %v2027
          %v2100 = vpack.c.b16 %v2034, %v2031
          %v2101 = vpack.c.b16 %v2035, %v2032
          %v2102 = vpack.c.b16 %v2036, %v2033
          %v2103 = vpack.c.b16 %v2040, %v2037
          %v2104 = vpack.c.b16 %v2041, %v2038
          %v2105 = vpack.c.b16 %v2042, %v2039
          %v2106 = vpack.c.b16 %v2046, %v2043
          %v2107 = vpack.c.b16 %v2047, %v2044
          %v2108 = vpack.c.b16 %v2048, %v2045
          %v2109 = vpack.c.b16 %v2052, %v2049
          %v2110 = vpack.c.b16 %v2053, %v2050
          %v2111 = vpack.c.b16 %v2054, %v2051
          %v2112 = vpack.c.b16 %v2058, %v2055
          %v2113 = vpack.c.b16 %v2059, %v2056
          %v2114 = vpack.c.b16 %v2060, %v2057
          %v2115 = vpack.c.b16 %v2064, %v2061
          %v2116 = vpack.c.b16 %v2065, %v2062
          %v2117 = vpack.c.b16 %v2066, %v2063
          %v2118 = vpack.c.b16 %v2070, %v2067
          %v2119 = vpack.c.b16 %v2071, %v2068
          %v2120 = vpack.c.b16 %v2072, %v2069
          %2169 = vmatprep.subr.bf16.mxu0 %v2095
          %2170 = vmatpush1.bf16.msra.mxu0 %v2094
          %2171 = vmatprep.subr.bf16.mxu0 %v2092
          %2172 = vmatpush1.bf16.msra.mxu0 %v2091
          %2173 = vmatprep.subr.bf16.mxu0 %v2089
          %2174 = vmatpush1.bf16.msra.mxu0 %v2088
          %2175 = vmatprep.subr.bf16.mxu0 %v2086
          %2176 = vmatpush1.bf16.msra.mxu0 %v2085
          %2177 = vmatprep.subr.bf16.mxu0 %v2083
          %2178 = vmatpush1.bf16.msra.mxu0 %v2082
          %2179 = vmatprep.subr.bf16.mxu0 %v2080
          %2180 = vmatpush1.bf16.msra.mxu0 %v2079
          %2181 = vmatprep.subr.bf16.mxu0 %v2077
          %2182 = vmatpush1.bf16.msra.mxu0 %v2076
          %2183 = vmatprep.subr.bf16.mxu0 %v2074
          %2184 = vmatpush1.bf16.msra.mxu0 %v2073
          %2185 = vmatprep.subr.bf16.mxu0 %v2119
          %2186 = vmatpush2.bf16.msra.mxu0 %v2118
          %2187 = vmatprep.subr.bf16.mxu0 %v2116
          %2188 = vmatpush2.bf16.msra.mxu0 %v2115
          %2189 = vmatprep.subr.bf16.mxu0 %v2113
          %2190 = vmatpush2.bf16.msra.mxu0 %v2112
          %2191 = vmatprep.subr.bf16.mxu0 %v2110
          %2192 = vmatpush2.bf16.msra.mxu0 %v2109
          %2193 = vmatprep.subr.bf16.mxu0 %v2107
          %2194 = vmatpush2.bf16.msra.mxu0 %v2106
          %2195 = vmatprep.subr.bf16.mxu0 %v2104
          %2196 = vmatpush2.bf16.msra.mxu0 %v2103
          %2197 = vmatprep.subr.bf16.mxu0 %v2101
          %2198 = vmatpush2.bf16.msra.mxu0 %v2100
          %2199 = vmatprep.subr.bf16.mxu0 %v2098
          %2200 = vmatpush2.bf16.msra.mxu0 %v2097
          %2201 = vmatprep.mubr.bf16.mxu0 %v1834
          %2202 = vmatmul.mubr.bf16.gmra.mxu0 %v1833
          %v2203 = vpop.f32.mrf.mxu0
          %v2204 = vadd.f32 0.0, %v2203
          %v2205 = vpop.f32.mrf.mxu0
          %v2206 = vadd.f32 0.0, %v2205
          %v2207 = vpop.f32.mrf.mxu0
          %v2208 = vadd.f32 0.0, %v2207
          %v2209 = vpop.f32.mrf.mxu0
          %v2210 = vadd.f32 0.0, %v2209
          %2211 = vmatprep.mubr.bf16.mxu0 %v1836
          %2212 = vmatmul.mubr.bf16.gmra.mxu0 %v1835
          %v2213 = vpop.f32.mrf.mxu0
          %v2214 = vadd.f32 0.0, %v2213
          %v2215 = vpop.f32.mrf.mxu0
          %v2216 = vadd.f32 0.0, %v2215
          %v2217 = vpop.f32.mrf.mxu0
          %v2218 = vadd.f32 0.0, %v2217
          %v2219 = vpop.f32.mrf.mxu0
          %v2220 = vadd.f32 0.0, %v2219
          %2221 = vmatprep.mubr.bf16.mxu0 %v1838
          %2222 = vmatmul.mubr.bf16.gmra.mxu0 %v1837
          %v2223 = vpop.f32.mrf.mxu0
          %v2224 = vadd.f32 0.0, %v2223
          %v2225 = vpop.f32.mrf.mxu0
          %v2226 = vadd.f32 0.0, %v2225
          %v2227 = vpop.f32.mrf.mxu0
          %v2228 = vadd.f32 0.0, %v2227
          %v2229 = vpop.f32.mrf.mxu0
          %v2230 = vadd.f32 0.0, %v2229
          %2231 = vmatprep.mubr.bf16.mxu0 %v1840
          %2232 = vmatmul.mubr.bf16.gmra.mxu0 %v1839
          %v2233 = vpop.f32.mrf.mxu0
          %v2234 = vadd.f32 0.0, %v2233
          %v2235 = vpop.f32.mrf.mxu0
          %v2236 = vadd.f32 0.0, %v2235
          %v2237 = vpop.f32.mrf.mxu0
          %v2238 = vadd.f32 0.0, %v2237
          %v2239 = vpop.f32.mrf.mxu0
          %v2240 = vadd.f32 0.0, %v2239
          %2241 = vmatprep.mubr.bf16.mxu0 %v1842
          %2242 = vmatmul.mubr.bf16.gmra.mxu0 %v1841
          %v2243 = vpop.f32.mrf.mxu0
          %v2244 = vadd.f32 0.0, %v2243
          %v2245 = vpop.f32.mrf.mxu0
          %v2246 = vadd.f32 0.0, %v2245
          %v2247 = vpop.f32.mrf.mxu0
          %v2248 = vadd.f32 0.0, %v2247
          %v2249 = vpop.f32.mrf.mxu0
          %v2250 = vadd.f32 0.0, %v2249
          %2251 = vmatprep.mubr.bf16.mxu0 %v1844
          %2252 = vmatmul.mubr.bf16.gmra.mxu0 %v1843
          %v2253 = vpop.f32.mrf.mxu0
          %v2254 = vadd.f32 0.0, %v2253
          %v2255 = vpop.f32.mrf.mxu0
          %v2256 = vadd.f32 0.0, %v2255
          %v2257 = vpop.f32.mrf.mxu0
          %v2258 = vadd.f32 0.0, %v2257
          %v2259 = vpop.f32.mrf.mxu0
          %v2260 = vadd.f32 0.0, %v2259
          %2261 = vmatprep.mubr.bf16.mxu0 %v1846
          %2262 = vmatmul.mubr.bf16.gmra.mxu0 %v1845
          %v2263 = vpop.f32.mrf.mxu0
          %v2264 = vadd.f32 0.0, %v2263
          %v2265 = vpop.f32.mrf.mxu0
          %v2266 = vadd.f32 0.0, %v2265
          %v2267 = vpop.f32.mrf.mxu0
          %v2268 = vadd.f32 0.0, %v2267
          %v2269 = vpop.f32.mrf.mxu0
          %v2270 = vadd.f32 0.0, %v2269
          %2271 = vmatprep.mubr.bf16.mxu0 %v1848
          %2272 = vmatmul.mubr.bf16.gmra.mxu0 %v1847
          %v2273 = vpop.f32.mrf.mxu0
          %v2274 = vadd.f32 0.0, %v2273
          %v2275 = vpop.f32.mrf.mxu0
          %v2276 = vadd.f32 0.0, %v2275
          %v2277 = vpop.f32.mrf.mxu0
          %v2278 = vadd.f32 0.0, %v2277
          %v2279 = vpop.f32.mrf.mxu0
          %v2280 = vadd.f32 0.0, %v2279
          %2281 = vdwg.mxu0
          %2282 = vmatprep.subr.bf16.mxu0 0
          %2283 = vmatpush1.bf16.msra.mxu0 %v2096
          %2284 = vmatprep.subr.bf16.mxu0 0
          %2285 = vmatpush1.bf16.msra.mxu0 %v2093
          %2286 = vmatprep.subr.bf16.mxu0 0
          %2287 = vmatpush1.bf16.msra.mxu0 %v2090
          %2288 = vmatprep.subr.bf16.mxu0 0
          %2289 = vmatpush1.bf16.msra.mxu0 %v2087
          %2290 = vmatprep.subr.bf16.mxu0 0
          %2291 = vmatpush1.bf16.msra.mxu0 %v2084
          %2292 = vmatprep.subr.bf16.mxu0 0
          %2293 = vmatpush1.bf16.msra.mxu0 %v2081
          %2294 = vmatprep.subr.bf16.mxu0 0
          %2295 = vmatpush1.bf16.msra.mxu0 %v2078
          %2296 = vmatprep.subr.bf16.mxu0 0
          %2297 = vmatpush1.bf16.msra.mxu0 %v2075
          %2298 = vmatprep.subr.bf16.mxu0 0
          %2299 = vmatpush2.bf16.msra.mxu0 %v2120
          %2300 = vmatprep.subr.bf16.mxu0 0
          %2301 = vmatpush2.bf16.msra.mxu0 %v2117
          %2302 = vmatprep.subr.bf16.mxu0 0
          %2303 = vmatpush2.bf16.msra.mxu0 %v2114
          %2304 = vmatprep.subr.bf16.mxu0 0
          %2305 = vmatpush2.bf16.msra.mxu0 %v2111
          %2306 = vmatprep.subr.bf16.mxu0 0
          %2307 = vmatpush2.bf16.msra.mxu0 %v2108
          %2308 = vmatprep.subr.bf16.mxu0 0
          %2309 = vmatpush2.bf16.msra.mxu0 %v2105
          %2310 = vmatprep.subr.bf16.mxu0 0
          %2311 = vmatpush2.bf16.msra.mxu0 %v2102
          %2312 = vmatprep.subr.bf16.mxu0 0
          %2313 = vmatpush2.bf16.msra.mxu0 %v2099
          %2314 = vmatprep.mubr.bf16.mxu0 %v1834
          %2315 = vmatmul.mubr.bf16.gmra.mxu0 %v1833
          %v2316 = vpop.f32.mrf.mxu0
          %v2317 = vadd.f32 0.0, %v2316
          %v2318 = vpop.f32.mrf.mxu0
          %v2319 = vpop.f32.mrf.mxu0
          %v2320 = vadd.f32 0.0, %v2319
          %v2321 = vpop.f32.mrf.mxu0
          %2322 = vmatprep.mubr.bf16.mxu0 %v1836
          %2323 = vmatmul.mubr.bf16.gmra.mxu0 %v1835
          %v2324 = vpop.f32.mrf.mxu0
          %v2325 = vadd.f32 0.0, %v2324
          %v2326 = vpop.f32.mrf.mxu0
          %v2327 = vpop.f32.mrf.mxu0
          %v2328 = vadd.f32 0.0, %v2327
          %v2329 = vpop.f32.mrf.mxu0
          %2330 = vmatprep.mubr.bf16.mxu0 %v1838
          %2331 = vmatmul.mubr.bf16.gmra.mxu0 %v1837
          %v2332 = vpop.f32.mrf.mxu0
          %v2333 = vadd.f32 0.0, %v2332
          %v2334 = vpop.f32.mrf.mxu0
          %v2335 = vpop.f32.mrf.mxu0
          %v2336 = vadd.f32 0.0, %v2335
          %v2337 = vpop.f32.mrf.mxu0
          %2338 = vmatprep.mubr.bf16.mxu0 %v1840
          %2339 = vmatmul.mubr.bf16.gmra.mxu0 %v1839
          %v2340 = vpop.f32.mrf.mxu0
          %v2341 = vadd.f32 0.0, %v2340
          %v2342 = vpop.f32.mrf.mxu0
          %v2343 = vpop.f32.mrf.mxu0
          %v2344 = vadd.f32 0.0, %v2343
          %v2345 = vpop.f32.mrf.mxu0
          %2346 = vmatprep.mubr.bf16.mxu0 %v1842
          %2347 = vmatmul.mubr.bf16.gmra.mxu0 %v1841
          %v2348 = vpop.f32.mrf.mxu0
          %v2349 = vadd.f32 0.0, %v2348
          %v2350 = vpop.f32.mrf.mxu0
          %v2351 = vpop.f32.mrf.mxu0
          %v2352 = vadd.f32 0.0, %v2351
          %v2353 = vpop.f32.mrf.mxu0
          %2354 = vmatprep.mubr.bf16.mxu0 %v1844
          %2355 = vmatmul.mubr.bf16.gmra.mxu0 %v1843
          %v2356 = vpop.f32.mrf.mxu0
          %v2357 = vadd.f32 0.0, %v2356
          %v2358 = vpop.f32.mrf.mxu0
          %v2359 = vpop.f32.mrf.mxu0
          %v2360 = vadd.f32 0.0, %v2359
          %v2361 = vpop.f32.mrf.mxu0
          %2362 = vmatprep.mubr.bf16.mxu0 %v1846
          %2363 = vmatmul.mubr.bf16.gmra.mxu0 %v1845
          %v2364 = vpop.f32.mrf.mxu0
          %v2365 = vadd.f32 0.0, %v2364
          %v2366 = vpop.f32.mrf.mxu0
          %v2367 = vpop.f32.mrf.mxu0
          %v2368 = vadd.f32 0.0, %v2367
          %v2369 = vpop.f32.mrf.mxu0
          %2370 = vmatprep.mubr.bf16.mxu0 %v1848
          %2371 = vmatmul.mubr.bf16.gmra.mxu0 %v1847
          %v2372 = vpop.f32.mrf.mxu0
          %v2373 = vadd.f32 0.0, %v2372
          %v2374 = vpop.f32.mrf.mxu0
          %v2375 = vpop.f32.mrf.mxu0
          %v2376 = vadd.f32 0.0, %v2375
          %v2377 = vpop.f32.mrf.mxu0
          %2378 = vdwg.mxu0
          %v2379 = vpack.c.bf16 %v2208, %v2204
          %v2380 = vpack.c.bf16 %v2210, %v2206
          %v2381 = vpack.c.bf16 %v2218, %v2214
          %v2382 = vpack.c.bf16 %v2220, %v2216
          %v2383 = vpack.c.bf16 %v2228, %v2224
          %v2384 = vpack.c.bf16 %v2230, %v2226
          %v2385 = vpack.c.bf16 %v2238, %v2234
          %v2386 = vpack.c.bf16 %v2240, %v2236
          %v2387 = vpack.c.bf16 %v2248, %v2244
          %v2388 = vpack.c.bf16 %v2250, %v2246
          %v2389 = vpack.c.bf16 %v2258, %v2254
          %v2390 = vpack.c.bf16 %v2260, %v2256
          %v2391 = vpack.c.bf16 %v2268, %v2264
          %v2392 = vpack.c.bf16 %v2270, %v2266
          %v2393 = vpack.c.bf16 %v2278, %v2274
          %v2394 = vpack.c.bf16 %v2280, %v2276
          %v2411 = vunpack.c.l.b16 %v2379
          %v2412 = vunpack.c.l.b16 %v2380
          %v2413 = vunpack.c.h.b16 %v2379
          %v2414 = vunpack.c.h.b16 %v2380
          %v2415 = vunpack.c.l.b16 %v2381
          %v2416 = vunpack.c.l.b16 %v2382
          %v2417 = vunpack.c.h.b16 %v2381
          %v2418 = vunpack.c.h.b16 %v2382
          %v2419 = vunpack.c.l.b16 %v2383
          %v2420 = vunpack.c.l.b16 %v2384
          %v2421 = vunpack.c.h.b16 %v2383
          %v2422 = vunpack.c.h.b16 %v2384
          %v2423 = vunpack.c.l.b16 %v2385
          %v2424 = vunpack.c.l.b16 %v2386
          %v2425 = vunpack.c.h.b16 %v2385
          %v2426 = vunpack.c.h.b16 %v2386
          %v2427 = vunpack.c.l.b16 %v2387
          %v2428 = vunpack.c.l.b16 %v2388
          %v2429 = vunpack.c.h.b16 %v2387
          %v2430 = vunpack.c.h.b16 %v2388
          %v2431 = vunpack.c.l.b16 %v2389
          %v2432 = vunpack.c.l.b16 %v2390
          %v2433 = vunpack.c.h.b16 %v2389
          %v2434 = vunpack.c.h.b16 %v2390
          %v2435 = vunpack.c.l.b16 %v2391
          %v2436 = vunpack.c.l.b16 %v2392
          %v2437 = vunpack.c.h.b16 %v2391
          %v2438 = vunpack.c.h.b16 %v2392
          %v2439 = vunpack.c.l.b16 %v2393
          %v2440 = vunpack.c.l.b16 %v2394
          %v2441 = vunpack.c.h.b16 %v2393
          %v2442 = vunpack.c.h.b16 %v2394
          %v2443 = vpack.c.b16 %v2412, %v2411
          %v2444 = vpack.c.b16 %v2414, %v2413
          %v2445 = vpack.c.b16 %v2416, %v2415
          %v2446 = vpack.c.b16 %v2418, %v2417
          %v2447 = vpack.c.b16 %v2420, %v2419
          %v2448 = vpack.c.b16 %v2422, %v2421
          %v2449 = vpack.c.b16 %v2424, %v2423
          %v2450 = vpack.c.b16 %v2426, %v2425
          %v2451 = vpack.c.b16 %v2428, %v2427
          %v2452 = vpack.c.b16 %v2430, %v2429
          %v2453 = vpack.c.b16 %v2432, %v2431
          %v2454 = vpack.c.b16 %v2434, %v2433
          %v2455 = vpack.c.b16 %v2436, %v2435
          %v2456 = vpack.c.b16 %v2438, %v2437
          %v2457 = vpack.c.b16 %v2440, %v2439
          %v2458 = vpack.c.b16 %v2442, %v2441
          %2475 = vst [vmem:[%s421] sm:$0xff] %v2443
          %2476 = vst [vmem:[%s421 + $0x8] sm:$0xff] %v2444
          %2477 = vst [vmem:[%s421 + $0x10] sm:$0xff] %v2445
          %2478 = vst [vmem:[%s421 + $0x18] sm:$0xff] %v2446
          %2479 = vst [vmem:[%s421 + $0x20] sm:$0xff] %v2447
          %2480 = vst [vmem:[%s421 + $0x28] sm:$0xff] %v2448
          %2481 = vst [vmem:[%s421 + $0x30] sm:$0xff] %v2449
          %2482 = vst [vmem:[%s421 + $0x38] sm:$0xff] %v2450
          %2483 = vst [vmem:[%s421 + $0x40] sm:$0xff] %v2451
          %2484 = vst [vmem:[%s421 + $0x48] sm:$0xff] %v2452
          %2485 = vst [vmem:[%s421 + $0x50] sm:$0xff] %v2453
          %2486 = vst [vmem:[%s421 + $0x58] sm:$0xff] %v2454
          %2487 = vst [vmem:[%s421 + $0x60] sm:$0xff] %v2455
          %2488 = vst [vmem:[%s421 + $0x68] sm:$0xff] %v2456
          %2489 = vst [vmem:[%s421 + $0x70] sm:$0xff] %v2457
          %2490 = vst [vmem:[%s421 + $0x78] sm:$0xff] %v2458
          %2491 = vst [vmem:[%s427] sm:$0xff] %v2317
          %2492 = vst [vmem:[%s427 + $0x8] sm:$0xff] %v2320
          %2493 = vst [vmem:[%s427 + $0x10] sm:$0xff] %v2325
          %2494 = vst [vmem:[%s427 + $0x18] sm:$0xff] %v2328
          %2495 = vst [vmem:[%s427 + $0x20] sm:$0xff] %v2333
          %2496 = vst [vmem:[%s427 + $0x28] sm:$0xff] %v2336
          %2497 = vst [vmem:[%s427 + $0x30] sm:$0xff] %v2341
          %2498 = vst [vmem:[%s427 + $0x38] sm:$0xff] %v2344
          %2499 = vst [vmem:[%s427 + $0x40] sm:$0xff] %v2349
          %2500 = vst [vmem:[%s427 + $0x48] sm:$0xff] %v2352
          %2501 = vst [vmem:[%s427 + $0x50] sm:$0xff] %v2357
          %2502 = vst [vmem:[%s427 + $0x58] sm:$0xff] %v2360
          %2503 = vst [vmem:[%s427 + $0x60] sm:$0xff] %v2365
          %2504 = vst [vmem:[%s427 + $0x68] sm:$0xff] %v2368
          %2505 = vst [vmem:[%s427 + $0x70] sm:$0xff] %v2373
          %2506 = vst [vmem:[%s427 + $0x78] sm:$0xff] %v2376
        $region94: #{gat_forward.4} parent=77 // pred_fallthru
          _
        %s2507 = smul.u32 16, %s30
        %p2508 = scmp.lt.s32.totalorder %s2507, 63
        %s2509 = scalar_select %p2508, %s2507, 63
        %s2510 = smul.addr %s2509, 2
        %s2511 = smul.addr %s2510, 4
        %s2512 = scalar_lea.vmem %s7, %s2511
        %s2513 = smul.u32 16, %s30
        %p2514 = scmp.lt.s32.totalorder %s2513, 63
        %s2515 = scalar_select %p2514, %s2513, 63
        %s2516 = smul.addr %s2515, 8
        %s2517 = scalar_lea.vmem %s8, %s2516
        // Predicated region
        $region95: #{gat_forward.4} parent=77 // pred_check
          %p2518 = pneg %p204
        $region96: #{gat_forward.4} parent=77 // pred_check_branch
          %2520 = sbr.rel (%p2518) target = $region98
        $region97: #{gat_forward.4} parent=77 // pred_region
          %s2521 = smul.u32 16, %s30
        $region98: #{gat_forward.4} parent=77 // pred_fallthru
          _
        // Predicated region
        $region99: #{gat_forward.4} parent=77 // pred_check
          %p2522 = pneg %p230
        $region100: #{gat_forward.4} parent=77 // pred_check_branch
          %2524 = sbr.rel (%p2522) target = $region102
        $region101: #{gat_forward.4} parent=77 // pred_region
          %s2525 = smul.u32 16, %s30
        $region102: #{gat_forward.4} parent=77 // pred_fallthru
          _
      $region78: #{gat_forward.4} parent=5 // pred_fallthru
        _
      %p2526 = scmp.le.s32.totalorder 2, %s21
      // Predicated region
      $region103: #{gat_forward.4} parent=5 // pred_check
        %p2527 = pneg %p2526
      $region104: #{gat_forward.4} parent=5 // pred_check_branch
        %2529 = sbr.rel (%p2527) target = $region106
      $region105: #{gat_forward.4} parent=5 // pred_region
        %s2530 = ssub.s32 %s21, 2
        // Predicated region
        $region107: #{gat_forward.4} parent=105 // pred_check
          %p2531 = pneg %p210
        $region108: #{gat_forward.4} parent=105 // pred_check_branch
          %2533 = sbr.rel (%p2531) target = $region110
        $region109: #{gat_forward.4} parent=105 // pred_region
          %s2534 = smul.u32 16, %s32
          %p2535 = scmp.lt.s32.totalorder %s2534, 63
          %s2536 = scalar_select %p2535, %s2534, 63
          %s2537 = smul.addr %s2536, 2
          %s2538 = smul.addr %s2537, 4
          %s2539 = scalar_lea.vmem %s7, %s2538
        $region110: #{gat_forward.4} parent=105 // pred_fallthru
          _
        // Predicated region
        $region111: #{gat_forward.4} parent=105 // pred_check
          %p2540 = pneg %p236
        $region112: #{gat_forward.4} parent=105 // pred_check_branch
          %2542 = sbr.rel (%p2540) target = $region114
        $region113: #{gat_forward.4} parent=105 // pred_region
          %s2543 = smul.u32 16, %s32
          %p2544 = scmp.lt.s32.totalorder %s2543, 63
          %s2545 = scalar_select %p2544, %s2543, 63
          %s2546 = smul.addr %s2545, 8
          %s2547 = scalar_lea.vmem %s8, %s2546
        $region114: #{gat_forward.4} parent=105 // pred_fallthru
          _
      $region106: #{gat_forward.4} parent=5 // pred_fallthru
        _
    $region6: #{gat_forward.4} parent=1 // loop_footer
      %s25 = sadd.s32 1, %s21
    $region7: #{gat_forward.4} parent=1 // loop_footer_branch
      %20 = sbr.rel target = $region3
    $region8: #{gat_forward.4} parent=1 // loop_exit
      _

</llo_original>
